<compile_context>
chip_gen: v7x
topology: tpu7x:2x2x1
jax: 0.10.0
libtpu: 0.0.40
codegen_flags: <defaults>
</compile_context>

<pallas_src>
import functools
import math

import jax
import jax.numpy as jnp
from jax.experimental import pallas as pl
from jax.experimental.pallas import tpu as pltpu


def _gelu_tanh(z):
    # tanh-form GELU (EUP tanh); deviation from torch's exact erf GELU is far
    # below the test tolerance.
    # TODO(synk): on v6e/v7x this polynomial could run in bf16 (bf16 VPU/EUP);
    # kept f32 so v5e (no bf16 VPU/EUP) takes the same path.
    c = 0.7978845608028654  # sqrt(2/pi)
    return 0.5 * z * (1.0 + jnp.tanh(c * (z + 0.044715 * z * z * z)))


def encoder_layer_kernel(
    x_ref, bias_ref,                                   # activations
    g1_ref, be1_ref,                                   # self_attention_norm
    wqkv_ref, bqkv_ref,                                # fused in_proj (Q pre-scaled)
    wo_ref, bo_ref,                                    # MHA out_proj
    g2_ref, be2_ref,                                   # ffn_norm
    w1_ref, b1_ref, w2_ref, b2_ref,                    # FFN
    out_ref,                                           # (1, TQ, D) output tile
    qkv_ref,                                           # (3, L, D) bf16 scratch
    *, num_heads):
    eps = 1e-5
    f32, bf16 = jnp.float32, jnp.bfloat16
    L, D = x_ref.shape[1], x_ref.shape[2]
    TQ = out_ref.shape[1]
    hd = D // num_heads
    qi = pl.program_id(1)
    q0 = pl.multiple_of(qi * TQ, TQ)

    def layer_norm(v, g, b):
        # (x - mu)^2 form: no E[x^2]-E[x]^2 cancellation.
        mu = jnp.mean(v, axis=-1, keepdims=True)
        d = v - mu
        var = jnp.mean(d * d, axis=-1, keepdims=True)
        return d * jax.lax.rsqrt(var + eps) * g + b

    # ---- fused QKV projection, once per batch element (q tile 0) ------------
    @pl.when(qi == 0)
    def _():
        y = layer_norm(x_ref[0], g1_ref[...], be1_ref[...])           # (L, D) f32
        qkv = jnp.dot(y.astype(bf16), wqkv_ref[...],
                      preferred_element_type=f32) + bqkv_ref[...]     # (L, 3D) f32
        qkv_ref[0] = qkv[:, 0 * D:1 * D].astype(bf16)                 # Q (pre-scaled)
        qkv_ref[1] = qkv[:, 1 * D:2 * D].astype(bf16)                 # K
        qkv_ref[2] = qkv[:, 2 * D:3 * D].astype(bf16)                 # V

    # ---- attention for this query tile ---------------------------------------
    q_t = qkv_ref[0, pl.ds(q0, TQ), :]                                # (TQ, D) bf16
    k = qkv_ref[1]                                                    # (L, D)  bf16
    v = qkv_ref[2]                                                    # (L, D)  bf16

    heads = []
    # TODO(synk): for production head counts (>= ~8) switch to lax.fori_loop
    # (small unroll) with a (TQ, D) scratch, or add a head grid axis, so vreg
    # live ranges / compile time do not grow with H.
    for h in range(num_heads):
        lo, hi = h * hd, (h + 1) * hd
        s = jax.lax.dot_general(q_t[:, lo:hi], k[:, lo:hi],
                                (((1,), (1,)), ((), ())),
                                preferred_element_type=f32)           # (TQ, L)
        s = s + bias_ref[0, h].astype(f32)                            # additive bias
        s = s - jnp.max(s, axis=-1, keepdims=True)
        p = jnp.exp(s)
        l = jnp.sum(p, axis=-1, keepdims=True)
        oh = jnp.dot(p.astype(bf16), v[:, lo:hi],
                     preferred_element_type=f32)                      # (TQ, hd)
        heads.append(oh * pl.reciprocal(l, approx=True))              # deferred norm
    attn = jnp.concatenate(heads, axis=-1).astype(bf16)               # (TQ, D)
    attn = jnp.dot(attn, wo_ref[...], preferred_element_type=f32) + bo_ref[...]

    # TODO(synk): self_attention_dropout / attention_dropout / ffn_dropout are
    # identity in eval mode; training-mode dropout not implemented.
    x_t = x_ref[0, pl.ds(q0, TQ), :] + attn                           # (TQ, D) f32

    # ---- FFN branch -----------------------------------------------------------
    y2 = layer_norm(x_t, g2_ref[...], be2_ref[...])
    h1 = jnp.dot(y2.astype(bf16), w1_ref[...],
                 preferred_element_type=f32) + b1_ref[...]
    h1 = _gelu_tanh(h1)
    y2 = jnp.dot(h1.astype(bf16), w2_ref[...],
                 preferred_element_type=f32) + b2_ref[...]
    out_ref[0] = (x_t + y2).astype(out_ref.dtype)


def _q_tile(L):
    # Largest standard query tile dividing L; whole sequence otherwise.
    for tq in (256, 128):
        if L % tq == 0:
            return tq
    return L


def _vmem_limit_bytes():
    cap = 128 * 1024 * 1024
    try:
        info = pltpu.get_tpu_info()
        cap = int(getattr(info, "vmem_capacity_bytes", cap)) or cap
    except Exception:
        pass
    # ~25% headroom for compiler-internal scratch / pipeline buffers
    # (v7x: 64 MiB -> 48 MiB, v5e/v6e: 128 MiB -> 96 MiB, capped at 112 MiB).
    return min(cap * 3 // 4, 112 * 1024 * 1024)


def encoder_layer(x, attn_bias, params, *, num_heads):
    B, L, D = x.shape
    F = params["w1"].shape[-1]
    H = num_heads
    assert D % H == 0
    hd = D // H
    bf16, f32 = jnp.bfloat16, jnp.float32
    TQ = _q_tile(L)
    NQ = L // TQ
    scale = 1.0 / math.sqrt(hd)
    # NOTE: production D / F should be multiples of 128 so output stores and
    # FFN matmuls stay lane-dense (toy D=32 tolerates masked partial stores).

    # linear_bias (A -> H) + permute(0,3,1,2), cast to bf16: the (B,H,L,L)
    # stream dominates HBM bytes, so it is halved relative to f32.
    bias_hb = (jnp.einsum("bqka,ah->bhqk", attn_bias.astype(f32),
                          params["wb"].astype(f32))
               + params["bb"].astype(f32)[None, :, None, None]).astype(bf16)

    # Fused in-proj slab (D, 3D) with 1/sqrt(hd) folded into the Q columns.
    wqkv = jnp.concatenate([params["wq"] * scale, params["wk"], params["wv"]],
                           axis=1).astype(bf16)                        # (D, 3D)
    bqkv = jnp.concatenate([params["bq"] * scale, params["bk"], params["bv"]],
                           axis=1).astype(f32)                         # (1, 3D)
    wo = params["wo"].astype(bf16)
    w1 = params["w1"].astype(bf16)
    w2 = params["w2"].astype(bf16)

    args = (x, bias_hb,
            params["g1"], params["be1"],
            wqkv, bqkv, wo, params["bo"],
            params["g2"], params["be2"],
            w1, params["b1"], w2, params["b2"])

    flops = B * (2 * L * D * 3 * D       # fused QKV projection
                 + 4 * L * L * D         # scores + PV
                 + 2 * L * D * D         # out projection
                 + 4 * L * D * F)        # FFN
    transcendentals = B * (H * L * L + L * F)
    bytes_accessed = (2 * B * L * D * 4 + B * H * L * L * 2
                      + (4 * D * D + 2 * D * F) * 2 + (8 * D + 2 * F) * 4)

    kernel = functools.partial(encoder_layer_kernel, num_heads=H)

    def run(single_buffer_weights):
        def const_block(arr):
            nd = arr.ndim
            kwargs = {}
            if single_buffer_weights:
                # Constant index_map across the grid: double buffering these
                # weights is pure VMEM waste.
                kwargs["pipeline_mode"] = pl.Buffered(1)
            return pl.BlockSpec(arr.shape, lambda b, q, _nd=nd: (0,) * _nd,
                                **kwargs)

        in_specs = [
            pl.BlockSpec((1, L, D), lambda b, q: (b, 0, 0)),           # x (full seq)
            pl.BlockSpec((1, H, TQ, L), lambda b, q: (b, 0, q, 0)),    # bias (q tiled)
        ] + [const_block(a) for a in args[2:]]

        return pl.pallas_call(
            kernel,
            out_shape=jax.ShapeDtypeStruct((B, L, D), x.dtype),
            grid=(B, NQ),
            in_specs=in_specs,
            out_specs=pl.BlockSpec((1, TQ, D), lambda b, q: (b, q, 0)),
            scratch_shapes=[pltpu.VMEM((3, L, D), bf16)],
            compiler_params=pltpu.CompilerParams(
                dimension_semantics=("parallel", "arbitrary"),
                vmem_limit_bytes=_vmem_limit_bytes()),
            cost_estimate=pl.CostEstimate(flops=flops,
                                          transcendentals=transcendentals,
                                          bytes_accessed=bytes_accessed),
        )(*args)

    try:
        return run(True)
    except Exception:
        # pipeline_mode / Buffered(1) unsupported on this jax version:
        # fall back to default double-buffered weight blocks.
        return run(False)


def encoder_layer_ref(x, attn_bias, params, num_heads):
    """Plain-JAX reference mirroring the PyTorch forward (eval mode, f32)."""
    B, L, D = x.shape
    hd = D // num_heads

    def ln(v, g, b):
        mu = jnp.mean(v, -1, keepdims=True)
        var = jnp.mean((v - mu) ** 2, -1, keepdims=True)
        return (v - mu) * jax.lax.rsqrt(var + 1e-5) * g + b

    bias = jnp.einsum("bqka,ah->bhqk", attn_bias, params["wb"]) \
        + params["bb"][None, :, None, None]                      # (B,H,L,L)
    y = ln(x, params["g1"], params["be1"])
    q = (y @ params["wq"] + params["bq"]).reshape(B, L, num_heads, hd).transpose(0, 2, 1, 3)
    k = (y @ params["wk"] + params["bk"]).reshape(B, L, num_heads, hd).transpose(0, 2, 1, 3)
    v = (y @ params["wv"] + params["bv"]).reshape(B, L, num_heads, hd).transpose(0, 2, 1, 3)
    s = jnp.einsum("bhqd,bhkd->bhqk", q / math.sqrt(hd), k) + bias
    p = jax.nn.softmax(s, axis=-1)
    o = jnp.einsum("bhqk,bhkd->bhqd", p, v).transpose(0, 2, 1, 3).reshape(B, L, D)
    attn = o @ params["wo"] + params["bo"]
    x = x + attn
    y = ln(x, params["g2"], params["be2"])
    h1 = jax.nn.gelu(y @ params["w1"] + params["b1"], approximate=False)
    return x + h1 @ params["w2"] + params["b2"]


if __name__ == "__main__":
    # Small shapes: batch=2, seq=8, hidden=32, heads=4, ffn=64, attn_bias_dim=6
    B, L, D, H, A, F = 2, 8, 32, 4, 6, 64

    key = jax.random.PRNGKey(0)
    ks = jax.random.split(key, 22)
    f32 = jnp.float32

    x = jax.random.normal(ks[0], (B, L, D), f32)
    attn_bias = jax.random.normal(ks[1], (B, L, L, A), f32)

    def w(k, shape, scale=0.1):
        return (scale * jax.random.normal(k, shape)).astype(f32)

    params = {
        "wb": w(ks[2], (A, H)), "bb": w(ks[3], (H,)),
        "g1": (1.0 + w(ks[4], (1, D))), "be1": w(ks[5], (1, D)),
        "wq": w(ks[6], (D, D)), "bq": w(ks[7], (1, D)),
        "wk": w(ks[8], (D, D)), "bk": w(ks[9], (1, D)),
        "wv": w(ks[10], (D, D)), "bv": w(ks[11], (1, D)),
        "wo": w(ks[12], (D, D)), "bo": w(ks[13], (1, D)),
        "g2": (1.0 + w(ks[14], (1, D))), "be2": w(ks[15], (1, D)),
        "w1": w(ks[16], (D, F)), "b1": w(ks[17], (1, F)),
        "w2": w(ks[18], (F, D)), "b2": w(ks[19], (1, D)),
    }

    out = encoder_layer(x, attn_bias, params, num_heads=H)
    out = jax.block_until_ready(out)

    ref = encoder_layer_ref(x, attn_bias, params, H)
    assert out.shape == (B, L, D)
    # bf16 matmuls/bias + tanh-GELU + approx reciprocal vs f32/exact reference.
    if not bool(jnp.allclose(out, ref, atol=2e-2, rtol=2e-2)):
        raise AssertionError(
            f"mismatch vs reference, max abs diff = {float(jnp.max(jnp.abs(out - ref)))}")
    print("KERNEL_OK")
</pallas_src>

<mosaic_0001>
module attributes {stable_mosaic.version = 11 : i64} {
  func.func @encoder_layer_kernel(%arg0: i32, %arg1: i32, %arg2: memref<1x8x32xf32, #tpu.memory_space<vmem>>, %arg3: memref<1x4x8x8xbf16, #tpu.memory_space<vmem>>, %arg4: memref<1x32xf32, #tpu.memory_space<vmem>>, %arg5: memref<1x32xf32, #tpu.memory_space<vmem>>, %arg6: memref<32x96xbf16, #tpu.memory_space<vmem>>, %arg7: memref<1x96xf32, #tpu.memory_space<vmem>>, %arg8: memref<32x32xbf16, #tpu.memory_space<vmem>>, %arg9: memref<1x32xf32, #tpu.memory_space<vmem>>, %arg10: memref<1x32xf32, #tpu.memory_space<vmem>>, %arg11: memref<1x32xf32, #tpu.memory_space<vmem>>, %arg12: memref<32x64xbf16, #tpu.memory_space<vmem>>, %arg13: memref<1x64xf32, #tpu.memory_space<vmem>>, %arg14: memref<64x32xbf16, #tpu.memory_space<vmem>>, %arg15: memref<1x32xf32, #tpu.memory_space<vmem>>, %arg16: memref<1x8x32xf32, #tpu.memory_space<vmem>>, %arg17: memref<3x8x32xbf16, #tpu.memory_space<vmem>>) attributes {dimension_semantics = [#tpu.dimension_semantics<parallel>, #tpu.dimension_semantics<arbitrary>], iteration_bounds = array<i64: 2, 1>, scalar_prefetch = 0 : i64, scratch_operands = 1 : i64, tpu.core_type = #tpu.core_type<tc>, window_params = [{transform_indices = @transform_0, window_bounds = array<i64: 1, 8, 32>}, {transform_indices = @transform_1, window_bounds = array<i64: 1, 4, 8, 8>}, {pipeline_mode = #tpu.pipeline_mode<synchronous>, transform_indices = @transform_2, window_bounds = array<i64: 1, 32>}, {pipeline_mode = #tpu.pipeline_mode<synchronous>, transform_indices = @transform_3, window_bounds = array<i64: 1, 32>}, {pipeline_mode = #tpu.pipeline_mode<synchronous>, transform_indices = @transform_4, window_bounds = array<i64: 32, 96>}, {pipeline_mode = #tpu.pipeline_mode<synchronous>, transform_indices = @transform_5, window_bounds = array<i64: 1, 96>}, {pipeline_mode = #tpu.pipeline_mode<synchronous>, transform_indices = @transform_6, window_bounds = array<i64: 32, 32>}, {pipeline_mode = #tpu.pipeline_mode<synchronous>, transform_indices = @transform_7, window_bounds = array<i64: 1, 32>}, {pipeline_mode = #tpu.pipeline_mode<synchronous>, transform_indices = @transform_8, window_bounds = array<i64: 1, 32>}, {pipeline_mode = #tpu.pipeline_mode<synchronous>, transform_indices = @transform_9, window_bounds = array<i64: 1, 32>}, {pipeline_mode = #tpu.pipeline_mode<synchronous>, transform_indices = @transform_10, window_bounds = array<i64: 32, 64>}, {pipeline_mode = #tpu.pipeline_mode<synchronous>, transform_indices = @transform_11, window_bounds = array<i64: 1, 64>}, {pipeline_mode = #tpu.pipeline_mode<synchronous>, transform_indices = @transform_12, window_bounds = array<i64: 64, 32>}, {pipeline_mode = #tpu.pipeline_mode<synchronous>, transform_indices = @transform_13, window_bounds = array<i64: 1, 32>}, {transform_indices = @transform_14, window_bounds = array<i64: 1, 8, 32>}]} {
    %c8_i32 = arith.constant 8 : i32
    %0 = arith.muli %arg1, %c8_i32 : i32
    %1 = tpu.assume_multiple %0, 8 : i32
    %c0_i32 = arith.constant 0 : i32
    %2 = arith.cmpi eq, %arg1, %c0_i32 : i32
    %3 = arith.extui %2 : i1 to i32
    %c0_i32_0 = arith.constant 0 : i32
    %4 = arith.cmpi ne, %3, %c0_i32_0 : i32
    scf.if %4 {
      %c0_69 = arith.constant 0 : index
      %c0_70 = arith.constant 0 : index
      %c0_71 = arith.constant 0 : index
      %154 = vector.load %arg2[%c0_69, %c0_70, %c0_71] : memref<1x8x32xf32, #tpu.memory_space<vmem>>, vector<1x8x32xf32>
      %155 = vector.shape_cast %154 : vector<1x8x32xf32> to vector<8x32xf32>
      %c0_72 = arith.constant 0 : index
      %c0_73 = arith.constant 0 : index
      %156 = vector.load %arg4[%c0_72, %c0_73] : memref<1x32xf32, #tpu.memory_space<vmem>>, vector<1x32xf32>
      %c0_74 = arith.constant 0 : index
      %c0_75 = arith.constant 0 : index
      %157 = vector.load %arg5[%c0_74, %c0_75] : memref<1x32xf32, #tpu.memory_space<vmem>>, vector<1x32xf32>
      %cst_76 = arith.constant dense<0.000000e+00> : vector<8xf32>
      %158 = vector.multi_reduction <add>, %155, %cst_76 [1] : vector<8x32xf32> to vector<8xf32>
      %159 = vector.shape_cast %158 : vector<8xf32> to vector<8x1xf32>
      %cst_77 = arith.constant 3.200000e+01 : f32
      %160 = vector.broadcast %cst_77 : f32 to vector<8x1xf32>
      %161 = arith.divf %159, %160 : vector<8x1xf32>
      %162 = vector.broadcast %161 : vector<8x1xf32> to vector<8x32xf32>
      %163 = arith.subf %155, %162 : vector<8x32xf32>
      %164 = arith.mulf %163, %163 : vector<8x32xf32>
      %cst_78 = arith.constant dense<0.000000e+00> : vector<8xf32>
      %165 = vector.multi_reduction <add>, %164, %cst_78 [1] : vector<8x32xf32> to vector<8xf32>
      %166 = vector.shape_cast %165 : vector<8xf32> to vector<8x1xf32>
      %cst_79 = arith.constant 3.200000e+01 : f32
      %167 = vector.broadcast %cst_79 : f32 to vector<8x1xf32>
      %168 = arith.divf %166, %167 : vector<8x1xf32>
      %cst_80 = arith.constant 9.99999974E-6 : f32
      %169 = vector.broadcast %cst_80 : f32 to vector<8x1xf32>
      %170 = arith.addf %168, %169 : vector<8x1xf32>
      %171 = math.rsqrt %170 : vector<8x1xf32>
      %172 = vector.broadcast %171 : vector<8x1xf32> to vector<8x32xf32>
      %173 = arith.mulf %163, %172 : vector<8x32xf32>
      %174 = vector.broadcast %156 : vector<1x32xf32> to vector<8x32xf32>
      %175 = arith.mulf %173, %174 : vector<8x32xf32>
      %176 = vector.broadcast %157 : vector<1x32xf32> to vector<8x32xf32>
      %177 = arith.addf %175, %176 : vector<8x32xf32>
      %178 = arith.truncf %177 : vector<8x32xf32> to vector<8x32xbf16>
      %c0_81 = arith.constant 0 : index
      %c0_82 = arith.constant 0 : index
      %179 = vector.load %arg6[%c0_81, %c0_82] : memref<32x96xbf16, #tpu.memory_space<vmem>>, vector<32x96xbf16>
      %cst_83 = arith.constant dense<0.000000e+00> : vector<8x96xf32>
      %180 = tpu.matmul %178, %179, %cst_83 {dimension_numbers = #tpu.dot_dimension_numbers<[1], [0], [0], [1], [0, 0, 1, 1], [], []>} : vector<8x32xbf16>, vector<32x96xbf16>, vector<8x96xf32> -> vector<8x96xf32>
      %c0_84 = arith.constant 0 : index
      %c0_85 = arith.constant 0 : index
      %181 = vector.load %arg7[%c0_84, %c0_85] : memref<1x96xf32, #tpu.memory_space<vmem>>, vector<1x96xf32>
      %182 = vector.broadcast %181 : vector<1x96xf32> to vector<8x96xf32>
      %183 = arith.addf %180, %182 : vector<8x96xf32>
      %184 = vector.extract_strided_slice %183 {offsets = [0, 0], sizes = [8, 32], strides = [1, 1]} : vector<8x96xf32> to vector<8x32xf32>
      %185 = arith.truncf %184 : vector<8x32xf32> to vector<8x32xbf16>
      %c0_86 = arith.constant 0 : index
      %c0_87 = arith.constant 0 : index
      %c0_88 = arith.constant 0 : index
      %186 = vector.load %arg17[%c0_86, %c0_87, %c0_88] : memref<3x8x32xbf16, #tpu.memory_space<vmem>>, vector<1x8x32xbf16>
      %187 = vector.shape_cast %186 : vector<1x8x32xbf16> to vector<8x32xbf16>
      %188 = vector.shape_cast %185 : vector<8x32xbf16> to vector<1x8x32xbf16>
      tpu.vector_store %arg17[%c0_86, %c0_87, %c0_88], %188 {strides = array<i32>} : memref<3x8x32xbf16, #tpu.memory_space<vmem>>, vector<1x8x32xbf16>,
      %189 = vector.extract_strided_slice %183 {offsets = [0, 32], sizes = [8, 32], strides = [1, 1]} : vector<8x96xf32> to vector<8x32xf32>
      %190 = arith.truncf %189 : vector<8x32xf32> to vector<8x32xbf16>
      %c1_89 = arith.constant 1 : index
      %c0_90 = arith.constant 0 : index
      %c0_91 = arith.constant 0 : index
      %191 = vector.load %arg17[%c1_89, %c0_90, %c0_91] : memref<3x8x32xbf16, #tpu.memory_space<vmem>>, vector<1x8x32xbf16>
      %192 = vector.shape_cast %191 : vector<1x8x32xbf16> to vector<8x32xbf16>
      %193 = vector.shape_cast %190 : vector<8x32xbf16> to vector<1x8x32xbf16>
      tpu.vector_store %arg17[%c1_89, %c0_90, %c0_91], %193 {strides = array<i32>} : memref<3x8x32xbf16, #tpu.memory_space<vmem>>, vector<1x8x32xbf16>,
      %194 = vector.extract_strided_slice %183 {offsets = [0, 64], sizes = [8, 32], strides = [1, 1]} : vector<8x96xf32> to vector<8x32xf32>
      %195 = arith.truncf %194 : vector<8x32xf32> to vector<8x32xbf16>
      %c2_92 = arith.constant 2 : index
      %c0_93 = arith.constant 0 : index
      %c0_94 = arith.constant 0 : index
      %196 = vector.load %arg17[%c2_92, %c0_93, %c0_94] : memref<3x8x32xbf16, #tpu.memory_space<vmem>>, vector<1x8x32xbf16>
      %197 = vector.shape_cast %196 : vector<1x8x32xbf16> to vector<8x32xbf16>
      %198 = vector.shape_cast %195 : vector<8x32xbf16> to vector<1x8x32xbf16>
      tpu.vector_store %arg17[%c2_92, %c0_93, %c0_94], %198 {strides = array<i32>} : memref<3x8x32xbf16, #tpu.memory_space<vmem>>, vector<1x8x32xbf16>,
    } else {
    }
    %c0 = arith.constant 0 : index
    %5 = arith.index_cast %1 : i32 to index
    %c0_1 = arith.constant 0 : index
    %6 = vector.load %arg17[%c0, %5, %c0_1] : memref<3x8x32xbf16, #tpu.memory_space<vmem>>, vector<1x8x32xbf16>
    %7 = vector.shape_cast %6 : vector<1x8x32xbf16> to vector<8x32xbf16>
    %c1 = arith.constant 1 : index
    %c0_2 = arith.constant 0 : index
    %c0_3 = arith.constant 0 : index
    %8 = vector.load %arg17[%c1, %c0_2, %c0_3] : memref<3x8x32xbf16, #tpu.memory_space<vmem>>, vector<1x8x32xbf16>
    %9 = vector.shape_cast %8 : vector<1x8x32xbf16> to vector<8x32xbf16>
    %c2 = arith.constant 2 : index
    %c0_4 = arith.constant 0 : index
    %c0_5 = arith.constant 0 : index
    %10 = vector.load %arg17[%c2, %c0_4, %c0_5] : memref<3x8x32xbf16, #tpu.memory_space<vmem>>, vector<1x8x32xbf16>
    %11 = vector.shape_cast %10 : vector<1x8x32xbf16> to vector<8x32xbf16>
    %12 = vector.extract_strided_slice %7 {offsets = [0, 0], sizes = [8, 8], strides = [1, 1]} : vector<8x32xbf16> to vector<8x8xbf16>
    %13 = vector.extract_strided_slice %9 {offsets = [0, 0], sizes = [8, 8], strides = [1, 1]} : vector<8x32xbf16> to vector<8x8xbf16>
    %cst = arith.constant dense<0.000000e+00> : vector<8x8xf32>
    %14 = tpu.matmul %12, %13, %cst {dimension_numbers = #tpu.dot_dimension_numbers<[1], [1], [0], [0], [0, 0, 1, 0], [], []>} : vector<8x8xbf16>, vector<8x8xbf16>, vector<8x8xf32> -> vector<8x8xf32>
    %c0_6 = arith.constant 0 : index
    %c0_7 = arith.constant 0 : index
    %c0_8 = arith.constant 0 : index
    %c0_9 = arith.constant 0 : index
    %15 = vector.load %arg3[%c0_6, %c0_7, %c0_8, %c0_9] : memref<1x4x8x8xbf16, #tpu.memory_space<vmem>>, vector<1x1x8x8xbf16>
    %16 = vector.shape_cast %15 : vector<1x1x8x8xbf16> to vector<8x8xbf16>
    %17 = arith.extf %16 : vector<8x8xbf16> to vector<8x8xf32>
    %18 = arith.addf %14, %17 : vector<8x8xf32>
    %cst_10 = arith.constant dense<0xFF800000> : vector<8xf32>
    %19 = vector.multi_reduction <maximumf>, %18, %cst_10 [1] : vector<8x8xf32> to vector<8xf32>
    %20 = vector.shape_cast %19 : vector<8xf32> to vector<8x1xf32>
    %21 = vector.broadcast %20 : vector<8x1xf32> to vector<8x8xf32>
    %22 = arith.subf %18, %21 : vector<8x8xf32>
    %23 = math.exp %22 : vector<8x8xf32>
    %cst_11 = arith.constant dense<0.000000e+00> : vector<8xf32>
    %24 = vector.multi_reduction <add>, %23, %cst_11 [1] : vector<8x8xf32> to vector<8xf32>
    %25 = vector.shape_cast %24 : vector<8xf32> to vector<8x1xf32>
    %26 = arith.truncf %23 : vector<8x8xf32> to vector<8x8xbf16>
    %27 = vector.extract_strided_slice %11 {offsets = [0, 0], sizes = [8, 8], strides = [1, 1]} : vector<8x32xbf16> to vector<8x8xbf16>
    %cst_12 = arith.constant dense<0.000000e+00> : vector<8x8xf32>
    %28 = tpu.matmul %26, %27, %cst_12 {dimension_numbers = #tpu.dot_dimension_numbers<[1], [0], [0], [1], [0, 0, 1, 1], [], []>} : vector<8x8xbf16>, vector<8x8xbf16>, vector<8x8xf32> -> vector<8x8xf32>
    %29 = tpu.reciprocal %25 {approx = true} : vector<8x1xf32> -> vector<8x1xf32>
    %30 = vector.broadcast %29 : vector<8x1xf32> to vector<8x8xf32>
    %31 = arith.mulf %28, %30 : vector<8x8xf32>
    %32 = vector.extract_strided_slice %7 {offsets = [0, 8], sizes = [8, 8], strides = [1, 1]} : vector<8x32xbf16> to vector<8x8xbf16>
    %33 = vector.extract_strided_slice %9 {offsets = [0, 8], sizes = [8, 8], strides = [1, 1]} : vector<8x32xbf16> to vector<8x8xbf16>
    %cst_13 = arith.constant dense<0.000000e+00> : vector<8x8xf32>
    %34 = tpu.matmul %32, %33, %cst_13 {dimension_numbers = #tpu.dot_dimension_numbers<[1], [1], [0], [0], [0, 0, 1, 0], [], []>} : vector<8x8xbf16>, vector<8x8xbf16>, vector<8x8xf32> -> vector<8x8xf32>
    %c0_14 = arith.constant 0 : index
    %c1_15 = arith.constant 1 : index
    %c0_16 = arith.constant 0 : index
    %c0_17 = arith.constant 0 : index
    %35 = vector.load %arg3[%c0_14, %c1_15, %c0_16, %c0_17] : memref<1x4x8x8xbf16, #tpu.memory_space<vmem>>, vector<1x1x8x8xbf16>
    %36 = vector.shape_cast %35 : vector<1x1x8x8xbf16> to vector<8x8xbf16>
    %37 = arith.extf %36 : vector<8x8xbf16> to vector<8x8xf32>
    %38 = arith.addf %34, %37 : vector<8x8xf32>
    %cst_18 = arith.constant dense<0xFF800000> : vector<8xf32>
    %39 = vector.multi_reduction <maximumf>, %38, %cst_18 [1] : vector<8x8xf32> to vector<8xf32>
    %40 = vector.shape_cast %39 : vector<8xf32> to vector<8x1xf32>
    %41 = vector.broadcast %40 : vector<8x1xf32> to vector<8x8xf32>
    %42 = arith.subf %38, %41 : vector<8x8xf32>
    %43 = math.exp %42 : vector<8x8xf32>
    %cst_19 = arith.constant dense<0.000000e+00> : vector<8xf32>
    %44 = vector.multi_reduction <add>, %43, %cst_19 [1] : vector<8x8xf32> to vector<8xf32>
    %45 = vector.shape_cast %44 : vector<8xf32> to vector<8x1xf32>
    %46 = arith.truncf %43 : vector<8x8xf32> to vector<8x8xbf16>
    %47 = vector.extract_strided_slice %11 {offsets = [0, 8], sizes = [8, 8], strides = [1, 1]} : vector<8x32xbf16> to vector<8x8xbf16>
    %cst_20 = arith.constant dense<0.000000e+00> : vector<8x8xf32>
    %48 = tpu.matmul %46, %47, %cst_20 {dimension_numbers = #tpu.dot_dimension_numbers<[1], [0], [0], [1], [0, 0, 1, 1], [], []>} : vector<8x8xbf16>, vector<8x8xbf16>, vector<8x8xf32> -> vector<8x8xf32>
    %49 = tpu.reciprocal %45 {approx = true} : vector<8x1xf32> -> vector<8x1xf32>
    %50 = vector.broadcast %49 : vector<8x1xf32> to vector<8x8xf32>
    %51 = arith.mulf %48, %50 : vector<8x8xf32>
    %52 = vector.extract_strided_slice %7 {offsets = [0, 16], sizes = [8, 8], strides = [1, 1]} : vector<8x32xbf16> to vector<8x8xbf16>
    %53 = vector.extract_strided_slice %9 {offsets = [0, 16], sizes = [8, 8], strides = [1, 1]} : vector<8x32xbf16> to vector<8x8xbf16>
    %cst_21 = arith.constant dense<0.000000e+00> : vector<8x8xf32>
    %54 = tpu.matmul %52, %53, %cst_21 {dimension_numbers = #tpu.dot_dimension_numbers<[1], [1], [0], [0], [0, 0, 1, 0], [], []>} : vector<8x8xbf16>, vector<8x8xbf16>, vector<8x8xf32> -> vector<8x8xf32>
    %c0_22 = arith.constant 0 : index
    %c2_23 = arith.constant 2 : index
    %c0_24 = arith.constant 0 : index
    %c0_25 = arith.constant 0 : index
    %55 = vector.load %arg3[%c0_22, %c2_23, %c0_24, %c0_25] : memref<1x4x8x8xbf16, #tpu.memory_space<vmem>>, vector<1x1x8x8xbf16>
    %56 = vector.shape_cast %55 : vector<1x1x8x8xbf16> to vector<8x8xbf16>
    %57 = arith.extf %56 : vector<8x8xbf16> to vector<8x8xf32>
    %58 = arith.addf %54, %57 : vector<8x8xf32>
    %cst_26 = arith.constant dense<0xFF800000> : vector<8xf32>
    %59 = vector.multi_reduction <maximumf>, %58, %cst_26 [1] : vector<8x8xf32> to vector<8xf32>
    %60 = vector.shape_cast %59 : vector<8xf32> to vector<8x1xf32>
    %61 = vector.broadcast %60 : vector<8x1xf32> to vector<8x8xf32>
    %62 = arith.subf %58, %61 : vector<8x8xf32>
    %63 = math.exp %62 : vector<8x8xf32>
    %cst_27 = arith.constant dense<0.000000e+00> : vector<8xf32>
    %64 = vector.multi_reduction <add>, %63, %cst_27 [1] : vector<8x8xf32> to vector<8xf32>
    %65 = vector.shape_cast %64 : vector<8xf32> to vector<8x1xf32>
    %66 = arith.truncf %63 : vector<8x8xf32> to vector<8x8xbf16>
    %67 = vector.extract_strided_slice %11 {offsets = [0, 16], sizes = [8, 8], strides = [1, 1]} : vector<8x32xbf16> to vector<8x8xbf16>
    %cst_28 = arith.constant dense<0.000000e+00> : vector<8x8xf32>
    %68 = tpu.matmul %66, %67, %cst_28 {dimension_numbers = #tpu.dot_dimension_numbers<[1], [0], [0], [1], [0, 0, 1, 1], [], []>} : vector<8x8xbf16>, vector<8x8xbf16>, vector<8x8xf32> -> vector<8x8xf32>
    %69 = tpu.reciprocal %65 {approx = true} : vector<8x1xf32> -> vector<8x1xf32>
    %70 = vector.broadcast %69 : vector<8x1xf32> to vector<8x8xf32>
    %71 = arith.mulf %68, %70 : vector<8x8xf32>
    %72 = vector.extract_strided_slice %7 {offsets = [0, 24], sizes = [8, 8], strides = [1, 1]} : vector<8x32xbf16> to vector<8x8xbf16>
    %73 = vector.extract_strided_slice %9 {offsets = [0, 24], sizes = [8, 8], strides = [1, 1]} : vector<8x32xbf16> to vector<8x8xbf16>
    %cst_29 = arith.constant dense<0.000000e+00> : vector<8x8xf32>
    %74 = tpu.matmul %72, %73, %cst_29 {dimension_numbers = #tpu.dot_dimension_numbers<[1], [1], [0], [0], [0, 0, 1, 0], [], []>} : vector<8x8xbf16>, vector<8x8xbf16>, vector<8x8xf32> -> vector<8x8xf32>
    %c0_30 = arith.constant 0 : index
    %c3 = arith.constant 3 : index
    %c0_31 = arith.constant 0 : index
    %c0_32 = arith.constant 0 : index
    %75 = vector.load %arg3[%c0_30, %c3, %c0_31, %c0_32] : memref<1x4x8x8xbf16, #tpu.memory_space<vmem>>, vector<1x1x8x8xbf16>
    %76 = vector.shape_cast %75 : vector<1x1x8x8xbf16> to vector<8x8xbf16>
    %77 = arith.extf %76 : vector<8x8xbf16> to vector<8x8xf32>
    %78 = arith.addf %74, %77 : vector<8x8xf32>
    %cst_33 = arith.constant dense<0xFF800000> : vector<8xf32>
    %79 = vector.multi_reduction <maximumf>, %78, %cst_33 [1] : vector<8x8xf32> to vector<8xf32>
    %80 = vector.shape_cast %79 : vector<8xf32> to vector<8x1xf32>
    %81 = vector.broadcast %80 : vector<8x1xf32> to vector<8x8xf32>
    %82 = arith.subf %78, %81 : vector<8x8xf32>
    %83 = math.exp %82 : vector<8x8xf32>
    %cst_34 = arith.constant dense<0.000000e+00> : vector<8xf32>
    %84 = vector.multi_reduction <add>, %83, %cst_34 [1] : vector<8x8xf32> to vector<8xf32>
    %85 = vector.shape_cast %84 : vector<8xf32> to vector<8x1xf32>
    %86 = arith.truncf %83 : vector<8x8xf32> to vector<8x8xbf16>
    %87 = vector.extract_strided_slice %11 {offsets = [0, 24], sizes = [8, 8], strides = [1, 1]} : vector<8x32xbf16> to vector<8x8xbf16>
    %cst_35 = arith.constant dense<0.000000e+00> : vector<8x8xf32>
    %88 = tpu.matmul %86, %87, %cst_35 {dimension_numbers = #tpu.dot_dimension_numbers<[1], [0], [0], [1], [0, 0, 1, 1], [], []>} : vector<8x8xbf16>, vector<8x8xbf16>, vector<8x8xf32> -> vector<8x8xf32>
    %89 = tpu.reciprocal %85 {approx = true} : vector<8x1xf32> -> vector<8x1xf32>
    %90 = vector.broadcast %89 : vector<8x1xf32> to vector<8x8xf32>
    %91 = arith.mulf %88, %90 : vector<8x8xf32>
    %92 = tpu.concatenate %31, %51, %71, %91 in 1 : vector<8x8xf32>, vector<8x8xf32>, vector<8x8xf32>, vector<8x8xf32> -> vector<8x32xf32>
    %93 = arith.truncf %92 : vector<8x32xf32> to vector<8x32xbf16>
    %c0_36 = arith.constant 0 : index
    %c0_37 = arith.constant 0 : index
    %94 = vector.load %arg8[%c0_36, %c0_37] : memref<32x32xbf16, #tpu.memory_space<vmem>>, vector<32x32xbf16>
    %cst_38 = arith.constant dense<0.000000e+00> : vector<8x32xf32>
    %95 = tpu.matmul %93, %94, %cst_38 {dimension_numbers = #tpu.dot_dimension_numbers<[1], [0], [0], [1], [0, 0, 1, 1], [], []>} : vector<8x32xbf16>, vector<32x32xbf16>, vector<8x32xf32> -> vector<8x32xf32>
    %c0_39 = arith.constant 0 : index
    %c0_40 = arith.constant 0 : index
    %96 = vector.load %arg9[%c0_39, %c0_40] : memref<1x32xf32, #tpu.memory_space<vmem>>, vector<1x32xf32>
    %97 = vector.broadcast %96 : vector<1x32xf32> to vector<8x32xf32>
    %98 = arith.addf %95, %97 : vector<8x32xf32>
    %c0_41 = arith.constant 0 : index
    %99 = arith.index_cast %1 : i32 to index
    %c0_42 = arith.constant 0 : index
    %100 = vector.load %arg2[%c0_41, %99, %c0_42] : memref<1x8x32xf32, #tpu.memory_space<vmem>>, vector<1x8x32xf32>
    %101 = vector.shape_cast %100 : vector<1x8x32xf32> to vector<8x32xf32>
    %102 = arith.addf %101, %98 : vector<8x32xf32>
    %c0_43 = arith.constant 0 : index
    %c0_44 = arith.constant 0 : index
    %103 = vector.load %arg10[%c0_43, %c0_44] : memref<1x32xf32, #tpu.memory_space<vmem>>, vector<1x32xf32>
    %c0_45 = arith.constant 0 : index
    %c0_46 = arith.constant 0 : index
    %104 = vector.load %arg11[%c0_45, %c0_46] : memref<1x32xf32, #tpu.memory_space<vmem>>, vector<1x32xf32>
    %cst_47 = arith.constant dense<0.000000e+00> : vector<8xf32>
    %105 = vector.multi_reduction <add>, %102, %cst_47 [1] : vector<8x32xf32> to vector<8xf32>
    %106 = vector.shape_cast %105 : vector<8xf32> to vector<8x1xf32>
    %cst_48 = arith.constant 3.200000e+01 : f32
    %107 = vector.broadcast %cst_48 : f32 to vector<8x1xf32>
    %108 = arith.divf %106, %107 : vector<8x1xf32>
    %109 = vector.broadcast %108 : vector<8x1xf32> to vector<8x32xf32>
    %110 = arith.subf %102, %109 : vector<8x32xf32>
    %111 = arith.mulf %110, %110 : vector<8x32xf32>
    %cst_49 = arith.constant dense<0.000000e+00> : vector<8xf32>
    %112 = vector.multi_reduction <add>, %111, %cst_49 [1] : vector<8x32xf32> to vector<8xf32>
    %113 = vector.shape_cast %112 : vector<8xf32> to vector<8x1xf32>
    %cst_50 = arith.constant 3.200000e+01 : f32
    %114 = vector.broadcast %cst_50 : f32 to vector<8x1xf32>
    %115 = arith.divf %113, %114 : vector<8x1xf32>
    %cst_51 = arith.constant 9.99999974E-6 : f32
    %116 = vector.broadcast %cst_51 : f32 to vector<8x1xf32>
    %117 = arith.addf %115, %116 : vector<8x1xf32>
    %118 = math.rsqrt %117 : vector<8x1xf32>
    %119 = vector.broadcast %118 : vector<8x1xf32> to vector<8x32xf32>
    %120 = arith.mulf %110, %119 : vector<8x32xf32>
    %121 = vector.broadcast %103 : vector<1x32xf32> to vector<8x32xf32>
    %122 = arith.mulf %120, %121 : vector<8x32xf32>
    %123 = vector.broadcast %104 : vector<1x32xf32> to vector<8x32xf32>
    %124 = arith.addf %122, %123 : vector<8x32xf32>
    %125 = arith.truncf %124 : vector<8x32xf32> to vector<8x32xbf16>
    %c0_52 = arith.constant 0 : index
    %c0_53 = arith.constant 0 : index
    %126 = vector.load %arg12[%c0_52, %c0_53] : memref<32x64xbf16, #tpu.memory_space<vmem>>, vector<32x64xbf16>
    %cst_54 = arith.constant dense<0.000000e+00> : vector<8x64xf32>
    %127 = tpu.matmul %125, %126, %cst_54 {dimension_numbers = #tpu.dot_dimension_numbers<[1], [0], [0], [1], [0, 0, 1, 1], [], []>} : vector<8x32xbf16>, vector<32x64xbf16>, vector<8x64xf32> -> vector<8x64xf32>
    %c0_55 = arith.constant 0 : index
    %c0_56 = arith.constant 0 : index
    %128 = vector.load %arg13[%c0_55, %c0_56] : memref<1x64xf32, #tpu.memory_space<vmem>>, vector<1x64xf32>
    %129 = vector.broadcast %128 : vector<1x64xf32> to vector<8x64xf32>
    %130 = arith.addf %127, %129 : vector<8x64xf32>
    %cst_57 = arith.constant 5.000000e-01 : f32
    %131 = vector.broadcast %cst_57 : f32 to vector<8x64xf32>
    %132 = arith.mulf %131, %130 : vector<8x64xf32>
    %cst_58 = arith.constant 4.471500e-02 : f32
    %133 = vector.broadcast %cst_58 : f32 to vector<8x64xf32>
    %134 = arith.mulf %133, %130 : vector<8x64xf32>
    %135 = arith.mulf %134, %130 : vector<8x64xf32>
    %136 = arith.mulf %135, %130 : vector<8x64xf32>
    %137 = arith.addf %130, %136 : vector<8x64xf32>
    %cst_59 = arith.constant 0.797884583 : f32
    %138 = vector.broadcast %cst_59 : f32 to vector<8x64xf32>
    %139 = arith.mulf %138, %137 : vector<8x64xf32>
    %140 = math.tanh %139 : vector<8x64xf32>
    %cst_60 = arith.constant 1.000000e+00 : f32
    %141 = vector.broadcast %cst_60 : f32 to vector<8x64xf32>
    %142 = arith.addf %141, %140 : vector<8x64xf32>
    %143 = arith.mulf %132, %142 : vector<8x64xf32>
    %144 = arith.truncf %143 : vector<8x64xf32> to vector<8x64xbf16>
    %c0_61 = arith.constant 0 : index
    %c0_62 = arith.constant 0 : index
    %145 = vector.load %arg14[%c0_61, %c0_62] : memref<64x32xbf16, #tpu.memory_space<vmem>>, vector<64x32xbf16>
    %cst_63 = arith.constant dense<0.000000e+00> : vector<8x32xf32>
    %146 = tpu.matmul %144, %145, %cst_63 {dimension_numbers = #tpu.dot_dimension_numbers<[1], [0], [0], [1], [0, 0, 1, 1], [], []>} : vector<8x64xbf16>, vector<64x32xbf16>, vector<8x32xf32> -> vector<8x32xf32>
    %c0_64 = arith.constant 0 : index
    %c0_65 = arith.constant 0 : index
    %147 = vector.load %arg15[%c0_64, %c0_65] : memref<1x32xf32, #tpu.memory_space<vmem>>, vector<1x32xf32>
    %148 = vector.broadcast %147 : vector<1x32xf32> to vector<8x32xf32>
    %149 = arith.addf %146, %148 : vector<8x32xf32>
    %150 = arith.addf %102, %149 : vector<8x32xf32>
    %c0_66 = arith.constant 0 : index
    %c0_67 = arith.constant 0 : index
    %c0_68 = arith.constant 0 : index
    %151 = vector.load %arg16[%c0_66, %c0_67, %c0_68] : memref<1x8x32xf32, #tpu.memory_space<vmem>>, vector<1x8x32xf32>
    %152 = vector.shape_cast %151 : vector<1x8x32xf32> to vector<8x32xf32>
    %153 = vector.shape_cast %150 : vector<8x32xf32> to vector<1x8x32xf32>
    tpu.vector_store %arg16[%c0_66, %c0_67, %c0_68], %153 {strides = array<i32>} : memref<1x8x32xf32, #tpu.memory_space<vmem>>, vector<1x8x32xf32>,
    return
  }
  func.func @transform_0(%arg0: i32, %arg1: i32) -> (i32, i32, i32) {
    %c0_i32 = arith.constant 0 : i32
    %c0_i32_0 = arith.constant 0 : i32
    %c0_i32_1 = arith.constant 0 : i32
    return %arg0, %c0_i32, %c0_i32_0 : i32, i32, i32
  }
  func.func @transform_1(%arg0: i32, %arg1: i32) -> (i32, i32, i32, i32) {
    %c0_i32 = arith.constant 0 : i32
    %c0_i32_0 = arith.constant 0 : i32
    %c0_i32_1 = arith.constant 0 : i32
    return %arg0, %c0_i32, %arg1, %c0_i32_0 : i32, i32, i32, i32
  }
  func.func @transform_2(%arg0: i32, %arg1: i32) -> (i32, i32) {
    %c0_i32 = arith.constant 0 : i32
    %c0_i32_0 = arith.constant 0 : i32
    %c0_i32_1 = arith.constant 0 : i32
    return %c0_i32, %c0_i32_0 : i32, i32
  }
  func.func @transform_3(%arg0: i32, %arg1: i32) -> (i32, i32) {
    %c0_i32 = arith.constant 0 : i32
    %c0_i32_0 = arith.constant 0 : i32
    %c0_i32_1 = arith.constant 0 : i32
    return %c0_i32, %c0_i32_0 : i32, i32
  }
  func.func @transform_4(%arg0: i32, %arg1: i32) -> (i32, i32) {
    %c0_i32 = arith.constant 0 : i32
    %c0_i32_0 = arith.constant 0 : i32
    %c0_i32_1 = arith.constant 0 : i32
    return %c0_i32, %c0_i32_0 : i32, i32
  }
  func.func @transform_5(%arg0: i32, %arg1: i32) -> (i32, i32) {
    %c0_i32 = arith.constant 0 : i32
    %c0_i32_0 = arith.constant 0 : i32
    %c0_i32_1 = arith.constant 0 : i32
    return %c0_i32, %c0_i32_0 : i32, i32
  }
  func.func @transform_6(%arg0: i32, %arg1: i32) -> (i32, i32) {
    %c0_i32 = arith.constant 0 : i32
    %c0_i32_0 = arith.constant 0 : i32
    %c0_i32_1 = arith.constant 0 : i32
    return %c0_i32, %c0_i32_0 : i32, i32
  }
  func.func @transform_7(%arg0: i32, %arg1: i32) -> (i32, i32) {
    %c0_i32 = arith.constant 0 : i32
    %c0_i32_0 = arith.constant 0 : i32
    %c0_i32_1 = arith.constant 0 : i32
    return %c0_i32, %c0_i32_0 : i32, i32
  }
  func.func @transform_8(%arg0: i32, %arg1: i32) -> (i32, i32) {
    %c0_i32 = arith.constant 0 : i32
    %c0_i32_0 = arith.constant 0 : i32
    %c0_i32_1 = arith.constant 0 : i32
    return %c0_i32, %c0_i32_0 : i32, i32
  }
  func.func @transform_9(%arg0: i32, %arg1: i32) -> (i32, i32) {
    %c0_i32 = arith.constant 0 : i32
    %c0_i32_0 = arith.constant 0 : i32
    %c0_i32_1 = arith.constant 0 : i32
    return %c0_i32, %c0_i32_0 : i32, i32
  }
  func.func @transform_10(%arg0: i32, %arg1: i32) -> (i32, i32) {
    %c0_i32 = arith.constant 0 : i32
    %c0_i32_0 = arith.constant 0 : i32
    %c0_i32_1 = arith.constant 0 : i32
    return %c0_i32, %c0_i32_0 : i32, i32
  }
  func.func @transform_11(%arg0: i32, %arg1: i32) -> (i32, i32) {
    %c0_i32 = arith.constant 0 : i32
    %c0_i32_0 = arith.constant 0 : i32
    %c0_i32_1 = arith.constant 0 : i32
    return %c0_i32, %c0_i32_0 : i32, i32
  }
  func.func @transform_12(%arg0: i32, %arg1: i32) -> (i32, i32) {
    %c0_i32 = arith.constant 0 : i32
    %c0_i32_0 = arith.constant 0 : i32
    %c0_i32_1 = arith.constant 0 : i32
    return %c0_i32, %c0_i32_0 : i32, i32
  }
  func.func @transform_13(%arg0: i32, %arg1: i32) -> (i32, i32) {
    %c0_i32 = arith.constant 0 : i32
    %c0_i32_0 = arith.constant 0 : i32
    %c0_i32_1 = arith.constant 0 : i32
    return %c0_i32, %c0_i32_0 : i32, i32
  }
  func.func @transform_14(%arg0: i32, %arg1: i32) -> (i32, i32, i32) {
    %c0_i32 = arith.constant 0 : i32
    %c0_i32_0 = arith.constant 0 : i32
    return %arg0, %arg1, %c0_i32 : i32, i32, i32
  }
}

module attributes {stable_mosaic.version = 11 : i64} {
  func.func @encoder_layer_kernel(%arg0: i32, %arg1: i32, %arg2: memref<1x8x32xf32, #tpu.memory_space<vmem>>, %arg3: memref<1x4x8x8xbf16, #tpu.memory_space<vmem>>, %arg4: memref<1x32xf32, #tpu.memory_space<vmem>>, %arg5: memref<1x32xf32, #tpu.memory_space<vmem>>, %arg6: memref<32x96xbf16, #tpu.memory_space<vmem>>, %arg7: memref<1x96xf32, #tpu.memory_space<vmem>>, %arg8: memref<32x32xbf16, #tpu.memory_space<vmem>>, %arg9: memref<1x32xf32, #tpu.memory_space<vmem>>, %arg10: memref<1x32xf32, #tpu.memory_space<vmem>>, %arg11: memref<1x32xf32, #tpu.memory_space<vmem>>, %arg12: memref<32x64xbf16, #tpu.memory_space<vmem>>, %arg13: memref<1x64xf32, #tpu.memory_space<vmem>>, %arg14: memref<64x32xbf16, #tpu.memory_space<vmem>>, %arg15: memref<1x32xf32, #tpu.memory_space<vmem>>, %arg16: memref<1x8x32xf32, #tpu.memory_space<vmem>>, %arg17: memref<3x8x32xbf16, #tpu.memory_space<vmem>>) attributes {dimension_semantics = [#tpu.dimension_semantics<parallel>, #tpu.dimension_semantics<arbitrary>], iteration_bounds = array<i64: 2, 1>, scalar_prefetch = 0 : i64, scratch_operands = 1 : i64, tpu.core_type = #tpu.core_type<tc>, window_params = [{transform_indices = @transform_0, window_bounds = array<i64: 1, 8, 32>}, {transform_indices = @transform_1, window_bounds = array<i64: 1, 4, 8, 8>}, {pipeline_mode = #tpu.pipeline_mode<synchronous>, transform_indices = @transform_2, window_bounds = array<i64: 1, 32>}, {pipeline_mode = #tpu.pipeline_mode<synchronous>, transform_indices = @transform_3, window_bounds = array<i64: 1, 32>}, {pipeline_mode = #tpu.pipeline_mode<synchronous>, transform_indices = @transform_4, window_bounds = array<i64: 32, 96>}, {pipeline_mode = #tpu.pipeline_mode<synchronous>, transform_indices = @transform_5, window_bounds = array<i64: 1, 96>}, {pipeline_mode = #tpu.pipeline_mode<synchronous>, transform_indices = @transform_6, window_bounds = array<i64: 32, 32>}, {pipeline_mode = #tpu.pipeline_mode<synchronous>, transform_indices = @transform_7, window_bounds = array<i64: 1, 32>}, {pipeline_mode = #tpu.pipeline_mode<synchronous>, transform_indices = @transform_8, window_bounds = array<i64: 1, 32>}, {pipeline_mode = #tpu.pipeline_mode<synchronous>, transform_indices = @transform_9, window_bounds = array<i64: 1, 32>}, {pipeline_mode = #tpu.pipeline_mode<synchronous>, transform_indices = @transform_10, window_bounds = array<i64: 32, 64>}, {pipeline_mode = #tpu.pipeline_mode<synchronous>, transform_indices = @transform_11, window_bounds = array<i64: 1, 64>}, {pipeline_mode = #tpu.pipeline_mode<synchronous>, transform_indices = @transform_12, window_bounds = array<i64: 64, 32>}, {pipeline_mode = #tpu.pipeline_mode<synchronous>, transform_indices = @transform_13, window_bounds = array<i64: 1, 32>}, {transform_indices = @transform_14, window_bounds = array<i64: 1, 8, 32>}]} {
    %c8_i32 = arith.constant 8 : i32
    %0 = arith.muli %arg1, %c8_i32 : i32
    %1 = tpu.assume_multiple %0, 8 : i32
    %c0_i32 = arith.constant 0 : i32
    %2 = arith.cmpi eq, %arg1, %c0_i32 : i32
    %3 = arith.extui %2 : i1 to i32
    %c0_i32_0 = arith.constant 0 : i32
    %4 = arith.cmpi ne, %3, %c0_i32_0 : i32
    scf.if %4 {
      %c0_69 = arith.constant 0 : index
      %c0_70 = arith.constant 0 : index
      %c0_71 = arith.constant 0 : index
      %154 = vector.load %arg2[%c0_69, %c0_70, %c0_71] : memref<1x8x32xf32, #tpu.memory_space<vmem>>, vector<1x8x32xf32>
      %155 = vector.shape_cast %154 : vector<1x8x32xf32> to vector<8x32xf32>
      %c0_72 = arith.constant 0 : index
      %c0_73 = arith.constant 0 : index
      %156 = vector.load %arg4[%c0_72, %c0_73] : memref<1x32xf32, #tpu.memory_space<vmem>>, vector<1x32xf32>
      %c0_74 = arith.constant 0 : index
      %c0_75 = arith.constant 0 : index
      %157 = vector.load %arg5[%c0_74, %c0_75] : memref<1x32xf32, #tpu.memory_space<vmem>>, vector<1x32xf32>
      %cst_76 = arith.constant dense<0.000000e+00> : vector<8xf32>
      %158 = vector.multi_reduction <add>, %155, %cst_76 [1] : vector<8x32xf32> to vector<8xf32>
      %159 = vector.shape_cast %158 : vector<8xf32> to vector<8x1xf32>
      %cst_77 = arith.constant 3.200000e+01 : f32
      %160 = vector.broadcast %cst_77 : f32 to vector<8x1xf32>
      %161 = arith.divf %159, %160 : vector<8x1xf32>
      %162 = vector.broadcast %161 : vector<8x1xf32> to vector<8x32xf32>
      %163 = arith.subf %155, %162 : vector<8x32xf32>
      %164 = arith.mulf %163, %163 : vector<8x32xf32>
      %cst_78 = arith.constant dense<0.000000e+00> : vector<8xf32>
      %165 = vector.multi_reduction <add>, %164, %cst_78 [1] : vector<8x32xf32> to vector<8xf32>
      %166 = vector.shape_cast %165 : vector<8xf32> to vector<8x1xf32>
      %cst_79 = arith.constant 3.200000e+01 : f32
      %167 = vector.broadcast %cst_79 : f32 to vector<8x1xf32>
      %168 = arith.divf %166, %167 : vector<8x1xf32>
      %cst_80 = arith.constant 9.99999974E-6 : f32
      %169 = vector.broadcast %cst_80 : f32 to vector<8x1xf32>
      %170 = arith.addf %168, %169 : vector<8x1xf32>
      %171 = math.rsqrt %170 : vector<8x1xf32>
      %172 = vector.broadcast %171 : vector<8x1xf32> to vector<8x32xf32>
      %173 = arith.mulf %163, %172 : vector<8x32xf32>
      %174 = vector.broadcast %156 : vector<1x32xf32> to vector<8x32xf32>
      %175 = arith.mulf %173, %174 : vector<8x32xf32>
      %176 = vector.broadcast %157 : vector<1x32xf32> to vector<8x32xf32>
      %177 = arith.addf %175, %176 : vector<8x32xf32>
      %178 = arith.truncf %177 : vector<8x32xf32> to vector<8x32xbf16>
      %c0_81 = arith.constant 0 : index
      %c0_82 = arith.constant 0 : index
      %179 = vector.load %arg6[%c0_81, %c0_82] : memref<32x96xbf16, #tpu.memory_space<vmem>>, vector<32x96xbf16>
      %cst_83 = arith.constant dense<0.000000e+00> : vector<8x96xf32>
      %180 = tpu.matmul %178, %179, %cst_83 {dimension_numbers = #tpu.dot_dimension_numbers<[1], [0], [0], [1], [0, 0, 1, 1], [], []>} : vector<8x32xbf16>, vector<32x96xbf16>, vector<8x96xf32> -> vector<8x96xf32>
      %c0_84 = arith.constant 0 : index
      %c0_85 = arith.constant 0 : index
      %181 = vector.load %arg7[%c0_84, %c0_85] : memref<1x96xf32, #tpu.memory_space<vmem>>, vector<1x96xf32>
      %182 = vector.broadcast %181 : vector<1x96xf32> to vector<8x96xf32>
      %183 = arith.addf %180, %182 : vector<8x96xf32>
      %184 = vector.extract_strided_slice %183 {offsets = [0, 0], sizes = [8, 32], strides = [1, 1]} : vector<8x96xf32> to vector<8x32xf32>
      %185 = arith.truncf %184 : vector<8x32xf32> to vector<8x32xbf16>
      %c0_86 = arith.constant 0 : index
      %c0_87 = arith.constant 0 : index
      %c0_88 = arith.constant 0 : index
      %186 = vector.load %arg17[%c0_86, %c0_87, %c0_88] : memref<3x8x32xbf16, #tpu.memory_space<vmem>>, vector<1x8x32xbf16>
      %187 = vector.shape_cast %186 : vector<1x8x32xbf16> to vector<8x32xbf16>
      %188 = vector.shape_cast %185 : vector<8x32xbf16> to vector<1x8x32xbf16>
      tpu.vector_store %arg17[%c0_86, %c0_87, %c0_88], %188 {strides = array<i32>} : memref<3x8x32xbf16, #tpu.memory_space<vmem>>, vector<1x8x32xbf16>,
      %189 = vector.extract_strided_slice %183 {offsets = [0, 32], sizes = [8, 32], strides = [1, 1]} : vector<8x96xf32> to vector<8x32xf32>
      %190 = arith.truncf %189 : vector<8x32xf32> to vector<8x32xbf16>
      %c1_89 = arith.constant 1 : index
      %c0_90 = arith.constant 0 : index
      %c0_91 = arith.constant 0 : index
      %191 = vector.load %arg17[%c1_89, %c0_90, %c0_91] : memref<3x8x32xbf16, #tpu.memory_space<vmem>>, vector<1x8x32xbf16>
      %192 = vector.shape_cast %191 : vector<1x8x32xbf16> to vector<8x32xbf16>
      %193 = vector.shape_cast %190 : vector<8x32xbf16> to vector<1x8x32xbf16>
      tpu.vector_store %arg17[%c1_89, %c0_90, %c0_91], %193 {strides = array<i32>} : memref<3x8x32xbf16, #tpu.memory_space<vmem>>, vector<1x8x32xbf16>,
      %194 = vector.extract_strided_slice %183 {offsets = [0, 64], sizes = [8, 32], strides = [1, 1]} : vector<8x96xf32> to vector<8x32xf32>
      %195 = arith.truncf %194 : vector<8x32xf32> to vector<8x32xbf16>
      %c2_92 = arith.constant 2 : index
      %c0_93 = arith.constant 0 : index
      %c0_94 = arith.constant 0 : index
      %196 = vector.load %arg17[%c2_92, %c0_93, %c0_94] : memref<3x8x32xbf16, #tpu.memory_space<vmem>>, vector<1x8x32xbf16>
      %197 = vector.shape_cast %196 : vector<1x8x32xbf16> to vector<8x32xbf16>
      %198 = vector.shape_cast %195 : vector<8x32xbf16> to vector<1x8x32xbf16>
      tpu.vector_store %arg17[%c2_92, %c0_93, %c0_94], %198 {strides = array<i32>} : memref<3x8x32xbf16, #tpu.memory_space<vmem>>, vector<1x8x32xbf16>,
    } else {
    }
    %c0 = arith.constant 0 : index
    %5 = arith.index_cast %1 : i32 to index
    %c0_1 = arith.constant 0 : index
    %6 = vector.load %arg17[%c0, %5, %c0_1] : memref<3x8x32xbf16, #tpu.memory_space<vmem>>, vector<1x8x32xbf16>
    %7 = vector.shape_cast %6 : vector<1x8x32xbf16> to vector<8x32xbf16>
    %c1 = arith.constant 1 : index
    %c0_2 = arith.constant 0 : index
    %c0_3 = arith.constant 0 : index
    %8 = vector.load %arg17[%c1, %c0_2, %c0_3] : memref<3x8x32xbf16, #tpu.memory_space<vmem>>, vector<1x8x32xbf16>
    %9 = vector.shape_cast %8 : vector<1x8x32xbf16> to vector<8x32xbf16>
    %c2 = arith.constant 2 : index
    %c0_4 = arith.constant 0 : index
    %c0_5 = arith.constant 0 : index
    %10 = vector.load %arg17[%c2, %c0_4, %c0_5] : memref<3x8x32xbf16, #tpu.memory_space<vmem>>, vector<1x8x32xbf16>
    %11 = vector.shape_cast %10 : vector<1x8x32xbf16> to vector<8x32xbf16>
    %12 = vector.extract_strided_slice %7 {offsets = [0, 0], sizes = [8, 8], strides = [1, 1]} : vector<8x32xbf16> to vector<8x8xbf16>
    %13 = vector.extract_strided_slice %9 {offsets = [0, 0], sizes = [8, 8], strides = [1, 1]} : vector<8x32xbf16> to vector<8x8xbf16>
    %cst = arith.constant dense<0.000000e+00> : vector<8x8xf32>
    %14 = tpu.matmul %12, %13, %cst {dimension_numbers = #tpu.dot_dimension_numbers<[1], [1], [0], [0], [0, 0, 1, 0], [], []>} : vector<8x8xbf16>, vector<8x8xbf16>, vector<8x8xf32> -> vector<8x8xf32>
    %c0_6 = arith.constant 0 : index
    %c0_7 = arith.constant 0 : index
    %c0_8 = arith.constant 0 : index
    %c0_9 = arith.constant 0 : index
    %15 = vector.load %arg3[%c0_6, %c0_7, %c0_8, %c0_9] : memref<1x4x8x8xbf16, #tpu.memory_space<vmem>>, vector<1x1x8x8xbf16>
    %16 = vector.shape_cast %15 : vector<1x1x8x8xbf16> to vector<8x8xbf16>
    %17 = arith.extf %16 : vector<8x8xbf16> to vector<8x8xf32>
    %18 = arith.addf %14, %17 : vector<8x8xf32>
    %cst_10 = arith.constant dense<0xFF800000> : vector<8xf32>
    %19 = vector.multi_reduction <maximumf>, %18, %cst_10 [1] : vector<8x8xf32> to vector<8xf32>
    %20 = vector.shape_cast %19 : vector<8xf32> to vector<8x1xf32>
    %21 = vector.broadcast %20 : vector<8x1xf32> to vector<8x8xf32>
    %22 = arith.subf %18, %21 : vector<8x8xf32>
    %23 = math.exp %22 : vector<8x8xf32>
    %cst_11 = arith.constant dense<0.000000e+00> : vector<8xf32>
    %24 = vector.multi_reduction <add>, %23, %cst_11 [1] : vector<8x8xf32> to vector<8xf32>
    %25 = vector.shape_cast %24 : vector<8xf32> to vector<8x1xf32>
    %26 = arith.truncf %23 : vector<8x8xf32> to vector<8x8xbf16>
    %27 = vector.extract_strided_slice %11 {offsets = [0, 0], sizes = [8, 8], strides = [1, 1]} : vector<8x32xbf16> to vector<8x8xbf16>
    %cst_12 = arith.constant dense<0.000000e+00> : vector<8x8xf32>
    %28 = tpu.matmul %26, %27, %cst_12 {dimension_numbers = #tpu.dot_dimension_numbers<[1], [0], [0], [1], [0, 0, 1, 1], [], []>} : vector<8x8xbf16>, vector<8x8xbf16>, vector<8x8xf32> -> vector<8x8xf32>
    %29 = tpu.reciprocal %25 {approx = true} : vector<8x1xf32> -> vector<8x1xf32>
    %30 = vector.broadcast %29 : vector<8x1xf32> to vector<8x8xf32>
    %31 = arith.mulf %28, %30 : vector<8x8xf32>
    %32 = vector.extract_strided_slice %7 {offsets = [0, 8], sizes = [8, 8], strides = [1, 1]} : vector<8x32xbf16> to vector<8x8xbf16>
    %33 = vector.extract_strided_slice %9 {offsets = [0, 8], sizes = [8, 8], strides = [1, 1]} : vector<8x32xbf16> to vector<8x8xbf16>
    %cst_13 = arith.constant dense<0.000000e+00> : vector<8x8xf32>
    %34 = tpu.matmul %32, %33, %cst_13 {dimension_numbers = #tpu.dot_dimension_numbers<[1], [1], [0], [0], [0, 0, 1, 0], [], []>} : vector<8x8xbf16>, vector<8x8xbf16>, vector<8x8xf32> -> vector<8x8xf32>
    %c0_14 = arith.constant 0 : index
    %c1_15 = arith.constant 1 : index
    %c0_16 = arith.constant 0 : index
    %c0_17 = arith.constant 0 : index
    %35 = vector.load %arg3[%c0_14, %c1_15, %c0_16, %c0_17] : memref<1x4x8x8xbf16, #tpu.memory_space<vmem>>, vector<1x1x8x8xbf16>
    %36 = vector.shape_cast %35 : vector<1x1x8x8xbf16> to vector<8x8xbf16>
    %37 = arith.extf %36 : vector<8x8xbf16> to vector<8x8xf32>
    %38 = arith.addf %34, %37 : vector<8x8xf32>
    %cst_18 = arith.constant dense<0xFF800000> : vector<8xf32>
    %39 = vector.multi_reduction <maximumf>, %38, %cst_18 [1] : vector<8x8xf32> to vector<8xf32>
    %40 = vector.shape_cast %39 : vector<8xf32> to vector<8x1xf32>
    %41 = vector.broadcast %40 : vector<8x1xf32> to vector<8x8xf32>
    %42 = arith.subf %38, %41 : vector<8x8xf32>
    %43 = math.exp %42 : vector<8x8xf32>
    %cst_19 = arith.constant dense<0.000000e+00> : vector<8xf32>
    %44 = vector.multi_reduction <add>, %43, %cst_19 [1] : vector<8x8xf32> to vector<8xf32>
    %45 = vector.shape_cast %44 : vector<8xf32> to vector<8x1xf32>
    %46 = arith.truncf %43 : vector<8x8xf32> to vector<8x8xbf16>
    %47 = vector.extract_strided_slice %11 {offsets = [0, 8], sizes = [8, 8], strides = [1, 1]} : vector<8x32xbf16> to vector<8x8xbf16>
    %cst_20 = arith.constant dense<0.000000e+00> : vector<8x8xf32>
    %48 = tpu.matmul %46, %47, %cst_20 {dimension_numbers = #tpu.dot_dimension_numbers<[1], [0], [0], [1], [0, 0, 1, 1], [], []>} : vector<8x8xbf16>, vector<8x8xbf16>, vector<8x8xf32> -> vector<8x8xf32>
    %49 = tpu.reciprocal %45 {approx = true} : vector<8x1xf32> -> vector<8x1xf32>
    %50 = vector.broadcast %49 : vector<8x1xf32> to vector<8x8xf32>
    %51 = arith.mulf %48, %50 : vector<8x8xf32>
    %52 = vector.extract_strided_slice %7 {offsets = [0, 16], sizes = [8, 8], strides = [1, 1]} : vector<8x32xbf16> to vector<8x8xbf16>
    %53 = vector.extract_strided_slice %9 {offsets = [0, 16], sizes = [8, 8], strides = [1, 1]} : vector<8x32xbf16> to vector<8x8xbf16>
    %cst_21 = arith.constant dense<0.000000e+00> : vector<8x8xf32>
    %54 = tpu.matmul %52, %53, %cst_21 {dimension_numbers = #tpu.dot_dimension_numbers<[1], [1], [0], [0], [0, 0, 1, 0], [], []>} : vector<8x8xbf16>, vector<8x8xbf16>, vector<8x8xf32> -> vector<8x8xf32>
    %c0_22 = arith.constant 0 : index
    %c2_23 = arith.constant 2 : index
    %c0_24 = arith.constant 0 : index
    %c0_25 = arith.constant 0 : index
    %55 = vector.load %arg3[%c0_22, %c2_23, %c0_24, %c0_25] : memref<1x4x8x8xbf16, #tpu.memory_space<vmem>>, vector<1x1x8x8xbf16>
    %56 = vector.shape_cast %55 : vector<1x1x8x8xbf16> to vector<8x8xbf16>
    %57 = arith.extf %56 : vector<8x8xbf16> to vector<8x8xf32>
    %58 = arith.addf %54, %57 : vector<8x8xf32>
    %cst_26 = arith.constant dense<0xFF800000> : vector<8xf32>
    %59 = vector.multi_reduction <maximumf>, %58, %cst_26 [1] : vector<8x8xf32> to vector<8xf32>
    %60 = vector.shape_cast %59 : vector<8xf32> to vector<8x1xf32>
    %61 = vector.broadcast %60 : vector<8x1xf32> to vector<8x8xf32>
    %62 = arith.subf %58, %61 : vector<8x8xf32>
    %63 = math.exp %62 : vector<8x8xf32>
    %cst_27 = arith.constant dense<0.000000e+00> : vector<8xf32>
    %64 = vector.multi_reduction <add>, %63, %cst_27 [1] : vector<8x8xf32> to vector<8xf32>
    %65 = vector.shape_cast %64 : vector<8xf32> to vector<8x1xf32>
    %66 = arith.truncf %63 : vector<8x8xf32> to vector<8x8xbf16>
    %67 = vector.extract_strided_slice %11 {offsets = [0, 16], sizes = [8, 8], strides = [1, 1]} : vector<8x32xbf16> to vector<8x8xbf16>
    %cst_28 = arith.constant dense<0.000000e+00> : vector<8x8xf32>
    %68 = tpu.matmul %66, %67, %cst_28 {dimension_numbers = #tpu.dot_dimension_numbers<[1], [0], [0], [1], [0, 0, 1, 1], [], []>} : vector<8x8xbf16>, vector<8x8xbf16>, vector<8x8xf32> -> vector<8x8xf32>
    %69 = tpu.reciprocal %65 {approx = true} : vector<8x1xf32> -> vector<8x1xf32>
    %70 = vector.broadcast %69 : vector<8x1xf32> to vector<8x8xf32>
    %71 = arith.mulf %68, %70 : vector<8x8xf32>
    %72 = vector.extract_strided_slice %7 {offsets = [0, 24], sizes = [8, 8], strides = [1, 1]} : vector<8x32xbf16> to vector<8x8xbf16>
    %73 = vector.extract_strided_slice %9 {offsets = [0, 24], sizes = [8, 8], strides = [1, 1]} : vector<8x32xbf16> to vector<8x8xbf16>
    %cst_29 = arith.constant dense<0.000000e+00> : vector<8x8xf32>
    %74 = tpu.matmul %72, %73, %cst_29 {dimension_numbers = #tpu.dot_dimension_numbers<[1], [1], [0], [0], [0, 0, 1, 0], [], []>} : vector<8x8xbf16>, vector<8x8xbf16>, vector<8x8xf32> -> vector<8x8xf32>
    %c0_30 = arith.constant 0 : index
    %c3 = arith.constant 3 : index
    %c0_31 = arith.constant 0 : index
    %c0_32 = arith.constant 0 : index
    %75 = vector.load %arg3[%c0_30, %c3, %c0_31, %c0_32] : memref<1x4x8x8xbf16, #tpu.memory_space<vmem>>, vector<1x1x8x8xbf16>
    %76 = vector.shape_cast %75 : vector<1x1x8x8xbf16> to vector<8x8xbf16>
    %77 = arith.extf %76 : vector<8x8xbf16> to vector<8x8xf32>
    %78 = arith.addf %74, %77 : vector<8x8xf32>
    %cst_33 = arith.constant dense<0xFF800000> : vector<8xf32>
    %79 = vector.multi_reduction <maximumf>, %78, %cst_33 [1] : vector<8x8xf32> to vector<8xf32>
    %80 = vector.shape_cast %79 : vector<8xf32> to vector<8x1xf32>
    %81 = vector.broadcast %80 : vector<8x1xf32> to vector<8x8xf32>
    %82 = arith.subf %78, %81 : vector<8x8xf32>
    %83 = math.exp %82 : vector<8x8xf32>
    %cst_34 = arith.constant dense<0.000000e+00> : vector<8xf32>
    %84 = vector.multi_reduction <add>, %83, %cst_34 [1] : vector<8x8xf32> to vector<8xf32>
    %85 = vector.shape_cast %84 : vector<8xf32> to vector<8x1xf32>
    %86 = arith.truncf %83 : vector<8x8xf32> to vector<8x8xbf16>
    %87 = vector.extract_strided_slice %11 {offsets = [0, 24], sizes = [8, 8], strides = [1, 1]} : vector<8x32xbf16> to vector<8x8xbf16>
    %cst_35 = arith.constant dense<0.000000e+00> : vector<8x8xf32>
    %88 = tpu.matmul %86, %87, %cst_35 {dimension_numbers = #tpu.dot_dimension_numbers<[1], [0], [0], [1], [0, 0, 1, 1], [], []>} : vector<8x8xbf16>, vector<8x8xbf16>, vector<8x8xf32> -> vector<8x8xf32>
    %89 = tpu.reciprocal %85 {approx = true} : vector<8x1xf32> -> vector<8x1xf32>
    %90 = vector.broadcast %89 : vector<8x1xf32> to vector<8x8xf32>
    %91 = arith.mulf %88, %90 : vector<8x8xf32>
    %92 = tpu.concatenate %31, %51, %71, %91 in 1 : vector<8x8xf32>, vector<8x8xf32>, vector<8x8xf32>, vector<8x8xf32> -> vector<8x32xf32>
    %93 = arith.truncf %92 : vector<8x32xf32> to vector<8x32xbf16>
    %c0_36 = arith.constant 0 : index
    %c0_37 = arith.constant 0 : index
    %94 = vector.load %arg8[%c0_36, %c0_37] : memref<32x32xbf16, #tpu.memory_space<vmem>>, vector<32x32xbf16>
    %cst_38 = arith.constant dense<0.000000e+00> : vector<8x32xf32>
    %95 = tpu.matmul %93, %94, %cst_38 {dimension_numbers = #tpu.dot_dimension_numbers<[1], [0], [0], [1], [0, 0, 1, 1], [], []>} : vector<8x32xbf16>, vector<32x32xbf16>, vector<8x32xf32> -> vector<8x32xf32>
    %c0_39 = arith.constant 0 : index
    %c0_40 = arith.constant 0 : index
    %96 = vector.load %arg9[%c0_39, %c0_40] : memref<1x32xf32, #tpu.memory_space<vmem>>, vector<1x32xf32>
    %97 = vector.broadcast %96 : vector<1x32xf32> to vector<8x32xf32>
    %98 = arith.addf %95, %97 : vector<8x32xf32>
    %c0_41 = arith.constant 0 : index
    %99 = arith.index_cast %1 : i32 to index
    %c0_42 = arith.constant 0 : index
    %100 = vector.load %arg2[%c0_41, %99, %c0_42] : memref<1x8x32xf32, #tpu.memory_space<vmem>>, vector<1x8x32xf32>
    %101 = vector.shape_cast %100 : vector<1x8x32xf32> to vector<8x32xf32>
    %102 = arith.addf %101, %98 : vector<8x32xf32>
    %c0_43 = arith.constant 0 : index
    %c0_44 = arith.constant 0 : index
    %103 = vector.load %arg10[%c0_43, %c0_44] : memref<1x32xf32, #tpu.memory_space<vmem>>, vector<1x32xf32>
    %c0_45 = arith.constant 0 : index
    %c0_46 = arith.constant 0 : index
    %104 = vector.load %arg11[%c0_45, %c0_46] : memref<1x32xf32, #tpu.memory_space<vmem>>, vector<1x32xf32>
    %cst_47 = arith.constant dense<0.000000e+00> : vector<8xf32>
    %105 = vector.multi_reduction <add>, %102, %cst_47 [1] : vector<8x32xf32> to vector<8xf32>
    %106 = vector.shape_cast %105 : vector<8xf32> to vector<8x1xf32>
    %cst_48 = arith.constant 3.200000e+01 : f32
    %107 = vector.broadcast %cst_48 : f32 to vector<8x1xf32>
    %108 = arith.divf %106, %107 : vector<8x1xf32>
    %109 = vector.broadcast %108 : vector<8x1xf32> to vector<8x32xf32>
    %110 = arith.subf %102, %109 : vector<8x32xf32>
    %111 = arith.mulf %110, %110 : vector<8x32xf32>
    %cst_49 = arith.constant dense<0.000000e+00> : vector<8xf32>
    %112 = vector.multi_reduction <add>, %111, %cst_49 [1] : vector<8x32xf32> to vector<8xf32>
    %113 = vector.shape_cast %112 : vector<8xf32> to vector<8x1xf32>
    %cst_50 = arith.constant 3.200000e+01 : f32
    %114 = vector.broadcast %cst_50 : f32 to vector<8x1xf32>
    %115 = arith.divf %113, %114 : vector<8x1xf32>
    %cst_51 = arith.constant 9.99999974E-6 : f32
    %116 = vector.broadcast %cst_51 : f32 to vector<8x1xf32>
    %117 = arith.addf %115, %116 : vector<8x1xf32>
    %118 = math.rsqrt %117 : vector<8x1xf32>
    %119 = vector.broadcast %118 : vector<8x1xf32> to vector<8x32xf32>
    %120 = arith.mulf %110, %119 : vector<8x32xf32>
    %121 = vector.broadcast %103 : vector<1x32xf32> to vector<8x32xf32>
    %122 = arith.mulf %120, %121 : vector<8x32xf32>
    %123 = vector.broadcast %104 : vector<1x32xf32> to vector<8x32xf32>
    %124 = arith.addf %122, %123 : vector<8x32xf32>
    %125 = arith.truncf %124 : vector<8x32xf32> to vector<8x32xbf16>
    %c0_52 = arith.constant 0 : index
    %c0_53 = arith.constant 0 : index
    %126 = vector.load %arg12[%c0_52, %c0_53] : memref<32x64xbf16, #tpu.memory_space<vmem>>, vector<32x64xbf16>
    %cst_54 = arith.constant dense<0.000000e+00> : vector<8x64xf32>
    %127 = tpu.matmul %125, %126, %cst_54 {dimension_numbers = #tpu.dot_dimension_numbers<[1], [0], [0], [1], [0, 0, 1, 1], [], []>} : vector<8x32xbf16>, vector<32x64xbf16>, vector<8x64xf32> -> vector<8x64xf32>
    %c0_55 = arith.constant 0 : index
    %c0_56 = arith.constant 0 : index
    %128 = vector.load %arg13[%c0_55, %c0_56] : memref<1x64xf32, #tpu.memory_space<vmem>>, vector<1x64xf32>
    %129 = vector.broadcast %128 : vector<1x64xf32> to vector<8x64xf32>
    %130 = arith.addf %127, %129 : vector<8x64xf32>
    %cst_57 = arith.constant 5.000000e-01 : f32
    %131 = vector.broadcast %cst_57 : f32 to vector<8x64xf32>
    %132 = arith.mulf %131, %130 : vector<8x64xf32>
    %cst_58 = arith.constant 4.471500e-02 : f32
    %133 = vector.broadcast %cst_58 : f32 to vector<8x64xf32>
    %134 = arith.mulf %133, %130 : vector<8x64xf32>
    %135 = arith.mulf %134, %130 : vector<8x64xf32>
    %136 = arith.mulf %135, %130 : vector<8x64xf32>
    %137 = arith.addf %130, %136 : vector<8x64xf32>
    %cst_59 = arith.constant 0.797884583 : f32
    %138 = vector.broadcast %cst_59 : f32 to vector<8x64xf32>
    %139 = arith.mulf %138, %137 : vector<8x64xf32>
    %140 = math.tanh %139 : vector<8x64xf32>
    %cst_60 = arith.constant 1.000000e+00 : f32
    %141 = vector.broadcast %cst_60 : f32 to vector<8x64xf32>
    %142 = arith.addf %141, %140 : vector<8x64xf32>
    %143 = arith.mulf %132, %142 : vector<8x64xf32>
    %144 = arith.truncf %143 : vector<8x64xf32> to vector<8x64xbf16>
    %c0_61 = arith.constant 0 : index
    %c0_62 = arith.constant 0 : index
    %145 = vector.load %arg14[%c0_61, %c0_62] : memref<64x32xbf16, #tpu.memory_space<vmem>>, vector<64x32xbf16>
    %cst_63 = arith.constant dense<0.000000e+00> : vector<8x32xf32>
    %146 = tpu.matmul %144, %145, %cst_63 {dimension_numbers = #tpu.dot_dimension_numbers<[1], [0], [0], [1], [0, 0, 1, 1], [], []>} : vector<8x64xbf16>, vector<64x32xbf16>, vector<8x32xf32> -> vector<8x32xf32>
    %c0_64 = arith.constant 0 : index
    %c0_65 = arith.constant 0 : index
    %147 = vector.load %arg15[%c0_64, %c0_65] : memref<1x32xf32, #tpu.memory_space<vmem>>, vector<1x32xf32>
    %148 = vector.broadcast %147 : vector<1x32xf32> to vector<8x32xf32>
    %149 = arith.addf %146, %148 : vector<8x32xf32>
    %150 = arith.addf %102, %149 : vector<8x32xf32>
    %c0_66 = arith.constant 0 : index
    %c0_67 = arith.constant 0 : index
    %c0_68 = arith.constant 0 : index
    %151 = vector.load %arg16[%c0_66, %c0_67, %c0_68] : memref<1x8x32xf32, #tpu.memory_space<vmem>>, vector<1x8x32xf32>
    %152 = vector.shape_cast %151 : vector<1x8x32xf32> to vector<8x32xf32>
    %153 = vector.shape_cast %150 : vector<8x32xf32> to vector<1x8x32xf32>
    tpu.vector_store %arg16[%c0_66, %c0_67, %c0_68], %153 {strides = array<i32>} : memref<1x8x32xf32, #tpu.memory_space<vmem>>, vector<1x8x32xf32>,
    return
  }
  func.func @transform_0(%arg0: i32, %arg1: i32) -> (i32, i32, i32) {
    %c0_i32 = arith.constant 0 : i32
    %c0_i32_0 = arith.constant 0 : i32
    %c0_i32_1 = arith.constant 0 : i32
    return %arg0, %c0_i32, %c0_i32_0 : i32, i32, i32
  }
  func.func @transform_1(%arg0: i32, %arg1: i32) -> (i32, i32, i32, i32) {
    %c0_i32 = arith.constant 0 : i32
    %c0_i32_0 = arith.constant 0 : i32
    %c0_i32_1 = arith.constant 0 : i32
    return %arg0, %c0_i32, %arg1, %c0_i32_0 : i32, i32, i32, i32
  }
  func.func @transform_2(%arg0: i32, %arg1: i32) -> (i32, i32) {
    %c0_i32 = arith.constant 0 : i32
    %c0_i32_0 = arith.constant 0 : i32
    %c0_i32_1 = arith.constant 0 : i32
    return %c0_i32, %c0_i32_0 : i32, i32
  }
  func.func @transform_3(%arg0: i32, %arg1: i32) -> (i32, i32) {
    %c0_i32 = arith.constant 0 : i32
    %c0_i32_0 = arith.constant 0 : i32
    %c0_i32_1 = arith.constant 0 : i32
    return %c0_i32, %c0_i32_0 : i32, i32
  }
  func.func @transform_4(%arg0: i32, %arg1: i32) -> (i32, i32) {
    %c0_i32 = arith.constant 0 : i32
    %c0_i32_0 = arith.constant 0 : i32
    %c0_i32_1 = arith.constant 0 : i32
    return %c0_i32, %c0_i32_0 : i32, i32
  }
  func.func @transform_5(%arg0: i32, %arg1: i32) -> (i32, i32) {
    %c0_i32 = arith.constant 0 : i32
    %c0_i32_0 = arith.constant 0 : i32
    %c0_i32_1 = arith.constant 0 : i32
    return %c0_i32, %c0_i32_0 : i32, i32
  }
  func.func @transform_6(%arg0: i32, %arg1: i32) -> (i32, i32) {
    %c0_i32 = arith.constant 0 : i32
    %c0_i32_0 = arith.constant 0 : i32
    %c0_i32_1 = arith.constant 0 : i32
    return %c0_i32, %c0_i32_0 : i32, i32
  }
  func.func @transform_7(%arg0: i32, %arg1: i32) -> (i32, i32) {
    %c0_i32 = arith.constant 0 : i32
    %c0_i32_0 = arith.constant 0 : i32
    %c0_i32_1 = arith.constant 0 : i32
    return %c0_i32, %c0_i32_0 : i32, i32
  }
  func.func @transform_8(%arg0: i32, %arg1: i32) -> (i32, i32) {
    %c0_i32 = arith.constant 0 : i32
    %c0_i32_0 = arith.constant 0 : i32
    %c0_i32_1 = arith.constant 0 : i32
    return %c0_i32, %c0_i32_0 : i32, i32
  }
  func.func @transform_9(%arg0: i32, %arg1: i32) -> (i32, i32) {
    %c0_i32 = arith.constant 0 : i32
    %c0_i32_0 = arith.constant 0 : i32
    %c0_i32_1 = arith.constant 0 : i32
    return %c0_i32, %c0_i32_0 : i32, i32
  }
  func.func @transform_10(%arg0: i32, %arg1: i32) -> (i32, i32) {
    %c0_i32 = arith.constant 0 : i32
    %c0_i32_0 = arith.constant 0 : i32
    %c0_i32_1 = arith.constant 0 : i32
    return %c0_i32, %c0_i32_0 : i32, i32
  }
  func.func @transform_11(%arg0: i32, %arg1: i32) -> (i32, i32) {
    %c0_i32 = arith.constant 0 : i32
    %c0_i32_0 = arith.constant 0 : i32
    %c0_i32_1 = arith.constant 0 : i32
    return %c0_i32, %c0_i32_0 : i32, i32
  }
  func.func @transform_12(%arg0: i32, %arg1: i32) -> (i32, i32) {
    %c0_i32 = arith.constant 0 : i32
    %c0_i32_0 = arith.constant 0 : i32
    %c0_i32_1 = arith.constant 0 : i32
    return %c0_i32, %c0_i32_0 : i32, i32
  }
  func.func @transform_13(%arg0: i32, %arg1: i32) -> (i32, i32) {
    %c0_i32 = arith.constant 0 : i32
    %c0_i32_0 = arith.constant 0 : i32
    %c0_i32_1 = arith.constant 0 : i32
    return %c0_i32, %c0_i32_0 : i32, i32
  }
  func.func @transform_14(%arg0: i32, %arg1: i32) -> (i32, i32, i32) {
    %c0_i32 = arith.constant 0 : i32
    %c0_i32_0 = arith.constant 0 : i32
    return %arg0, %arg1, %c0_i32 : i32, i32, i32
  }
}

</mosaic_0001>

<llo_original>
// kernel: tpu_custom_call.1
$region0: #{tpu_custom_call.1}
  #allocation0 [shape = 'u32[]', space=smem, size = 0x4, offset = 0x4, fixed_abs, tag = 'smem constant byte address 0x4 - core index']
  #allocation1 [shape = 'u32[144,128]{1,0:T(1,128)}', space=vmem, size = 0x12000, scoped, tag = 'internal scratch']
  #allocation2 [shape = 'bf16[3,8,32]{2,1,0:T(8,128)(2,1)}', space=vmem, size = 0x1800, scoped, tag = 'scratch operand']
  %s0 = inlined_call_operand.hbm [shape: f32[2,8,32], index: 0, kind: input, shape index: {}]
  %s1 = inlined_call_operand.hbm [shape: bf16[2,4,8,8], index: 1, kind: input, shape index: {}]
  %s2 = inlined_call_operand.hbm [shape: f32[1,32], index: 2, kind: input, shape index: {}]
  %s3 = inlined_call_operand.hbm [shape: f32[1,32], index: 3, kind: input, shape index: {}]
  %s4 = inlined_call_operand.hbm [shape: bf16[32,96], index: 4, kind: input, shape index: {}]
  %s5 = inlined_call_operand.hbm [shape: f32[1,96], index: 5, kind: input, shape index: {}]
  %s6 = inlined_call_operand.hbm [shape: bf16[32,32], index: 6, kind: input, shape index: {}]
  %s7 = inlined_call_operand.hbm [shape: f32[1,32], index: 7, kind: input, shape index: {}]
  %s8 = inlined_call_operand.hbm [shape: f32[1,32], index: 8, kind: input, shape index: {}]
  %s9 = inlined_call_operand.hbm [shape: f32[1,32], index: 9, kind: input, shape index: {}]
  %s10 = inlined_call_operand.hbm [shape: bf16[32,64], index: 10, kind: input, shape index: {}]
  %s11 = inlined_call_operand.hbm [shape: f32[1,64], index: 11, kind: input, shape index: {}]
  %s12 = inlined_call_operand.hbm [shape: bf16[64,32], index: 12, kind: input, shape index: {}]
  %s13 = inlined_call_operand.hbm [shape: f32[1,32], index: 13, kind: input, shape index: {}]
  %s14 = inlined_call_operand.hbm [shape: f32[2,8,32], index: 14, kind: output, shape index: {}]
  %s15 = sld [smem:[#allocation0]]
  $region149: #{tpu_custom_call.1} parent=0
    _
  %s17 = ssub.s32 1, %s15
  %s18 = scalar_select 0, %s17, %s15
  $region1: #{tpu_custom_call.1} parent=0
    #allocation3 [shape = 'u8[8192]{0}', space=vmem, size = 0x2000, scoped, tag = 'input window, operand 0']
    #allocation4 [shape = 's32[2]{0}', space=sflag, size = 0x8, scoped, tag = 'scoped memory for tpu_custom_call.1']
    #allocation5 [shape = 's32[2]{0}', space=sflag, size = 0x8, scoped, tag = 'scoped memory for tpu_custom_call.1']
    #allocation6 [shape = 'u8[16384]{0}', space=vmem, size = 0x4000, scoped, tag = 'input window, operand 1']
    #allocation7 [shape = 's32[2]{0}', space=sflag, size = 0x8, scoped, tag = 'scoped memory for tpu_custom_call.1']
    #allocation8 [shape = 'u8[512]{0}', space=vmem, size = 0x400, scoped, tag = 'input window, operand 2, single buffered']
    #allocation9 [shape = 'u8[512]{0}', space=vmem, size = 0x400, scoped, tag = 'input window, operand 3, single buffered']
    #allocation10 [shape = 's32[1]{0}', space=sflag, size = 0x4, scoped, tag = 'scoped memory for tpu_custom_call.1']
    #allocation11 [shape = 'u8[8192]{0}', space=vmem, size = 0x2000, scoped, tag = 'input window, operand 4, single buffered']
    #allocation12 [shape = 'u8[512]{0}', space=vmem, size = 0x400, scoped, tag = 'input window, operand 5, single buffered']
    #allocation13 [shape = 's32[1]{0}', space=sflag, size = 0x4, scoped, tag = 'scoped memory for tpu_custom_call.1']
    #allocation14 [shape = 'u8[8192]{0}', space=vmem, size = 0x2000, scoped, tag = 'input window, operand 6, single buffered']
    #allocation15 [shape = 'u8[512]{0}', space=vmem, size = 0x400, scoped, tag = 'input window, operand 7, single buffered']
    #allocation16 [shape = 's32[1]{0}', space=sflag, size = 0x4, scoped, tag = 'scoped memory for tpu_custom_call.1']
    #allocation17 [shape = 'u8[512]{0}', space=vmem, size = 0x400, scoped, tag = 'input window, operand 8, single buffered']
    #allocation18 [shape = 'u8[512]{0}', space=vmem, size = 0x400, scoped, tag = 'input window, operand 9, single buffered']
    #allocation19 [shape = 's32[1]{0}', space=sflag, size = 0x4, scoped, tag = 'scoped memory for tpu_custom_call.1']
    #allocation20 [shape = 'u8[8192]{0}', space=vmem, size = 0x2000, scoped, tag = 'input window, operand 10, single buffered']
    #allocation21 [shape = 'u8[512]{0}', space=vmem, size = 0x400, scoped, tag = 'input window, operand 11, single buffered']
    #allocation22 [shape = 's32[1]{0}', space=sflag, size = 0x4, scoped, tag = 'scoped memory for tpu_custom_call.1']
    #allocation23 [shape = 'u8[16384]{0}', space=vmem, size = 0x4000, scoped, tag = 'input window, operand 12, single buffered']
    #allocation24 [shape = 'u8[512]{0}', space=vmem, size = 0x400, scoped, tag = 'input window, operand 13, single buffered']
    #allocation25 [shape = 's32[1]{0}', space=sflag, size = 0x4, scoped, tag = 'scoped memory for tpu_custom_call.1']
    #allocation26 [shape = 'u8[8192]{0}', space=vmem, size = 0x2000, scoped, tag = 'output window, operand 0']
    %19 = vsyncpa [#allocation4], 0
    %s20 = scalar_lea.sflag [#allocation4], 1
    %21 = vsyncpa %s20, 0
    %22 = vsyncpa [#allocation7], 0
    %s23 = scalar_lea.sflag [#allocation7], 1
    %24 = vsyncpa %s23, 0
    %25 = vsyncpa [#allocation10], 0
    %26 = vsyncpa [#allocation13], 0
    %27 = vsyncpa [#allocation16], 0
    %28 = vsyncpa [#allocation19], 0
    %29 = vsyncpa [#allocation22], 0
    %30 = vsyncpa [#allocation25], 0
    %31 = vsyncpa [#allocation5], 0
    %s32 = scalar_lea.sflag [#allocation5], 1
    %33 = vsyncpa %s32, 0
    loop: start=0, step=1, limit=4
    $region2: #{tpu_custom_call.1} parent=1 // loop_pre_header
      _
    $region3: #{tpu_custom_call.1} parent=1 // loop_header
      %s35 = sphi 0, %s39
      %p36 = scmp.ge.s32.totalorder %s35, 4
      %s42 = sphi 0, %s54
      %s43 = sphi 0, %s50
      %s44 = sphi 0, %s42
      %s45 = sphi 0, %s43
      %s46 = sphi 0, %s44
      %s47 = sphi 0, %s45
      %s57 = sphi 0, %s59
      %s60 = sphi 0, %s57
      %s61 = sphi 0, %s60
      %s77 = sphi 0, %s61
      %s85 = sphi 0, %s87
      %s88 = sphi 0, %s85
      %s89 = sphi 0, %s88
      %s105 = sphi 0, %s89
      %s109 = sphi 0, %s109
      %s111 = sphi 0, %s109
      %s112 = sphi 0, %s111
      %s126 = sphi 0, %s112
      %s130 = sphi 0, %s130
      %s132 = sphi 0, %s130
      %s133 = sphi 0, %s132
      %s147 = sphi 0, %s133
      %s151 = sphi 0, %s151
      %s153 = sphi 0, %s151
      %s154 = sphi 0, %s153
      %s168 = sphi 0, %s154
      %s172 = sphi 0, %s172
      %s174 = sphi 0, %s172
      %s175 = sphi 0, %s174
      %s189 = sphi 0, %s175
      %s193 = sphi 0, %s193
      %s195 = sphi 0, %s193
      %s196 = sphi 0, %s195
      %s210 = sphi 0, %s196
      %s214 = sphi 0, %s214
      %s216 = sphi 0, %s214
      %s217 = sphi 0, %s216
      %s231 = sphi 0, %s217
      %s235 = sphi 0, %s235
      %s237 = sphi 0, %s235
      %s238 = sphi 0, %s237
      %s252 = sphi 0, %s238
      %s256 = sphi 0, %s256
      %s258 = sphi 0, %s256
      %s259 = sphi 0, %s258
      %s273 = sphi 0, %s259
      %s277 = sphi 0, %s277
      %s279 = sphi 0, %s277
      %s280 = sphi 0, %s279
      %s294 = sphi 0, %s280
      %s298 = sphi 0, %s298
      %s300 = sphi 0, %s298
      %s301 = sphi 0, %s300
      %s315 = sphi 0, %s301
      %s319 = sphi 0, %s319
      %s321 = sphi 0, %s319
      %s322 = sphi 0, %s321
      %s336 = sphi 0, %s322
      %s340 = sphi 0, %s340
      %s342 = sphi 0, %s340
      %s343 = sphi 0, %s342
      %s357 = sphi 0, %s343
      %s365 = sphi 0, %s367
      %s368 = sphi 0, %s365
      %s369 = sphi 0, %s368
      %s385 = sphi 0, %s369
    $region4: #{tpu_custom_call.1} parent=1 // loop_header_branch
      %38 = sbr.rel (%p36) target = $region8
    $region5: #{tpu_custom_call.1} parent=1 // loop_body
      %s40 = ssub.s32 %s35, 1
      %s41 = ssub.s32 %s35, 2
      %s48 = sadd.s32 1, %s43
      %p49 = scmp.ge.s32.totalorder %s48, 1
      %s50 = scalar_select %p49, 0, %s48
      %s51 = sadd.s32 1, %s42
      %s52 = scalar_select %p49, %s51, %s42
      %p53 = scmp.ge.s32.totalorder %s52, 2
      %s54 = scalar_select %p53, 0, %s52
      %s55 = ssub.s32 %s42, %s54
      %p56 = scmp.eq.s32.totalorder %s55, 0
      %s58 = sadd.s32 %s57, 1
      %s59 = scalar_select %p56, %s57, %s58
      %p62 = pneg %p56
      %p63 = scmp.eq.s32.totalorder %s35, 1
      %p64 = por %p62, %p63
      %p65 = scmp.ne.s32.totalorder %s57, %s60
      %p66 = scmp.eq.s32.totalorder %s35, 0
      %p67 = por %p65, %p66
      %p68 = scmp.ne.s32.totalorder %s57, %s60
      %p69 = scmp.eq.s32.totalorder %s40, 1
      %p70 = por %p68, %p69
      %p71 = scmp.ne.s32.totalorder %s60, %s61
      %p72 = scmp.eq.s32.totalorder %s40, 0
      %p73 = por %p71, %p72
      %p74 = scmp.ne.s32.totalorder %s60, %s61
      %p75 = scmp.eq.s32.totalorder %s41, 1
      %p76 = por %p74, %p75
      %p78 = scmp.ne.s32.totalorder %s61, %s77
      %p79 = scmp.eq.s32.totalorder %s41, 0
      %p80 = por %p78, %p79
      %s81 = ssub.s32 %s42, %s54
      %s82 = ssub.s32 %s43, %s50
      %s83 = sor.u32 %s81, %s82
      %p84 = scmp.eq.s32.totalorder %s83, 0
      %s86 = sadd.s32 %s85, 1
      %s87 = scalar_select %p84, %s85, %s86
      %p90 = pneg %p84
      %p91 = scmp.eq.s32.totalorder %s35, 1
      %p92 = por %p90, %p91
      %p93 = scmp.ne.s32.totalorder %s85, %s88
      %p94 = scmp.eq.s32.totalorder %s35, 0
      %p95 = por %p93, %p94
      %p96 = scmp.ne.s32.totalorder %s85, %s88
      %p97 = scmp.eq.s32.totalorder %s40, 1
      %p98 = por %p96, %p97
      %p99 = scmp.ne.s32.totalorder %s88, %s89
      %p100 = scmp.eq.s32.totalorder %s40, 0
      %p101 = por %p99, %p100
      %p102 = scmp.ne.s32.totalorder %s88, %s89
      %p103 = scmp.eq.s32.totalorder %s41, 1
      %p104 = por %p102, %p103
      %p106 = scmp.ne.s32.totalorder %s89, %s105
      %p107 = scmp.eq.s32.totalorder %s41, 0
      %p108 = por %p106, %p107
      %s110 = sadd.s32 %s109, 1
      %p113 = scmp.eq.s32.totalorder %s35, 1
      %p114 = scmp.ne.s32.totalorder %s109, %s111
      %p115 = scmp.eq.s32.totalorder %s35, 0
      %p116 = por %p114, %p115
      %p117 = scmp.ne.s32.totalorder %s109, %s111
      %p118 = scmp.eq.s32.totalorder %s40, 1
      %p119 = por %p117, %p118
      %p120 = scmp.ne.s32.totalorder %s111, %s112
      %p121 = scmp.eq.s32.totalorder %s40, 0
      %p122 = por %p120, %p121
      %p123 = scmp.ne.s32.totalorder %s111, %s112
      %p124 = scmp.eq.s32.totalorder %s41, 1
      %p125 = por %p123, %p124
      %p127 = scmp.ne.s32.totalorder %s112, %s126
      %p128 = scmp.eq.s32.totalorder %s41, 0
      %p129 = por %p127, %p128
      %s131 = sadd.s32 %s130, 1
      %p134 = scmp.eq.s32.totalorder %s35, 1
      %p135 = scmp.ne.s32.totalorder %s130, %s132
      %p136 = scmp.eq.s32.totalorder %s35, 0
      %p137 = por %p135, %p136
      %p138 = scmp.ne.s32.totalorder %s130, %s132
      %p139 = scmp.eq.s32.totalorder %s40, 1
      %p140 = por %p138, %p139
      %p141 = scmp.ne.s32.totalorder %s132, %s133
      %p142 = scmp.eq.s32.totalorder %s40, 0
      %p143 = por %p141, %p142
      %p144 = scmp.ne.s32.totalorder %s132, %s133
      %p145 = scmp.eq.s32.totalorder %s41, 1
      %p146 = por %p144, %p145
      %p148 = scmp.ne.s32.totalorder %s133, %s147
      %p149 = scmp.eq.s32.totalorder %s41, 0
      %p150 = por %p148, %p149
      %s152 = sadd.s32 %s151, 1
      %p155 = scmp.eq.s32.totalorder %s35, 1
      %p156 = scmp.ne.s32.totalorder %s151, %s153
      %p157 = scmp.eq.s32.totalorder %s35, 0
      %p158 = por %p156, %p157
      %p159 = scmp.ne.s32.totalorder %s151, %s153
      %p160 = scmp.eq.s32.totalorder %s40, 1
      %p161 = por %p159, %p160
      %p162 = scmp.ne.s32.totalorder %s153, %s154
      %p163 = scmp.eq.s32.totalorder %s40, 0
      %p164 = por %p162, %p163
      %p165 = scmp.ne.s32.totalorder %s153, %s154
      %p166 = scmp.eq.s32.totalorder %s41, 1
      %p167 = por %p165, %p166
      %p169 = scmp.ne.s32.totalorder %s154, %s168
      %p170 = scmp.eq.s32.totalorder %s41, 0
      %p171 = por %p169, %p170
      %s173 = sadd.s32 %s172, 1
      %p176 = scmp.eq.s32.totalorder %s35, 1
      %p177 = scmp.ne.s32.totalorder %s172, %s174
      %p178 = scmp.eq.s32.totalorder %s35, 0
      %p179 = por %p177, %p178
      %p180 = scmp.ne.s32.totalorder %s172, %s174
      %p181 = scmp.eq.s32.totalorder %s40, 1
      %p182 = por %p180, %p181
      %p183 = scmp.ne.s32.totalorder %s174, %s175
      %p184 = scmp.eq.s32.totalorder %s40, 0
      %p185 = por %p183, %p184
      %p186 = scmp.ne.s32.totalorder %s174, %s175
      %p187 = scmp.eq.s32.totalorder %s41, 1
      %p188 = por %p186, %p187
      %p190 = scmp.ne.s32.totalorder %s175, %s189
      %p191 = scmp.eq.s32.totalorder %s41, 0
      %p192 = por %p190, %p191
      %s194 = sadd.s32 %s193, 1
      %p197 = scmp.eq.s32.totalorder %s35, 1
      %p198 = scmp.ne.s32.totalorder %s193, %s195
      %p199 = scmp.eq.s32.totalorder %s35, 0
      %p200 = por %p198, %p199
      %p201 = scmp.ne.s32.totalorder %s193, %s195
      %p202 = scmp.eq.s32.totalorder %s40, 1
      %p203 = por %p201, %p202
      %p204 = scmp.ne.s32.totalorder %s195, %s196
      %p205 = scmp.eq.s32.totalorder %s40, 0
      %p206 = por %p204, %p205
      %p207 = scmp.ne.s32.totalorder %s195, %s196
      %p208 = scmp.eq.s32.totalorder %s41, 1
      %p209 = por %p207, %p208
      %p211 = scmp.ne.s32.totalorder %s196, %s210
      %p212 = scmp.eq.s32.totalorder %s41, 0
      %p213 = por %p211, %p212
      %s215 = sadd.s32 %s214, 1
      %p218 = scmp.eq.s32.totalorder %s35, 1
      %p219 = scmp.ne.s32.totalorder %s214, %s216
      %p220 = scmp.eq.s32.totalorder %s35, 0
      %p221 = por %p219, %p220
      %p222 = scmp.ne.s32.totalorder %s214, %s216
      %p223 = scmp.eq.s32.totalorder %s40, 1
      %p224 = por %p222, %p223
      %p225 = scmp.ne.s32.totalorder %s216, %s217
      %p226 = scmp.eq.s32.totalorder %s40, 0
      %p227 = por %p225, %p226
      %p228 = scmp.ne.s32.totalorder %s216, %s217
      %p229 = scmp.eq.s32.totalorder %s41, 1
      %p230 = por %p228, %p229
      %p232 = scmp.ne.s32.totalorder %s217, %s231
      %p233 = scmp.eq.s32.totalorder %s41, 0
      %p234 = por %p232, %p233
      %s236 = sadd.s32 %s235, 1
      %p239 = scmp.eq.s32.totalorder %s35, 1
      %p240 = scmp.ne.s32.totalorder %s235, %s237
      %p241 = scmp.eq.s32.totalorder %s35, 0
      %p242 = por %p240, %p241
      %p243 = scmp.ne.s32.totalorder %s235, %s237
      %p244 = scmp.eq.s32.totalorder %s40, 1
      %p245 = por %p243, %p244
      %p246 = scmp.ne.s32.totalorder %s237, %s238
      %p247 = scmp.eq.s32.totalorder %s40, 0
      %p248 = por %p246, %p247
      %p249 = scmp.ne.s32.totalorder %s237, %s238
      %p250 = scmp.eq.s32.totalorder %s41, 1
      %p251 = por %p249, %p250
      %p253 = scmp.ne.s32.totalorder %s238, %s252
      %p254 = scmp.eq.s32.totalorder %s41, 0
      %p255 = por %p253, %p254
      %s257 = sadd.s32 %s256, 1
      %p260 = scmp.eq.s32.totalorder %s35, 1
      %p261 = scmp.ne.s32.totalorder %s256, %s258
      %p262 = scmp.eq.s32.totalorder %s35, 0
      %p263 = por %p261, %p262
      %p264 = scmp.ne.s32.totalorder %s256, %s258
      %p265 = scmp.eq.s32.totalorder %s40, 1
      %p266 = por %p264, %p265
      %p267 = scmp.ne.s32.totalorder %s258, %s259
      %p268 = scmp.eq.s32.totalorder %s40, 0
      %p269 = por %p267, %p268
      %p270 = scmp.ne.s32.totalorder %s258, %s259
      %p271 = scmp.eq.s32.totalorder %s41, 1
      %p272 = por %p270, %p271
      %p274 = scmp.ne.s32.totalorder %s259, %s273
      %p275 = scmp.eq.s32.totalorder %s41, 0
      %p276 = por %p274, %p275
      %s278 = sadd.s32 %s277, 1
      %p281 = scmp.eq.s32.totalorder %s35, 1
      %p282 = scmp.ne.s32.totalorder %s277, %s279
      %p283 = scmp.eq.s32.totalorder %s35, 0
      %p284 = por %p282, %p283
      %p285 = scmp.ne.s32.totalorder %s277, %s279
      %p286 = scmp.eq.s32.totalorder %s40, 1
      %p287 = por %p285, %p286
      %p288 = scmp.ne.s32.totalorder %s279, %s280
      %p289 = scmp.eq.s32.totalorder %s40, 0
      %p290 = por %p288, %p289
      %p291 = scmp.ne.s32.totalorder %s279, %s280
      %p292 = scmp.eq.s32.totalorder %s41, 1
      %p293 = por %p291, %p292
      %p295 = scmp.ne.s32.totalorder %s280, %s294
      %p296 = scmp.eq.s32.totalorder %s41, 0
      %p297 = por %p295, %p296
      %s299 = sadd.s32 %s298, 1
      %p302 = scmp.eq.s32.totalorder %s35, 1
      %p303 = scmp.ne.s32.totalorder %s298, %s300
      %p304 = scmp.eq.s32.totalorder %s35, 0
      %p305 = por %p303, %p304
      %p306 = scmp.ne.s32.totalorder %s298, %s300
      %p307 = scmp.eq.s32.totalorder %s40, 1
      %p308 = por %p306, %p307
      %p309 = scmp.ne.s32.totalorder %s300, %s301
      %p310 = scmp.eq.s32.totalorder %s40, 0
      %p311 = por %p309, %p310
      %p312 = scmp.ne.s32.totalorder %s300, %s301
      %p313 = scmp.eq.s32.totalorder %s41, 1
      %p314 = por %p312, %p313
      %p316 = scmp.ne.s32.totalorder %s301, %s315
      %p317 = scmp.eq.s32.totalorder %s41, 0
      %p318 = por %p316, %p317
      %s320 = sadd.s32 %s319, 1
      %p323 = scmp.eq.s32.totalorder %s35, 1
      %p324 = scmp.ne.s32.totalorder %s319, %s321
      %p325 = scmp.eq.s32.totalorder %s35, 0
      %p326 = por %p324, %p325
      %p327 = scmp.ne.s32.totalorder %s319, %s321
      %p328 = scmp.eq.s32.totalorder %s40, 1
      %p329 = por %p327, %p328
      %p330 = scmp.ne.s32.totalorder %s321, %s322
      %p331 = scmp.eq.s32.totalorder %s40, 0
      %p332 = por %p330, %p331
      %p333 = scmp.ne.s32.totalorder %s321, %s322
      %p334 = scmp.eq.s32.totalorder %s41, 1
      %p335 = por %p333, %p334
      %p337 = scmp.ne.s32.totalorder %s322, %s336
      %p338 = scmp.eq.s32.totalorder %s41, 0
      %p339 = por %p337, %p338
      %s341 = sadd.s32 %s340, 1
      %p344 = scmp.eq.s32.totalorder %s35, 1
      %p345 = scmp.ne.s32.totalorder %s340, %s342
      %p346 = scmp.eq.s32.totalorder %s35, 0
      %p347 = por %p345, %p346
      %p348 = scmp.ne.s32.totalorder %s340, %s342
      %p349 = scmp.eq.s32.totalorder %s40, 1
      %p350 = por %p348, %p349
      %p351 = scmp.ne.s32.totalorder %s342, %s343
      %p352 = scmp.eq.s32.totalorder %s40, 0
      %p353 = por %p351, %p352
      %p354 = scmp.ne.s32.totalorder %s342, %s343
      %p355 = scmp.eq.s32.totalorder %s41, 1
      %p356 = por %p354, %p355
      %p358 = scmp.ne.s32.totalorder %s343, %s357
      %p359 = scmp.eq.s32.totalorder %s41, 0
      %p360 = por %p358, %p359
      %s361 = ssub.s32 %s42, %s54
      %s362 = ssub.s32 %s43, %s50
      %s363 = sor.u32 %s361, %s362
      %p364 = scmp.eq.s32.totalorder %s363, 0
      %s366 = sadd.s32 %s365, 1
      %s367 = scalar_select %p364, %s365, %s366
      %p370 = pneg %p364
      %p371 = scmp.eq.s32.totalorder %s35, 1
      %p372 = por %p370, %p371
      %p373 = scmp.ne.s32.totalorder %s365, %s368
      %p374 = scmp.eq.s32.totalorder %s35, 0
      %p375 = por %p373, %p374
      %p376 = scmp.ne.s32.totalorder %s365, %s368
      %p377 = scmp.eq.s32.totalorder %s40, 1
      %p378 = por %p376, %p377
      %p379 = scmp.ne.s32.totalorder %s368, %s369
      %p380 = scmp.eq.s32.totalorder %s40, 0
      %p381 = por %p379, %p380
      %p382 = scmp.ne.s32.totalorder %s368, %s369
      %p383 = scmp.eq.s32.totalorder %s41, 1
      %p384 = por %p382, %p383
      %p386 = scmp.ne.s32.totalorder %s369, %s385
      %p387 = scmp.eq.s32.totalorder %s41, 0
      %p388 = por %p386, %p387
      %p389 = scmp.le.s32.totalorder 1, %s35
      %p390 = scmp.lt.s32.totalorder %s35, 3
      %p391 = pnand %p389, %p390
      %p392 = pneg %p391
      // Predicated region
      $region9: #{tpu_custom_call.1} parent=5 // pred_check
        _
      $region10: #{tpu_custom_call.1} parent=5 // pred_check_branch
        %394 = sbr.rel (%p391) target = $region12
      $region11: #{tpu_custom_call.1} parent=5 // pred_region
        %s395 = ssub.s32 %s35, 1
        // Predicated region
        $region13: #{tpu_custom_call.1} parent=11 // pred_check
          %p396 = pneg %p122
        $region14: #{tpu_custom_call.1} parent=11 // pred_check_branch
          %398 = sbr.rel (%p396) target = $region16
        $region15: #{tpu_custom_call.1} parent=11 // pred_region
          %s400 = ssub.s32 16, 16
          %401 = vsyncadd [#allocation7], %s400
          %s403 = sshll.u32 [#allocation8], 4
          %s404 = int_to_ptr.vmem [resolvable:$true] %s403
          %406 = dma.hbm_to_vmem [thread:$0]  %s2, 16, %s404, [#allocation7]
        $region16: #{tpu_custom_call.1} parent=11 // pred_fallthru
          _
        // Predicated region
        $region17: #{tpu_custom_call.1} parent=11 // pred_check
          %p407 = pneg %p143
        $region18: #{tpu_custom_call.1} parent=11 // pred_check_branch
          %409 = sbr.rel (%p407) target = $region20
        $region19: #{tpu_custom_call.1} parent=11 // pred_region
          %s411 = ssub.s32 16, 16
          %412 = vsyncadd [#allocation10], %s411
          %s414 = sshll.u32 [#allocation9], 4
          %s415 = int_to_ptr.vmem [resolvable:$true] %s414
          %417 = dma.hbm_to_vmem [thread:$0]  %s3, 16, %s415, [#allocation10]
        $region20: #{tpu_custom_call.1} parent=11 // pred_fallthru
          _
        // Predicated region
        $region21: #{tpu_custom_call.1} parent=11 // pred_check
          %p418 = pneg %p164
        $region22: #{tpu_custom_call.1} parent=11 // pred_check_branch
          %420 = sbr.rel (%p418) target = $region24
        $region23: #{tpu_custom_call.1} parent=11 // pred_region
          %s422 = ssub.s32 256, 256
          %423 = vsyncadd [#allocation10], %s422
          %s424 = sshll.u32 [#allocation11], 4
          %s425 = int_to_ptr.vmem [resolvable:$true] %s424
          %430 = dma.hbm_to_vmem [thread:$0]  %s4, 256, %s425, [#allocation10], 64, 64, 4
        $region24: #{tpu_custom_call.1} parent=11 // pred_fallthru
          _
        // Predicated region
        $region25: #{tpu_custom_call.1} parent=11 // pred_check
          %p431 = pneg %p185
        $region26: #{tpu_custom_call.1} parent=11 // pred_check_branch
          %433 = sbr.rel (%p431) target = $region28
        $region27: #{tpu_custom_call.1} parent=11 // pred_region
          %s435 = ssub.s32 16, 16
          %436 = vsyncadd [#allocation13], %s435
          %s438 = sshll.u32 [#allocation12], 4
          %s439 = int_to_ptr.vmem [resolvable:$true] %s438
          %441 = dma.hbm_to_vmem [thread:$0]  %s5, 16, %s439, [#allocation13]
        $region28: #{tpu_custom_call.1} parent=11 // pred_fallthru
          _
        // Predicated region
        $region29: #{tpu_custom_call.1} parent=11 // pred_check
          %p442 = pneg %p206
        $region30: #{tpu_custom_call.1} parent=11 // pred_check_branch
          %444 = sbr.rel (%p442) target = $region32
        $region31: #{tpu_custom_call.1} parent=11 // pred_region
          %s446 = ssub.s32 256, 256
          %447 = vsyncadd [#allocation13], %s446
          %s448 = sshll.u32 [#allocation14], 4
          %s449 = int_to_ptr.vmem [resolvable:$true] %s448
          %454 = dma.hbm_to_vmem [thread:$0]  %s6, 256, %s449, [#allocation13], 64, 64, 4
        $region32: #{tpu_custom_call.1} parent=11 // pred_fallthru
          _
        // Predicated region
        $region33: #{tpu_custom_call.1} parent=11 // pred_check
          %p455 = pneg %p227
        $region34: #{tpu_custom_call.1} parent=11 // pred_check_branch
          %457 = sbr.rel (%p455) target = $region36
        $region35: #{tpu_custom_call.1} parent=11 // pred_region
          %s459 = ssub.s32 16, 16
          %460 = vsyncadd [#allocation16], %s459
          %s462 = sshll.u32 [#allocation15], 4
          %s463 = int_to_ptr.vmem [resolvable:$true] %s462
          %465 = dma.hbm_to_vmem [thread:$0]  %s7, 16, %s463, [#allocation16]
        $region36: #{tpu_custom_call.1} parent=11 // pred_fallthru
          _
        // Predicated region
        $region37: #{tpu_custom_call.1} parent=11 // pred_check
          %p466 = pneg %p248
        $region38: #{tpu_custom_call.1} parent=11 // pred_check_branch
          %468 = sbr.rel (%p466) target = $region40
        $region39: #{tpu_custom_call.1} parent=11 // pred_region
          %s470 = ssub.s32 16, 16
          %471 = vsyncadd [#allocation16], %s470
          %s473 = sshll.u32 [#allocation17], 4
          %s474 = int_to_ptr.vmem [resolvable:$true] %s473
          %476 = dma.hbm_to_vmem [thread:$0]  %s8, 16, %s474, [#allocation16]
        $region40: #{tpu_custom_call.1} parent=11 // pred_fallthru
          _
        // Predicated region
        $region41: #{tpu_custom_call.1} parent=11 // pred_check
          %p477 = pneg %p269
        $region42: #{tpu_custom_call.1} parent=11 // pred_check_branch
          %479 = sbr.rel (%p477) target = $region44
        $region43: #{tpu_custom_call.1} parent=11 // pred_region
          %s481 = ssub.s32 16, 16
          %482 = vsyncadd [#allocation19], %s481
          %s484 = sshll.u32 [#allocation18], 4
          %s485 = int_to_ptr.vmem [resolvable:$true] %s484
          %487 = dma.hbm_to_vmem [thread:$0]  %s9, 16, %s485, [#allocation19]
        $region44: #{tpu_custom_call.1} parent=11 // pred_fallthru
          _
        // Predicated region
        $region45: #{tpu_custom_call.1} parent=11 // pred_check
          %p488 = pneg %p290
        $region46: #{tpu_custom_call.1} parent=11 // pred_check_branch
          %490 = sbr.rel (%p488) target = $region48
        $region47: #{tpu_custom_call.1} parent=11 // pred_region
          %s492 = ssub.s32 256, 256
          %493 = vsyncadd [#allocation19], %s492
          %s494 = sshll.u32 [#allocation20], 4
          %s495 = int_to_ptr.vmem [resolvable:$true] %s494
          %500 = dma.hbm_to_vmem [thread:$0]  %s10, 256, %s495, [#allocation19], 64, 64, 4
        $region48: #{tpu_custom_call.1} parent=11 // pred_fallthru
          _
        // Predicated region
        $region49: #{tpu_custom_call.1} parent=11 // pred_check
          %p501 = pneg %p311
        $region50: #{tpu_custom_call.1} parent=11 // pred_check_branch
          %503 = sbr.rel (%p501) target = $region52
        $region51: #{tpu_custom_call.1} parent=11 // pred_region
          %s505 = ssub.s32 16, 16
          %506 = vsyncadd [#allocation22], %s505
          %s508 = sshll.u32 [#allocation21], 4
          %s509 = int_to_ptr.vmem [resolvable:$true] %s508
          %511 = dma.hbm_to_vmem [thread:$0]  %s11, 16, %s509, [#allocation22]
        $region52: #{tpu_custom_call.1} parent=11 // pred_fallthru
          _
        // Predicated region
        $region53: #{tpu_custom_call.1} parent=11 // pred_check
          %p512 = pneg %p332
        $region54: #{tpu_custom_call.1} parent=11 // pred_check_branch
          %514 = sbr.rel (%p512) target = $region56
        $region55: #{tpu_custom_call.1} parent=11 // pred_region
          %s516 = ssub.s32 512, 512
          %517 = vsyncadd [#allocation22], %s516
          %s518 = sshll.u32 [#allocation23], 4
          %s519 = int_to_ptr.vmem [resolvable:$true] %s518
          %524 = dma.hbm_to_vmem [thread:$0]  %s12, 512, %s519, [#allocation22], 64, 64, 4
        $region56: #{tpu_custom_call.1} parent=11 // pred_fallthru
          _
        // Predicated region
        $region57: #{tpu_custom_call.1} parent=11 // pred_check
          %p525 = pneg %p353
        $region58: #{tpu_custom_call.1} parent=11 // pred_check_branch
          %527 = sbr.rel (%p525) target = $region60
        $region59: #{tpu_custom_call.1} parent=11 // pred_region
          %s529 = ssub.s32 16, 16
          %530 = vsyncadd [#allocation25], %s529
          %s532 = sshll.u32 [#allocation24], 4
          %s533 = int_to_ptr.vmem [resolvable:$true] %s532
          %535 = dma.hbm_to_vmem [thread:$0]  %s13, 16, %s533, [#allocation25]
        $region60: #{tpu_custom_call.1} parent=11 // pred_fallthru
          _
      $region12: #{tpu_custom_call.1} parent=5 // pred_fallthru
        _
      %p536 = scmp.lt.s32.totalorder %s35, 2
      // Predicated region
      $region61: #{tpu_custom_call.1} parent=5 // pred_check
        %p537 = pneg %p536
      $region62: #{tpu_custom_call.1} parent=5 // pred_check_branch
        %539 = sbr.rel (%p537) target = $region64
      $region63: #{tpu_custom_call.1} parent=5 // pred_region
        // Predicated region
        $region65: #{tpu_custom_call.1} parent=63 // pred_check
          %p540 = pneg %p67
        $region66: #{tpu_custom_call.1} parent=63 // pred_check_branch
          %542 = sbr.rel (%p540) target = $region68
        $region67: #{tpu_custom_call.1} parent=63 // pred_region
          %s543 = sand.u32 %s57, 1
          %s544 = scalar_lea.sflag [#allocation4], %s543
          %s545 = sand.u32 %s57, 1
          %s546 = smul.addr %s545, 8
          %s547 = scalar_lea.vmem [#allocation3], %s546
          %s549 = ssub.s32 128, 128
          %550 = vsyncadd %s544, %s549
          %s551 = smul.addr %s42, 128
          %s552 = scalar_lea.hbm %s0, %s551
          %s554 = sshll.u32 %s547, 4
          %s555 = int_to_ptr.vmem [resolvable:$true] %s554
          %557 = dma.hbm_to_vmem [thread:$0]  %s552, 128, %s555, %s544
        $region68: #{tpu_custom_call.1} parent=63 // pred_fallthru
          _
        // Predicated region
        $region69: #{tpu_custom_call.1} parent=63 // pred_check
          %p558 = pneg %p95
        $region70: #{tpu_custom_call.1} parent=63 // pred_check_branch
          %560 = sbr.rel (%p558) target = $region72
        $region71: #{tpu_custom_call.1} parent=63 // pred_region
          %s561 = sand.u32 %s35, 1
          %s562 = scalar_lea.sflag [#allocation7], %s561
          %s563 = sand.u32 %s85, 1
          %s564 = smul.addr %s563, 16
          %s565 = scalar_lea.vmem [#allocation6], %s564
          %s567 = ssub.s32 256, 256
          %568 = vsyncadd %s562, %s567
          %s569 = smul.addr %s42, 4
          %s570 = sadd.s32 %s43, %s569
          %s571 = smul.addr %s570, 64
          %s572 = scalar_lea.hbm %s1, %s571
          %s573 = sshll.u32 %s565, 4
          %s574 = int_to_ptr.vmem [resolvable:$true] %s573
          %579 = dma.hbm_to_vmem [thread:$0]  %s572, 256, %s574, %s562, 64, 64, 4
        $region72: #{tpu_custom_call.1} parent=63 // pred_fallthru
          _
      $region64: #{tpu_custom_call.1} parent=5 // pred_fallthru
        _
      %p580 = scmp.le.s32.totalorder 1, %s35
      %p581 = scmp.lt.s32.totalorder %s35, 3
      %p582 = pnand %p580, %p581
      %p583 = pneg %p582
      // Predicated region
      $region73: #{tpu_custom_call.1} parent=5 // pred_check
        _
      $region74: #{tpu_custom_call.1} parent=5 // pred_check_branch
        %585 = sbr.rel (%p582) target = $region76
      $region75: #{tpu_custom_call.1} parent=5 // pred_region
        %s586 = ssub.s32 %s35, 1
        %s587 = sand.u32 %s60, 1
        %s588 = scalar_lea.sflag [#allocation4], %s587
        %s589 = sand.u32 %s60, 1
        %s590 = smul.addr %s589, 8
        %s591 = scalar_lea.vmem [#allocation3], %s590
        // Predicated region
        $region77: #{tpu_custom_call.1} parent=75 // pred_check
          %p592 = pneg %p73
        $region78: #{tpu_custom_call.1} parent=75 // pred_check_branch
          %594 = sbr.rel (%p592) target = $region80
        $region79: #{tpu_custom_call.1} parent=75 // pred_region
          %595 = dma.done %s588, 128
        $region80: #{tpu_custom_call.1} parent=75 // pred_fallthru
          _
        %s596 = sand.u32 %s40, 1
        %s597 = scalar_lea.sflag [#allocation7], %s596
        %s598 = sand.u32 %s88, 1
        %s599 = smul.addr %s598, 16
        %s600 = scalar_lea.vmem [#allocation6], %s599
        // Predicated region
        $region81: #{tpu_custom_call.1} parent=75 // pred_check
          %p601 = pneg %p101
        $region82: #{tpu_custom_call.1} parent=75 // pred_check_branch
          %603 = sbr.rel (%p601) target = $region84
        $region83: #{tpu_custom_call.1} parent=75 // pred_region
          %604 = dma.done %s597, 256
        $region84: #{tpu_custom_call.1} parent=75 // pred_fallthru
          _
        // Predicated region
        $region85: #{tpu_custom_call.1} parent=75 // pred_check
          %p605 = pneg %p122
        $region86: #{tpu_custom_call.1} parent=75 // pred_check_branch
          %607 = sbr.rel (%p605) target = $region88
        $region87: #{tpu_custom_call.1} parent=75 // pred_region
          %608 = dma.done [#allocation7], 16
        $region88: #{tpu_custom_call.1} parent=75 // pred_fallthru
          _
        // Predicated region
        $region89: #{tpu_custom_call.1} parent=75 // pred_check
          %p609 = pneg %p143
        $region90: #{tpu_custom_call.1} parent=75 // pred_check_branch
          %611 = sbr.rel (%p609) target = $region92
        $region91: #{tpu_custom_call.1} parent=75 // pred_region
          %612 = dma.done [#allocation10], 16
        $region92: #{tpu_custom_call.1} parent=75 // pred_fallthru
          _
        // Predicated region
        $region93: #{tpu_custom_call.1} parent=75 // pred_check
          %p613 = pneg %p164
        $region94: #{tpu_custom_call.1} parent=75 // pred_check_branch
          %615 = sbr.rel (%p613) target = $region96
        $region95: #{tpu_custom_call.1} parent=75 // pred_region
          %616 = dma.done [#allocation10], 256
        $region96: #{tpu_custom_call.1} parent=75 // pred_fallthru
          _
        // Predicated region
        $region97: #{tpu_custom_call.1} parent=75 // pred_check
          %p617 = pneg %p185
        $region98: #{tpu_custom_call.1} parent=75 // pred_check_branch
          %619 = sbr.rel (%p617) target = $region100
        $region99: #{tpu_custom_call.1} parent=75 // pred_region
          %620 = dma.done [#allocation13], 16
        $region100: #{tpu_custom_call.1} parent=75 // pred_fallthru
          _
        // Predicated region
        $region101: #{tpu_custom_call.1} parent=75 // pred_check
          %p621 = pneg %p206
        $region102: #{tpu_custom_call.1} parent=75 // pred_check_branch
          %623 = sbr.rel (%p621) target = $region104
        $region103: #{tpu_custom_call.1} parent=75 // pred_region
          %624 = dma.done [#allocation13], 256
        $region104: #{tpu_custom_call.1} parent=75 // pred_fallthru
          _
        // Predicated region
        $region105: #{tpu_custom_call.1} parent=75 // pred_check
          %p625 = pneg %p227
        $region106: #{tpu_custom_call.1} parent=75 // pred_check_branch
          %627 = sbr.rel (%p625) target = $region108
        $region107: #{tpu_custom_call.1} parent=75 // pred_region
          %628 = dma.done [#allocation16], 16
        $region108: #{tpu_custom_call.1} parent=75 // pred_fallthru
          _
        // Predicated region
        $region109: #{tpu_custom_call.1} parent=75 // pred_check
          %p629 = pneg %p248
        $region110: #{tpu_custom_call.1} parent=75 // pred_check_branch
          %631 = sbr.rel (%p629) target = $region112
        $region111: #{tpu_custom_call.1} parent=75 // pred_region
          %632 = dma.done [#allocation16], 16
        $region112: #{tpu_custom_call.1} parent=75 // pred_fallthru
          _
        // Predicated region
        $region113: #{tpu_custom_call.1} parent=75 // pred_check
          %p633 = pneg %p269
        $region114: #{tpu_custom_call.1} parent=75 // pred_check_branch
          %635 = sbr.rel (%p633) target = $region116
        $region115: #{tpu_custom_call.1} parent=75 // pred_region
          %636 = dma.done [#allocation19], 16
        $region116: #{tpu_custom_call.1} parent=75 // pred_fallthru
          _
        // Predicated region
        $region117: #{tpu_custom_call.1} parent=75 // pred_check
          %p637 = pneg %p290
        $region118: #{tpu_custom_call.1} parent=75 // pred_check_branch
          %639 = sbr.rel (%p637) target = $region120
        $region119: #{tpu_custom_call.1} parent=75 // pred_region
          %640 = dma.done [#allocation19], 256
        $region120: #{tpu_custom_call.1} parent=75 // pred_fallthru
          _
        // Predicated region
        $region121: #{tpu_custom_call.1} parent=75 // pred_check
          %p641 = pneg %p311
        $region122: #{tpu_custom_call.1} parent=75 // pred_check_branch
          %643 = sbr.rel (%p641) target = $region124
        $region123: #{tpu_custom_call.1} parent=75 // pred_region
          %644 = dma.done [#allocation22], 16
        $region124: #{tpu_custom_call.1} parent=75 // pred_fallthru
          _
        // Predicated region
        $region125: #{tpu_custom_call.1} parent=75 // pred_check
          %p645 = pneg %p332
        $region126: #{tpu_custom_call.1} parent=75 // pred_check_branch
          %647 = sbr.rel (%p645) target = $region128
        $region127: #{tpu_custom_call.1} parent=75 // pred_region
          %648 = dma.done [#allocation22], 512
        $region128: #{tpu_custom_call.1} parent=75 // pred_fallthru
          _
        // Predicated region
        $region129: #{tpu_custom_call.1} parent=75 // pred_check
          %p649 = pneg %p353
        $region130: #{tpu_custom_call.1} parent=75 // pred_check_branch
          %651 = sbr.rel (%p649) target = $region132
        $region131: #{tpu_custom_call.1} parent=75 // pred_region
          %652 = dma.done [#allocation25], 16
        $region132: #{tpu_custom_call.1} parent=75 // pred_fallthru
          _
        %s653 = sand.u32 %s60, 1
        %s654 = scalar_lea.sflag [#allocation4], %s653
        %s655 = sand.u32 %s60, 1
        %s656 = smul.addr %s655, 8
        %s657 = scalar_lea.vmem [#allocation3], %s656
        %p658 = pneg %p73
        %p659 = pneg %p70
        %s660 = sand.u32 %s40, 1
        %s661 = scalar_lea.sflag [#allocation7], %s660
        %s662 = sand.u32 %s88, 1
        %s663 = smul.addr %s662, 16
        %s664 = scalar_lea.vmem [#allocation6], %s663
        %p665 = pneg %p101
        %p666 = pneg %p98
        %p667 = pneg %p122
        %p668 = pneg %p119
        %p669 = pneg %p143
        %p670 = pneg %p140
        %p671 = pneg %p164
        %p672 = pneg %p161
        %p673 = pneg %p185
        %p674 = pneg %p182
        %p675 = pneg %p206
        %p676 = pneg %p203
        %p677 = pneg %p227
        %p678 = pneg %p224
        %p679 = pneg %p248
        %p680 = pneg %p245
        %p681 = pneg %p269
        %p682 = pneg %p266
        %p683 = pneg %p290
        %p684 = pneg %p287
        %p685 = pneg %p311
        %p686 = pneg %p308
        %p687 = pneg %p332
        %p688 = pneg %p329
        %p689 = pneg %p353
        %p690 = pneg %p350
        %p691 = pneg %p381
        %p692 = pneg %p378
        %s693 = sand.u32 %s368, 1
        %s694 = scalar_lea.sflag [#allocation5], %s693
        %s695 = sand.u32 %s368, 1
        %s696 = smul.addr %s695, 8
        %s697 = scalar_lea.vmem [#allocation26], %s696
        %s699 = smul.u32 %s45, 8
        %p700 = scmp.eq.s32.totalorder %s45, 0
        // Predicated region
        $region133: #{tpu_custom_call.1} parent=75 // pred_check
          %p701 = pneg %p700
        $region134: #{tpu_custom_call.1} parent=75 // pred_check_branch
          %703 = sbr.rel (%p701) target = $region136
        $region135: #{tpu_custom_call.1} parent=75 // pred_region
          %v704 = vld [vmem:[%s591] sm:$0xff]
          %v705 = vld [vmem:[#allocation8] sm:$0x1]
          %v706 = vld [vmem:[#allocation9] sm:$0x1]
          %vm707 = vcmask 261120
          %v708 = vsel %vm707, %v704, 0.0
          %709 = vadd.xlane.f32.xlu0 %v708
          %v710 = vpop.xlane.xlu0 %709
          %v711 = vrcp.pop 32.0
          %v712 = vmul.f32 %v710, %v711
          %v713 = vsub.f32 %v704, %v712
          %v714 = vmul.f32 %v713, %v713
          %v715 = vsel %vm707, %v714, 0.0
          %716 = vadd.xlane.f32.xlu0 %v715
          %v717 = vpop.xlane.xlu0 %716
          %v718 = vmul.f32 %v717, %v711
          %v719 = vadd.f32 %v718, 1e-05
          %v720 = vrsqrt.pop %v719
          %v721 = vmul.f32 %v713, %v720
          %v723 = vlaneseq
          %v724 = vshrl.u32 %v723, 7
          %v725 = vsub.s32 0, %v724
          %v726 = vrot.slane %v705, %v725
          %v728 = vmul.f32 %v721, %v726
          %v730 = vlaneseq
          %v731 = vshrl.u32 %v730, 7
          %v732 = vsub.s32 0, %v731
          %v733 = vrot.slane %v706, %v732
          %v735 = vadd.f32 %v728, %v733
          %v736 = vpack.c.bf16 %v735, %v735
          %v737 = vld [vmem:[#allocation11] sm:$0xf]
          %v738 = vld [vmem:[#allocation11 + $0x4] sm:$0xf]
          %v739 = vld [vmem:[#allocation11 + $0x8] sm:$0xf]
          %v740 = vld [vmem:[#allocation11 + $0xc] sm:$0xf]
          %v741 = vld [vmem:[#allocation12] sm:$0x1]
          %v743 = vlaneseq
          %v744 = vshrl.u32 %v743, 7
          %v745 = vsub.s32 0, %v744
          %v746 = vrot.slane %v741, %v745
          %v752 = vunpack.c.l.b16 %v737
          %v753 = vunpack.c.l.b16 %v738
          %v754 = vunpack.c.l.b16 %v739
          %v755 = vunpack.c.l.b16 %v740
          %v756 = vpack.c.b16 %v753, %v752
          %v757 = vpack.c.b16 %v755, %v754
          %v761 = vsel %vm707, %v736, 0
          %763 = vmatprep.subr.bf16.mxu0 0
          %764 = vmatpush1.bf16.msra.mxu0 %v756
          %765 = vmatprep.subr.bf16.mxu0 0
          %766 = vmatpush1.bf16.msra.mxu0 %v757
          %767 = vmatprep.subr.bf16.mxu0 0
          %768 = vmatpush1.bf16.msra.mxu0 0
          %769 = vmatprep.subr.bf16.mxu0 0
          %770 = vmatpush1.bf16.msra.mxu0 0
          %771 = vmatprep.subr.bf16.mxu0 0
          %772 = vmatpush1.bf16.msra.mxu0 0
          %773 = vmatprep.subr.bf16.mxu0 0
          %774 = vmatpush1.bf16.msra.mxu0 0
          %775 = vmatprep.subr.bf16.mxu0 0
          %776 = vmatpush1.bf16.msra.mxu0 0
          %777 = vmatprep.subr.bf16.mxu0 0
          %778 = vmatpush1.bf16.msra.mxu0 0
          %779 = vmatprep.subr.bf16.mxu0 0
          %780 = vmatpush1.bf16.msra.mxu0 0
          %781 = vmatprep.subr.bf16.mxu0 0
          %782 = vmatpush1.bf16.msra.mxu0 0
          %783 = vmatprep.subr.bf16.mxu0 0
          %784 = vmatpush1.bf16.msra.mxu0 0
          %785 = vmatprep.subr.bf16.mxu0 0
          %786 = vmatpush1.bf16.msra.mxu0 0
          %787 = vmatprep.subr.bf16.mxu0 0
          %788 = vmatpush1.bf16.msra.mxu0 0
          %789 = vmatprep.subr.bf16.mxu0 0
          %790 = vmatpush1.bf16.msra.mxu0 0
          %791 = vmatprep.subr.bf16.mxu0 0
          %792 = vmatpush1.bf16.msra.mxu0 0
          %793 = vmatprep.subr.bf16.mxu0 0
          %794 = vmatpush1.bf16.msra.mxu0 0
          %795 = vmatprep.mubr.bf16.mxu0 0
          %796 = vmatmul.mubr.bf16.gmra.mrb[0].mxu0 %v761
          %v797 = vpop.f32.mrb[0].mxu0
          %v798 = vadd.f32 %v746, %v797
          %v799 = vpop.f32.mrb[0].mxu0
          %v800 = vpop.f32.mrb[0].mxu0
          %v801 = vpop.f32.mrb[0].mxu0
          %802 = vdwg.mxu0
          %v803 = vpack.c.bf16 %v798, %v798
          %vm804 = vcmask 257024
          %805 = vst.msk [vmem:[#allocation2] sm:$0xf] %vm804, %v803
          %v807 = vunpack.c.l.b16 %v803
          %v808 = vpack.c.b16 %v807, %v807
          %809 = vrot.lane.b32.xlu0 %v808, 96
          %v810 = vpop.permute.xlu0 %809
          %s812 = scalar_lea.vmem [#allocation2], 4
          %813 = vst.msk [vmem:[%s812] sm:$0xf] %vm804, %v810
          %814 = vrot.lane.b32.xlu0 %v808, 64
          %v815 = vpop.permute.xlu0 %814
          %s817 = scalar_lea.vmem [#allocation2], 8
          %818 = vst.msk [vmem:[%s817] sm:$0xf] %vm804, %v815
        $region136: #{tpu_custom_call.1} parent=75 // pred_fallthru
          _
        %s819 = sshra.s32 %s699, 3
        %s820 = sand.u32 %s699, 7
        %s821 = smul.addr %s819, 4
        %s822 = scalar_lea.vmem [#allocation2], %s821
        %v823 = vld [vmem:[%s822] sm:$0xf]
        %s824 = scalar_lea.vmem [#allocation2], 4
        %v825 = vld [vmem:[%s824] sm:$0xf]
        %s826 = scalar_lea.vmem [#allocation2], 8
        %v827 = vld [vmem:[%s826] sm:$0xf]
        %v828 = vld [vmem:[%s600] sm:$0xf]
        %v829 = vunpack.c.l.bf16 %v828
        %vm830 = vcmask 64512
        %v832 = vsel %vm830, %v823, 0
        %v835 = vsel %vm830, %v825, 0
        %837 = vmatprep.subr.bf16.mxu0 0
        %838 = vmatpush1.bf16.xpose.msra.mxu0 %v835
        %839 = vmatprep.subr.bf16.mxu0 0
        %840 = vmatpush1.bf16.xpose.msra.mxu0 0
        %841 = vmatprep.subr.bf16.mxu0 0
        %842 = vmatpush1.bf16.xpose.msra.mxu0 0
        %843 = vmatprep.subr.bf16.mxu0 0
        %844 = vmatpush1.bf16.xpose.msra.mxu0 0
        %845 = vmatprep.subr.bf16.mxu0 0
        %846 = vmatpush1.bf16.xpose.msra.mxu0 0
        %847 = vmatprep.subr.bf16.mxu0 0
        %848 = vmatpush1.bf16.xpose.msra.mxu0 0
        %849 = vmatprep.subr.bf16.mxu0 0
        %850 = vmatpush1.bf16.xpose.msra.mxu0 0
        %851 = vmatprep.subr.bf16.mxu0 0
        %852 = vmatpush1.bf16.xpose.msra.mxu0 0
        %853 = vmatprep.subr.bf16.mxu0 0
        %854 = vmatpush1.bf16.xpose.msra.mxu0 0
        %855 = vmatprep.subr.bf16.mxu0 0
        %856 = vmatpush1.bf16.xpose.msra.mxu0 0
        %857 = vmatprep.subr.bf16.mxu0 0
        %858 = vmatpush1.bf16.xpose.msra.mxu0 0
        %859 = vmatprep.subr.bf16.mxu0 0
        %860 = vmatpush1.bf16.xpose.msra.mxu0 0
        %861 = vmatprep.subr.bf16.mxu0 0
        %862 = vmatpush1.bf16.xpose.msra.mxu0 0
        %863 = vmatprep.subr.bf16.mxu0 0
        %864 = vmatpush1.bf16.xpose.msra.mxu0 0
        %865 = vmatprep.subr.bf16.mxu0 0
        %866 = vmatpush1.bf16.xpose.msra.mxu0 0
        %867 = vmatprep.subr.bf16.mxu0 0
        %868 = vmatpush1.bf16.xpose.msra.mxu0 0
        %869 = vmatprep.mubr.bf16.mxu0 0
        %870 = vmatmul.mubr.bf16.gmra.mrb[0].mxu0 %v832
        %v871 = vpop.f32.mrb[0].mxu0
        %v872 = vadd.f32 %v829, %v871
        %v873 = vpop.f32.mrb[0].mxu0
        %v874 = vpop.f32.mrb[0].mxu0
        %v875 = vpop.f32.mrb[0].mxu0
        %876 = vdwg.mxu0
        %v877 = vsel %vm830, %v872, -inf
        %878 = vmax.xlane.f32.xlu0 %v877
        %v879 = vpop.xlane.xlu0 %878
        %v880 = vsub.f32 %v872, %v879
        %v881 = vmul.f32 %v880, 1.442695
        %v882 = vpow.pop %v881
        %v883 = vsel %vm830, %v882, 0.0
        %884 = vadd.xlane.f32.xlu0 %v883
        %v885 = vpop.xlane.xlu0 %884
        %v886 = vpack.c.bf16 %v882, %v882
        %v888 = vsel %vm830, %v886, 0
        %vm890 = vcmask 1043456
        %v892 = vsel %vm890, %v827, 0
        %894 = vmatprep.subr.bf16.mxu0 0
        %895 = vmatpush1.bf16.msra.mxu0 %v892
        %896 = vmatprep.subr.bf16.mxu0 0
        %897 = vmatpush1.bf16.msra.mxu0 0
        %898 = vmatprep.subr.bf16.mxu0 0
        %899 = vmatpush1.bf16.msra.mxu0 0
        %900 = vmatprep.subr.bf16.mxu0 0
        %901 = vmatpush1.bf16.msra.mxu0 0
        %902 = vmatprep.subr.bf16.mxu0 0
        %903 = vmatpush1.bf16.msra.mxu0 0
        %904 = vmatprep.subr.bf16.mxu0 0
        %905 = vmatpush1.bf16.msra.mxu0 0
        %906 = vmatprep.subr.bf16.mxu0 0
        %907 = vmatpush1.bf16.msra.mxu0 0
        %908 = vmatprep.subr.bf16.mxu0 0
        %909 = vmatpush1.bf16.msra.mxu0 0
        %910 = vmatprep.subr.bf16.mxu0 0
        %911 = vmatpush1.bf16.msra.mxu0 0
        %912 = vmatprep.subr.bf16.mxu0 0
        %913 = vmatpush1.bf16.msra.mxu0 0
        %914 = vmatprep.subr.bf16.mxu0 0
        %915 = vmatpush1.bf16.msra.mxu0 0
        %916 = vmatprep.subr.bf16.mxu0 0
        %917 = vmatpush1.bf16.msra.mxu0 0
        %918 = vmatprep.subr.bf16.mxu0 0
        %919 = vmatpush1.bf16.msra.mxu0 0
        %920 = vmatprep.subr.bf16.mxu0 0
        %921 = vmatpush1.bf16.msra.mxu0 0
        %922 = vmatprep.subr.bf16.mxu0 0
        %923 = vmatpush1.bf16.msra.mxu0 0
        %924 = vmatprep.subr.bf16.mxu0 0
        %925 = vmatpush1.bf16.msra.mxu0 0
        %926 = vmatprep.mubr.bf16.mxu0 0
        %927 = vmatmul.mubr.bf16.gmra.mrb[0].mxu0 %v888
        %v928 = vpop.f32.mrb[0].mxu0
        %v929 = vadd.f32 0.0, %v928
        %v930 = vpop.f32.mrb[0].mxu0
        %v931 = vpop.f32.mrb[0].mxu0
        %v932 = vpop.f32.mrb[0].mxu0
        %933 = vdwg.mxu0
        %v934 = vrcp.pop %v885
        %v935 = vmul.f32 %v929, %v934
        %s936 = scalar_lea.vmem %s600, 4 [#allocation6]
        %v937 = vld [vmem:[%s936] sm:$0xf]
        %v938 = vunpack.c.l.bf16 %v937
        %v940 = vunpack.c.l.b16 %v823
        %v941 = vpack.c.b16 %v940, %v940
        %942 = vrot.lane.b32.xlu0 %v941, 120
        %v943 = vpop.permute.xlu0 %942
        %v945 = vunpack.c.l.b16 %v825
        %v946 = vpack.c.b16 %v945, %v945
        %947 = vrot.lane.b32.xlu0 %v946, 120
        %v948 = vpop.permute.xlu0 %947
        %v950 = vsel %vm830, %v943, 0
        %v953 = vsel %vm830, %v948, 0
        %955 = vmatprep.subr.bf16.mxu0 0
        %956 = vmatpush1.bf16.xpose.msra.mxu0 %v953
        %957 = vmatprep.subr.bf16.mxu0 0
        %958 = vmatpush1.bf16.xpose.msra.mxu0 0
        %959 = vmatprep.subr.bf16.mxu0 0
        %960 = vmatpush1.bf16.xpose.msra.mxu0 0
        %961 = vmatprep.subr.bf16.mxu0 0
        %962 = vmatpush1.bf16.xpose.msra.mxu0 0
        %963 = vmatprep.subr.bf16.mxu0 0
        %964 = vmatpush1.bf16.xpose.msra.mxu0 0
        %965 = vmatprep.subr.bf16.mxu0 0
        %966 = vmatpush1.bf16.xpose.msra.mxu0 0
        %967 = vmatprep.subr.bf16.mxu0 0
        %968 = vmatpush1.bf16.xpose.msra.mxu0 0
        %969 = vmatprep.subr.bf16.mxu0 0
        %970 = vmatpush1.bf16.xpose.msra.mxu0 0
        %971 = vmatprep.subr.bf16.mxu0 0
        %972 = vmatpush1.bf16.xpose.msra.mxu0 0
        %973 = vmatprep.subr.bf16.mxu0 0
        %974 = vmatpush1.bf16.xpose.msra.mxu0 0
        %975 = vmatprep.subr.bf16.mxu0 0
        %976 = vmatpush1.bf16.xpose.msra.mxu0 0
        %977 = vmatprep.subr.bf16.mxu0 0
        %978 = vmatpush1.bf16.xpose.msra.mxu0 0
        %979 = vmatprep.subr.bf16.mxu0 0
        %980 = vmatpush1.bf16.xpose.msra.mxu0 0
        %981 = vmatprep.subr.bf16.mxu0 0
        %982 = vmatpush1.bf16.xpose.msra.mxu0 0
        %983 = vmatprep.subr.bf16.mxu0 0
        %984 = vmatpush1.bf16.xpose.msra.mxu0 0
        %985 = vmatprep.subr.bf16.mxu0 0
        %986 = vmatpush1.bf16.xpose.msra.mxu0 0
        %987 = vmatprep.mubr.bf16.mxu0 0
        %988 = vmatmul.mubr.bf16.gmra.mrb[0].mxu0 %v950
        %v989 = vpop.f32.mrb[0].mxu0
        %v990 = vadd.f32 %v938, %v989
        %v991 = vpop.f32.mrb[0].mxu0
        %v992 = vpop.f32.mrb[0].mxu0
        %v993 = vpop.f32.mrb[0].mxu0
        %994 = vdwg.mxu0
        %v995 = vsel %vm830, %v990, -inf
        %996 = vmax.xlane.f32.xlu0 %v995
        %v997 = vpop.xlane.xlu0 %996
        %v998 = vsub.f32 %v990, %v997
        %v999 = vmul.f32 %v998, 1.442695
        %v1000 = vpow.pop %v999
        %v1001 = vsel %vm830, %v1000, 0.0
        %1002 = vadd.xlane.f32.xlu0 %v1001
        %v1003 = vpop.xlane.xlu0 %1002
        %v1004 = vpack.c.bf16 %v1000, %v1000
        %v1006 = vunpack.c.l.b16 %v827
        %v1007 = vpack.c.b16 %v1006, %v1006
        %1008 = vrot.lane.b32.xlu0 %v1007, 120
        %v1009 = vpop.permute.xlu0 %1008
        %v1011 = vsel %vm830, %v1004, 0
        %v1014 = vsel %vm890, %v1009, 0
        %1016 = vmatprep.subr.bf16.mxu0 0
        %1017 = vmatpush1.bf16.msra.mxu0 %v1014
        %1018 = vmatprep.subr.bf16.mxu0 0
        %1019 = vmatpush1.bf16.msra.mxu0 0
        %1020 = vmatprep.subr.bf16.mxu0 0
        %1021 = vmatpush1.bf16.msra.mxu0 0
        %1022 = vmatprep.subr.bf16.mxu0 0
        %1023 = vmatpush1.bf16.msra.mxu0 0
        %1024 = vmatprep.subr.bf16.mxu0 0
        %1025 = vmatpush1.bf16.msra.mxu0 0
        %1026 = vmatprep.subr.bf16.mxu0 0
        %1027 = vmatpush1.bf16.msra.mxu0 0
        %1028 = vmatprep.subr.bf16.mxu0 0
        %1029 = vmatpush1.bf16.msra.mxu0 0
        %1030 = vmatprep.subr.bf16.mxu0 0
        %1031 = vmatpush1.bf16.msra.mxu0 0
        %1032 = vmatprep.subr.bf16.mxu0 0
        %1033 = vmatpush1.bf16.msra.mxu0 0
        %1034 = vmatprep.subr.bf16.mxu0 0
        %1035 = vmatpush1.bf16.msra.mxu0 0
        %1036 = vmatprep.subr.bf16.mxu0 0
        %1037 = vmatpush1.bf16.msra.mxu0 0
        %1038 = vmatprep.subr.bf16.mxu0 0
        %1039 = vmatpush1.bf16.msra.mxu0 0
        %1040 = vmatprep.subr.bf16.mxu0 0
        %1041 = vmatpush1.bf16.msra.mxu0 0
        %1042 = vmatprep.subr.bf16.mxu0 0
        %1043 = vmatpush1.bf16.msra.mxu0 0
        %1044 = vmatprep.subr.bf16.mxu0 0
        %1045 = vmatpush1.bf16.msra.mxu0 0
        %1046 = vmatprep.subr.bf16.mxu0 0
        %1047 = vmatpush1.bf16.msra.mxu0 0
        %1048 = vmatprep.mubr.bf16.mxu0 0
        %1049 = vmatmul.mubr.bf16.gmra.mrb[0].mxu0 %v1011
        %v1050 = vpop.f32.mrb[0].mxu0
        %v1051 = vadd.f32 0.0, %v1050
        %v1052 = vpop.f32.mrb[0].mxu0
        %v1053 = vpop.f32.mrb[0].mxu0
        %v1054 = vpop.f32.mrb[0].mxu0
        %1055 = vdwg.mxu0
        %v1056 = vrcp.pop %v1003
        %v1057 = vmul.f32 %v1051, %v1056
        %s1058 = scalar_lea.vmem %s600, 8 [#allocation6]
        %v1059 = vld [vmem:[%s1058] sm:$0xf]
        %v1060 = vunpack.c.l.bf16 %v1059
        %1061 = vrot.lane.b32.xlu0 %v941, 112
        %v1062 = vpop.permute.xlu0 %1061
        %1063 = vrot.lane.b32.xlu0 %v946, 112
        %v1064 = vpop.permute.xlu0 %1063
        %v1066 = vsel %vm830, %v1062, 0
        %v1069 = vsel %vm830, %v1064, 0
        %1071 = vmatprep.subr.bf16.mxu0 0
        %1072 = vmatpush1.bf16.xpose.msra.mxu0 %v1069
        %1073 = vmatprep.subr.bf16.mxu0 0
        %1074 = vmatpush1.bf16.xpose.msra.mxu0 0
        %1075 = vmatprep.subr.bf16.mxu0 0
        %1076 = vmatpush1.bf16.xpose.msra.mxu0 0
        %1077 = vmatprep.subr.bf16.mxu0 0
        %1078 = vmatpush1.bf16.xpose.msra.mxu0 0
        %1079 = vmatprep.subr.bf16.mxu0 0
        %1080 = vmatpush1.bf16.xpose.msra.mxu0 0
        %1081 = vmatprep.subr.bf16.mxu0 0
        %1082 = vmatpush1.bf16.xpose.msra.mxu0 0
        %1083 = vmatprep.subr.bf16.mxu0 0
        %1084 = vmatpush1.bf16.xpose.msra.mxu0 0
        %1085 = vmatprep.subr.bf16.mxu0 0
        %1086 = vmatpush1.bf16.xpose.msra.mxu0 0
        %1087 = vmatprep.subr.bf16.mxu0 0
        %1088 = vmatpush1.bf16.xpose.msra.mxu0 0
        %1089 = vmatprep.subr.bf16.mxu0 0
        %1090 = vmatpush1.bf16.xpose.msra.mxu0 0
        %1091 = vmatprep.subr.bf16.mxu0 0
        %1092 = vmatpush1.bf16.xpose.msra.mxu0 0
        %1093 = vmatprep.subr.bf16.mxu0 0
        %1094 = vmatpush1.bf16.xpose.msra.mxu0 0
        %1095 = vmatprep.subr.bf16.mxu0 0
        %1096 = vmatpush1.bf16.xpose.msra.mxu0 0
        %1097 = vmatprep.subr.bf16.mxu0 0
        %1098 = vmatpush1.bf16.xpose.msra.mxu0 0
        %1099 = vmatprep.subr.bf16.mxu0 0
        %1100 = vmatpush1.bf16.xpose.msra.mxu0 0
        %1101 = vmatprep.subr.bf16.mxu0 0
        %1102 = vmatpush1.bf16.xpose.msra.mxu0 0
        %1103 = vmatprep.mubr.bf16.mxu0 0
        %1104 = vmatmul.mubr.bf16.gmra.mrb[0].mxu0 %v1066
        %v1105 = vpop.f32.mrb[0].mxu0
        %v1106 = vadd.f32 %v1060, %v1105
        %v1107 = vpop.f32.mrb[0].mxu0
        %v1108 = vpop.f32.mrb[0].mxu0
        %v1109 = vpop.f32.mrb[0].mxu0
        %1110 = vdwg.mxu0
        %v1111 = vsel %vm830, %v1106, -inf
        %1112 = vmax.xlane.f32.xlu0 %v1111
        %v1113 = vpop.xlane.xlu0 %1112
        %v1114 = vsub.f32 %v1106, %v1113
        %v1115 = vmul.f32 %v1114, 1.442695
        %v1116 = vpow.pop %v1115
        %v1117 = vsel %vm830, %v1116, 0.0
        %1118 = vadd.xlane.f32.xlu0 %v1117
        %v1119 = vpop.xlane.xlu0 %1118
        %v1120 = vpack.c.bf16 %v1116, %v1116
        %1121 = vrot.lane.b32.xlu0 %v1007, 112
        %v1122 = vpop.permute.xlu0 %1121
        %v1124 = vsel %vm830, %v1120, 0
        %v1127 = vsel %vm890, %v1122, 0
        %1129 = vmatprep.subr.bf16.mxu0 0
        %1130 = vmatpush1.bf16.msra.mxu0 %v1127
        %1131 = vmatprep.subr.bf16.mxu0 0
        %1132 = vmatpush1.bf16.msra.mxu0 0
        %1133 = vmatprep.subr.bf16.mxu0 0
        %1134 = vmatpush1.bf16.msra.mxu0 0
        %1135 = vmatprep.subr.bf16.mxu0 0
        %1136 = vmatpush1.bf16.msra.mxu0 0
        %1137 = vmatprep.subr.bf16.mxu0 0
        %1138 = vmatpush1.bf16.msra.mxu0 0
        %1139 = vmatprep.subr.bf16.mxu0 0
        %1140 = vmatpush1.bf16.msra.mxu0 0
        %1141 = vmatprep.subr.bf16.mxu0 0
        %1142 = vmatpush1.bf16.msra.mxu0 0
        %1143 = vmatprep.subr.bf16.mxu0 0
        %1144 = vmatpush1.bf16.msra.mxu0 0
        %1145 = vmatprep.subr.bf16.mxu0 0
        %1146 = vmatpush1.bf16.msra.mxu0 0
        %1147 = vmatprep.subr.bf16.mxu0 0
        %1148 = vmatpush1.bf16.msra.mxu0 0
        %1149 = vmatprep.subr.bf16.mxu0 0
        %1150 = vmatpush1.bf16.msra.mxu0 0
        %1151 = vmatprep.subr.bf16.mxu0 0
        %1152 = vmatpush1.bf16.msra.mxu0 0
        %1153 = vmatprep.subr.bf16.mxu0 0
        %1154 = vmatpush1.bf16.msra.mxu0 0
        %1155 = vmatprep.subr.bf16.mxu0 0
        %1156 = vmatpush1.bf16.msra.mxu0 0
        %1157 = vmatprep.subr.bf16.mxu0 0
        %1158 = vmatpush1.bf16.msra.mxu0 0
        %1159 = vmatprep.subr.bf16.mxu0 0
        %1160 = vmatpush1.bf16.msra.mxu0 0
        %1161 = vmatprep.mubr.bf16.mxu0 0
        %1162 = vmatmul.mubr.bf16.gmra.mrb[0].mxu0 %v1124
        %v1163 = vpop.f32.mrb[0].mxu0
        %v1164 = vadd.f32 0.0, %v1163
        %v1165 = vpop.f32.mrb[0].mxu0
        %v1166 = vpop.f32.mrb[0].mxu0
        %v1167 = vpop.f32.mrb[0].mxu0
        %1168 = vdwg.mxu0
        %v1169 = vrcp.pop %v1119
        %v1170 = vmul.f32 %v1164, %v1169
        %s1171 = scalar_lea.vmem %s600, 12 [#allocation6]
        %v1172 = vld [vmem:[%s1171] sm:$0xf]
        %v1173 = vunpack.c.l.bf16 %v1172
        %1174 = vrot.lane.b32.xlu0 %v941, 104
        %v1175 = vpop.permute.xlu0 %1174
        %1176 = vrot.lane.b32.xlu0 %v946, 104
        %v1177 = vpop.permute.xlu0 %1176
        %v1179 = vsel %vm830, %v1175, 0
        %v1182 = vsel %vm830, %v1177, 0
        %1184 = vmatprep.subr.bf16.mxu0 0
        %1185 = vmatpush1.bf16.xpose.msra.mxu0 %v1182
        %1186 = vmatprep.subr.bf16.mxu0 0
        %1187 = vmatpush1.bf16.xpose.msra.mxu0 0
        %1188 = vmatprep.subr.bf16.mxu0 0
        %1189 = vmatpush1.bf16.xpose.msra.mxu0 0
        %1190 = vmatprep.subr.bf16.mxu0 0
        %1191 = vmatpush1.bf16.xpose.msra.mxu0 0
        %1192 = vmatprep.subr.bf16.mxu0 0
        %1193 = vmatpush1.bf16.xpose.msra.mxu0 0
        %1194 = vmatprep.subr.bf16.mxu0 0
        %1195 = vmatpush1.bf16.xpose.msra.mxu0 0
        %1196 = vmatprep.subr.bf16.mxu0 0
        %1197 = vmatpush1.bf16.xpose.msra.mxu0 0
        %1198 = vmatprep.subr.bf16.mxu0 0
        %1199 = vmatpush1.bf16.xpose.msra.mxu0 0
        %1200 = vmatprep.subr.bf16.mxu0 0
        %1201 = vmatpush1.bf16.xpose.msra.mxu0 0
        %1202 = vmatprep.subr.bf16.mxu0 0
        %1203 = vmatpush1.bf16.xpose.msra.mxu0 0
        %1204 = vmatprep.subr.bf16.mxu0 0
        %1205 = vmatpush1.bf16.xpose.msra.mxu0 0
        %1206 = vmatprep.subr.bf16.mxu0 0
        %1207 = vmatpush1.bf16.xpose.msra.mxu0 0
        %1208 = vmatprep.subr.bf16.mxu0 0
        %1209 = vmatpush1.bf16.xpose.msra.mxu0 0
        %1210 = vmatprep.subr.bf16.mxu0 0
        %1211 = vmatpush1.bf16.xpose.msra.mxu0 0
        %1212 = vmatprep.subr.bf16.mxu0 0
        %1213 = vmatpush1.bf16.xpose.msra.mxu0 0
        %1214 = vmatprep.subr.bf16.mxu0 0
        %1215 = vmatpush1.bf16.xpose.msra.mxu0 0
        %1216 = vmatprep.mubr.bf16.mxu0 0
        %1217 = vmatmul.mubr.bf16.gmra.mrb[0].mxu0 %v1179
        %v1218 = vpop.f32.mrb[0].mxu0
        %v1219 = vadd.f32 %v1173, %v1218
        %v1220 = vpop.f32.mrb[0].mxu0
        %v1221 = vpop.f32.mrb[0].mxu0
        %v1222 = vpop.f32.mrb[0].mxu0
        %1223 = vdwg.mxu0
        %v1224 = vsel %vm830, %v1219, -inf
        %1225 = vmax.xlane.f32.xlu0 %v1224
        %v1226 = vpop.xlane.xlu0 %1225
        %v1227 = vsub.f32 %v1219, %v1226
        %v1228 = vmul.f32 %v1227, 1.442695
        %v1229 = vpow.pop %v1228
        %v1230 = vsel %vm830, %v1229, 0.0
        %1231 = vadd.xlane.f32.xlu0 %v1230
        %v1232 = vpop.xlane.xlu0 %1231
        %v1233 = vpack.c.bf16 %v1229, %v1229
        %1234 = vrot.lane.b32.xlu0 %v1007, 104
        %v1235 = vpop.permute.xlu0 %1234
        %v1237 = vsel %vm830, %v1233, 0
        %v1240 = vsel %vm890, %v1235, 0
        %1242 = vmatprep.subr.bf16.mxu0 0
        %1243 = vmatpush1.bf16.msra.mxu0 %v1240
        %1244 = vmatprep.subr.bf16.mxu0 0
        %1245 = vmatpush1.bf16.msra.mxu0 0
        %1246 = vmatprep.subr.bf16.mxu0 0
        %1247 = vmatpush1.bf16.msra.mxu0 0
        %1248 = vmatprep.subr.bf16.mxu0 0
        %1249 = vmatpush1.bf16.msra.mxu0 0
        %1250 = vmatprep.subr.bf16.mxu0 0
        %1251 = vmatpush1.bf16.msra.mxu0 0
        %1252 = vmatprep.subr.bf16.mxu0 0
        %1253 = vmatpush1.bf16.msra.mxu0 0
        %1254 = vmatprep.subr.bf16.mxu0 0
        %1255 = vmatpush1.bf16.msra.mxu0 0
        %1256 = vmatprep.subr.bf16.mxu0 0
        %1257 = vmatpush1.bf16.msra.mxu0 0
        %1258 = vmatprep.subr.bf16.mxu0 0
        %1259 = vmatpush1.bf16.msra.mxu0 0
        %1260 = vmatprep.subr.bf16.mxu0 0
        %1261 = vmatpush1.bf16.msra.mxu0 0
        %1262 = vmatprep.subr.bf16.mxu0 0
        %1263 = vmatpush1.bf16.msra.mxu0 0
        %1264 = vmatprep.subr.bf16.mxu0 0
        %1265 = vmatpush1.bf16.msra.mxu0 0
        %1266 = vmatprep.subr.bf16.mxu0 0
        %1267 = vmatpush1.bf16.msra.mxu0 0
        %1268 = vmatprep.subr.bf16.mxu0 0
        %1269 = vmatpush1.bf16.msra.mxu0 0
        %1270 = vmatprep.subr.bf16.mxu0 0
        %1271 = vmatpush1.bf16.msra.mxu0 0
        %1272 = vmatprep.subr.bf16.mxu0 0
        %1273 = vmatpush1.bf16.msra.mxu0 0
        %1274 = vmatprep.mubr.bf16.mxu0 0
        %1275 = vmatmul.mubr.bf16.gmra.mrb[0].mxu0 %v1237
        %v1276 = vpop.f32.mrb[0].mxu0
        %v1277 = vadd.f32 0.0, %v1276
        %v1278 = vpop.f32.mrb[0].mxu0
        %v1279 = vpop.f32.mrb[0].mxu0
        %v1280 = vpop.f32.mrb[0].mxu0
        %1281 = vdwg.mxu0
        %v1282 = vrcp.pop %v1232
        %v1283 = vmul.f32 %v1277, %v1282
        %1285 = vrot.lane.b32.xlu0 %v1057, 8
        %v1286 = vpop.permute.xlu0 %1285
        %1289 = vrot.lane.b32.xlu0 %v1170, 16
        %v1290 = vpop.permute.xlu0 %1289
        %1293 = vrot.lane.b32.xlu0 %v1283, 24
        %v1294 = vpop.permute.xlu0 %1293
        %v1296 = vsel %vm830, %v935, %v1286
        %vm1297 = vcmask 130048
        %v1298 = vsel %vm1297, %v1296, %v1290
        %vm1299 = vcmask 195584
        %v1300 = vsel %vm1299, %v1298, %v1294
        %v1301 = vpack.c.bf16 %v1300, %v1300
        %v1302 = vld [vmem:[#allocation14] sm:$0xf]
        %v1303 = vld [vmem:[#allocation14 + $0x4] sm:$0xf]
        %v1304 = vld [vmem:[#allocation14 + $0x8] sm:$0xf]
        %v1305 = vld [vmem:[#allocation14 + $0xc] sm:$0xf]
        %v1306 = vld [vmem:[#allocation15] sm:$0x1]
        %v1308 = vlaneseq
        %v1309 = vshrl.u32 %v1308, 7
        %v1310 = vsub.s32 0, %v1309
        %v1311 = vrot.slane %v1306, %v1310
        %v1317 = vunpack.c.l.b16 %v1302
        %v1318 = vunpack.c.l.b16 %v1303
        %v1319 = vunpack.c.l.b16 %v1304
        %v1320 = vunpack.c.l.b16 %v1305
        %v1321 = vpack.c.b16 %v1318, %v1317
        %v1322 = vpack.c.b16 %v1320, %v1319
        %vm1325 = vcmask 261120
        %v1327 = vsel %vm1325, %v1301, 0
        %1329 = vmatprep.subr.bf16.mxu0 0
        %1330 = vmatpush1.bf16.msra.mxu0 %v1321
        %1331 = vmatprep.subr.bf16.mxu0 0
        %1332 = vmatpush1.bf16.msra.mxu0 %v1322
        %1333 = vmatprep.subr.bf16.mxu0 0
        %1334 = vmatpush1.bf16.msra.mxu0 0
        %1335 = vmatprep.subr.bf16.mxu0 0
        %1336 = vmatpush1.bf16.msra.mxu0 0
        %1337 = vmatprep.subr.bf16.mxu0 0
        %1338 = vmatpush1.bf16.msra.mxu0 0
        %1339 = vmatprep.subr.bf16.mxu0 0
        %1340 = vmatpush1.bf16.msra.mxu0 0
        %1341 = vmatprep.subr.bf16.mxu0 0
        %1342 = vmatpush1.bf16.msra.mxu0 0
        %1343 = vmatprep.subr.bf16.mxu0 0
        %1344 = vmatpush1.bf16.msra.mxu0 0
        %1345 = vmatprep.subr.bf16.mxu0 0
        %1346 = vmatpush1.bf16.msra.mxu0 0
        %1347 = vmatprep.subr.bf16.mxu0 0
        %1348 = vmatpush1.bf16.msra.mxu0 0
        %1349 = vmatprep.subr.bf16.mxu0 0
        %1350 = vmatpush1.bf16.msra.mxu0 0
        %1351 = vmatprep.subr.bf16.mxu0 0
        %1352 = vmatpush1.bf16.msra.mxu0 0
        %1353 = vmatprep.subr.bf16.mxu0 0
        %1354 = vmatpush1.bf16.msra.mxu0 0
        %1355 = vmatprep.subr.bf16.mxu0 0
        %1356 = vmatpush1.bf16.msra.mxu0 0
        %1357 = vmatprep.subr.bf16.mxu0 0
        %1358 = vmatpush1.bf16.msra.mxu0 0
        %1359 = vmatprep.subr.bf16.mxu0 0
        %1360 = vmatpush1.bf16.msra.mxu0 0
        %1361 = vmatprep.mubr.bf16.mxu0 0
        %1362 = vmatmul.mubr.bf16.gmra.mrb[0].mxu0 %v1327
        %v1363 = vpop.f32.mrb[0].mxu0
        %v1364 = vadd.f32 %v1311, %v1363
        %v1365 = vpop.f32.mrb[0].mxu0
        %v1366 = vpop.f32.mrb[0].mxu0
        %v1367 = vpop.f32.mrb[0].mxu0
        %1368 = vdwg.mxu0
        %s1369 = scalar_lea.vmem %s591, %s699 [#allocation3]
        %v1370 = vld [vmem:[%s1369] sm:$0xff]
        %v1371 = vadd.f32 %v1370, %v1364
        %v1372 = vld [vmem:[#allocation17] sm:$0x1]
        %v1373 = vld [vmem:[#allocation18] sm:$0x1]
        %v1374 = vsel %vm1325, %v1371, 0.0
        %1375 = vadd.xlane.f32.xlu0 %v1374
        %v1376 = vpop.xlane.xlu0 %1375
        %v1377 = vrcp.pop 32.0
        %v1378 = vmul.f32 %v1376, %v1377
        %v1379 = vsub.f32 %v1371, %v1378
        %v1380 = vmul.f32 %v1379, %v1379
        %v1381 = vsel %vm1325, %v1380, 0.0
        %1382 = vadd.xlane.f32.xlu0 %v1381
        %v1383 = vpop.xlane.xlu0 %1382
        %v1384 = vmul.f32 %v1383, %v1377
        %v1385 = vadd.f32 %v1384, 1e-05
        %v1386 = vrsqrt.pop %v1385
        %v1387 = vmul.f32 %v1379, %v1386
        %v1389 = vlaneseq
        %v1390 = vshrl.u32 %v1389, 7
        %v1391 = vsub.s32 0, %v1390
        %v1392 = vrot.slane %v1372, %v1391
        %v1394 = vmul.f32 %v1387, %v1392
        %v1396 = vlaneseq
        %v1397 = vshrl.u32 %v1396, 7
        %v1398 = vsub.s32 0, %v1397
        %v1399 = vrot.slane %v1373, %v1398
        %v1401 = vadd.f32 %v1394, %v1399
        %v1402 = vpack.c.bf16 %v1401, %v1401
        %v1403 = vld [vmem:[#allocation20] sm:$0xf]
        %v1404 = vld [vmem:[#allocation20 + $0x4] sm:$0xf]
        %v1405 = vld [vmem:[#allocation20 + $0x8] sm:$0xf]
        %v1406 = vld [vmem:[#allocation20 + $0xc] sm:$0xf]
        %v1407 = vld [vmem:[#allocation21] sm:$0x1]
        %v1409 = vlaneseq
        %v1410 = vshrl.u32 %v1409, 7
        %v1411 = vsub.s32 0, %v1410
        %v1412 = vrot.slane %v1407, %v1411
        %v1418 = vunpack.c.l.b16 %v1403
        %v1419 = vunpack.c.l.b16 %v1404
        %v1420 = vunpack.c.l.b16 %v1405
        %v1421 = vunpack.c.l.b16 %v1406
        %v1422 = vpack.c.b16 %v1419, %v1418
        %v1423 = vpack.c.b16 %v1421, %v1420
        %v1427 = vsel %vm1325, %v1402, 0
        %1429 = vmatprep.subr.bf16.mxu0 0
        %1430 = vmatpush1.bf16.msra.mxu0 %v1422
        %1431 = vmatprep.subr.bf16.mxu0 0
        %1432 = vmatpush1.bf16.msra.mxu0 %v1423
        %1433 = vmatprep.subr.bf16.mxu0 0
        %1434 = vmatpush1.bf16.msra.mxu0 0
        %1435 = vmatprep.subr.bf16.mxu0 0
        %1436 = vmatpush1.bf16.msra.mxu0 0
        %1437 = vmatprep.subr.bf16.mxu0 0
        %1438 = vmatpush1.bf16.msra.mxu0 0
        %1439 = vmatprep.subr.bf16.mxu0 0
        %1440 = vmatpush1.bf16.msra.mxu0 0
        %1441 = vmatprep.subr.bf16.mxu0 0
        %1442 = vmatpush1.bf16.msra.mxu0 0
        %1443 = vmatprep.subr.bf16.mxu0 0
        %1444 = vmatpush1.bf16.msra.mxu0 0
        %1445 = vmatprep.subr.bf16.mxu0 0
        %1446 = vmatpush1.bf16.msra.mxu0 0
        %1447 = vmatprep.subr.bf16.mxu0 0
        %1448 = vmatpush1.bf16.msra.mxu0 0
        %1449 = vmatprep.subr.bf16.mxu0 0
        %1450 = vmatpush1.bf16.msra.mxu0 0
        %1451 = vmatprep.subr.bf16.mxu0 0
        %1452 = vmatpush1.bf16.msra.mxu0 0
        %1453 = vmatprep.subr.bf16.mxu0 0
        %1454 = vmatpush1.bf16.msra.mxu0 0
        %1455 = vmatprep.subr.bf16.mxu0 0
        %1456 = vmatpush1.bf16.msra.mxu0 0
        %1457 = vmatprep.subr.bf16.mxu0 0
        %1458 = vmatpush1.bf16.msra.mxu0 0
        %1459 = vmatprep.subr.bf16.mxu0 0
        %1460 = vmatpush1.bf16.msra.mxu0 0
        %1461 = vmatprep.mubr.bf16.mxu0 0
        %1462 = vmatmul.mubr.bf16.gmra.mrb[0].mxu0 %v1427
        %v1463 = vpop.f32.mrb[0].mxu0
        %v1464 = vadd.f32 %v1412, %v1463
        %v1465 = vpop.f32.mrb[0].mxu0
        %v1466 = vpop.f32.mrb[0].mxu0
        %v1467 = vpop.f32.mrb[0].mxu0
        %1468 = vdwg.mxu0
        %v1469 = vmul.f32 %v1464, 0.5
        %v1470 = vmul.f32 %v1464, 0.044715
        %v1471 = vmul.f32 %v1470, %v1464
        %v1472 = vmul.f32 %v1471, %v1464
        %v1473 = vadd.f32 %v1464, %v1472
        %v1474 = vmul.f32 %v1473, 0.7978846
        %v1475 = vtanh.pop %v1474
        %v1476 = vadd.f32 %v1475, 1.0
        %v1477 = vmul.f32 %v1469, %v1476
        %v1478 = vpack.c.bf16 %v1477, %v1477
        %v1479 = vld [vmem:[#allocation23] sm:$0xf]
        %v1480 = vld [vmem:[#allocation23 + $0x4] sm:$0xf]
        %v1481 = vld [vmem:[#allocation23 + $0x8] sm:$0xf]
        %v1482 = vld [vmem:[#allocation23 + $0xc] sm:$0xf]
        %v1483 = vld [vmem:[#allocation23 + $0x10] sm:$0xf]
        %v1484 = vld [vmem:[#allocation23 + $0x14] sm:$0xf]
        %v1485 = vld [vmem:[#allocation23 + $0x18] sm:$0xf]
        %v1486 = vld [vmem:[#allocation23 + $0x1c] sm:$0xf]
        %v1487 = vld [vmem:[#allocation24] sm:$0x1]
        %v1489 = vlaneseq
        %v1490 = vshrl.u32 %v1489, 7
        %v1491 = vsub.s32 0, %v1490
        %v1492 = vrot.slane %v1487, %v1491
        %v1502 = vunpack.c.l.b16 %v1479
        %v1503 = vunpack.c.l.b16 %v1480
        %v1504 = vunpack.c.l.b16 %v1481
        %v1505 = vunpack.c.l.b16 %v1482
        %v1506 = vunpack.c.l.b16 %v1483
        %v1507 = vunpack.c.l.b16 %v1484
        %v1508 = vunpack.c.l.b16 %v1485
        %v1509 = vunpack.c.l.b16 %v1486
        %v1510 = vpack.c.b16 %v1503, %v1502
        %v1511 = vpack.c.b16 %v1505, %v1504
        %v1512 = vpack.c.b16 %v1507, %v1506
        %v1513 = vpack.c.b16 %v1509, %v1508
        %vm1518 = vcmask 523264
        %v1520 = vsel %vm1518, %v1478, 0
        %1522 = vmatprep.subr.bf16.mxu0 0
        %1523 = vmatpush1.bf16.msra.mxu0 %v1510
        %1524 = vmatprep.subr.bf16.mxu0 0
        %1525 = vmatpush1.bf16.msra.mxu0 %v1511
        %1526 = vmatprep.subr.bf16.mxu0 0
        %1527 = vmatpush1.bf16.msra.mxu0 %v1512
        %1528 = vmatprep.subr.bf16.mxu0 0
        %1529 = vmatpush1.bf16.msra.mxu0 %v1513
        %1530 = vmatprep.subr.bf16.mxu0 0
        %1531 = vmatpush1.bf16.msra.mxu0 0
        %1532 = vmatprep.subr.bf16.mxu0 0
        %1533 = vmatpush1.bf16.msra.mxu0 0
        %1534 = vmatprep.subr.bf16.mxu0 0
        %1535 = vmatpush1.bf16.msra.mxu0 0
        %1536 = vmatprep.subr.bf16.mxu0 0
        %1537 = vmatpush1.bf16.msra.mxu0 0
        %1538 = vmatprep.subr.bf16.mxu0 0
        %1539 = vmatpush1.bf16.msra.mxu0 0
        %1540 = vmatprep.subr.bf16.mxu0 0
        %1541 = vmatpush1.bf16.msra.mxu0 0
        %1542 = vmatprep.subr.bf16.mxu0 0
        %1543 = vmatpush1.bf16.msra.mxu0 0
        %1544 = vmatprep.subr.bf16.mxu0 0
        %1545 = vmatpush1.bf16.msra.mxu0 0
        %1546 = vmatprep.subr.bf16.mxu0 0
        %1547 = vmatpush1.bf16.msra.mxu0 0
        %1548 = vmatprep.subr.bf16.mxu0 0
        %1549 = vmatpush1.bf16.msra.mxu0 0
        %1550 = vmatprep.subr.bf16.mxu0 0
        %1551 = vmatpush1.bf16.msra.mxu0 0
        %1552 = vmatprep.subr.bf16.mxu0 0
        %1553 = vmatpush1.bf16.msra.mxu0 0
        %1554 = vmatprep.mubr.bf16.mxu0 0
        %1555 = vmatmul.mubr.bf16.gmra.mrb[0].mxu0 %v1520
        %v1556 = vpop.f32.mrb[0].mxu0
        %v1557 = vadd.f32 %v1492, %v1556
        %v1558 = vpop.f32.mrb[0].mxu0
        %v1559 = vpop.f32.mrb[0].mxu0
        %v1560 = vpop.f32.mrb[0].mxu0
        %1561 = vdwg.mxu0
        %v1562 = vadd.f32 %v1371, %v1557
        %1563 = vst.msk [vmem:[%s697] sm:$0xff] %vm1325, %v1562
        %s1564 = sand.u32 %s368, 1
        %s1565 = scalar_lea.sflag [#allocation5], %s1564
        %s1566 = sand.u32 %s368, 1
        %s1567 = smul.addr %s1566, 8
        %s1568 = scalar_lea.vmem [#allocation26], %s1567
        // Predicated region
        $region137: #{tpu_custom_call.1} parent=75 // pred_check
          %p1569 = pneg %p378
        $region138: #{tpu_custom_call.1} parent=75 // pred_check_branch
          %1571 = sbr.rel (%p1569) target = $region140
        $region139: #{tpu_custom_call.1} parent=75 // pred_region
          %s1573 = ssub.s32 128, 128
          %1574 = vsyncadd %s1565, %s1573
          %s1575 = sadd.s32 %s45, %s44
          %s1576 = smul.addr %s1575, 128
          %s1577 = scalar_lea.hbm %s14, %s1576
          %s1579 = sshll.u32 %s1568, 4
          %s1580 = int_to_ptr.vmem [resolvable:$true] %s1579
          %1582 = dma.vmem_to_hbm [thread:$0]  %s1580, 128, %s1577, %s1565
        $region140: #{tpu_custom_call.1} parent=75 // pred_fallthru
          _
      $region76: #{tpu_custom_call.1} parent=5 // pred_fallthru
        _
      %p1583 = scmp.le.s32.totalorder 2, %s35
      // Predicated region
      $region141: #{tpu_custom_call.1} parent=5 // pred_check
        %p1584 = pneg %p1583
      $region142: #{tpu_custom_call.1} parent=5 // pred_check_branch
        %1586 = sbr.rel (%p1584) target = $region144
      $region143: #{tpu_custom_call.1} parent=5 // pred_region
        %s1587 = ssub.s32 %s35, 2
        // Predicated region
        $region145: #{tpu_custom_call.1} parent=143 // pred_check
          %p1588 = pneg %p384
        $region146: #{tpu_custom_call.1} parent=143 // pred_check_branch
          %1590 = sbr.rel (%p1588) target = $region148
        $region147: #{tpu_custom_call.1} parent=143 // pred_region
          %s1591 = sand.u32 %s369, 1
          %s1592 = scalar_lea.sflag [#allocation5], %s1591
          %s1593 = sand.u32 %s369, 1
          %s1594 = smul.addr %s1593, 8
          %s1595 = scalar_lea.vmem [#allocation26], %s1594
          %1596 = dma.done %s1592, 128
        $region148: #{tpu_custom_call.1} parent=143 // pred_fallthru
          _
      $region144: #{tpu_custom_call.1} parent=5 // pred_fallthru
        _
    $region6: #{tpu_custom_call.1} parent=1 // loop_footer
      %s39 = sadd.s32 1, %s35
    $region7: #{tpu_custom_call.1} parent=1 // loop_footer_branch
      %34 = sbr.rel target = $region3
    $region8: #{tpu_custom_call.1} parent=1 // loop_exit
      _
    %1597 = vsyncpa [#allocation4], 1
    %s1598 = scalar_lea.sflag [#allocation4], 1
    %1599 = vsyncpa %s1598, 1
    %1600 = vsyncpa [#allocation7], 1
    %s1601 = scalar_lea.sflag [#allocation7], 1
    %1602 = vsyncpa %s1601, 1
    %1603 = vsyncpa [#allocation10], 1
    %1604 = vsyncpa [#allocation13], 1
    %1605 = vsyncpa [#allocation16], 1
    %1606 = vsyncpa [#allocation19], 1
    %1607 = vsyncpa [#allocation22], 1
    %1608 = vsyncpa [#allocation25], 1
    %1609 = vsyncpa [#allocation5], 1
    %s1610 = scalar_lea.sflag [#allocation5], 1
    %1611 = vsyncpa %s1610, 1

// kernel: tpu_custom_call.1
$region0: #{tpu_custom_call.1}
  #allocation0 [shape = 'u32[]', space=smem, size = 0x4, offset = 0x4, fixed_abs, tag = 'smem constant byte address 0x4 - core index']
  #allocation1 [shape = 'u32[144,128]{1,0:T(1,128)}', space=vmem, size = 0x12000, scoped, tag = 'internal scratch']
  #allocation2 [shape = 'bf16[3,8,32]{2,1,0:T(8,128)(2,1)}', space=vmem, size = 0x1800, scoped, tag = 'scratch operand']
  %s0 = inlined_call_operand.hbm [shape: f32[2,8,32], index: 0, kind: input, shape index: {}]
  %s1 = inlined_call_operand.hbm [shape: bf16[2,4,8,8], index: 1, kind: input, shape index: {}]
  %s2 = inlined_call_operand.hbm [shape: f32[1,32], index: 2, kind: input, shape index: {}]
  %s3 = inlined_call_operand.hbm [shape: f32[1,32], index: 3, kind: input, shape index: {}]
  %s4 = inlined_call_operand.hbm [shape: bf16[32,96], index: 4, kind: input, shape index: {}]
  %s5 = inlined_call_operand.hbm [shape: f32[1,96], index: 5, kind: input, shape index: {}]
  %s6 = inlined_call_operand.hbm [shape: bf16[32,32], index: 6, kind: input, shape index: {}]
  %s7 = inlined_call_operand.hbm [shape: f32[1,32], index: 7, kind: input, shape index: {}]
  %s8 = inlined_call_operand.hbm [shape: f32[1,32], index: 8, kind: input, shape index: {}]
  %s9 = inlined_call_operand.hbm [shape: f32[1,32], index: 9, kind: input, shape index: {}]
  %s10 = inlined_call_operand.hbm [shape: bf16[32,64], index: 10, kind: input, shape index: {}]
  %s11 = inlined_call_operand.hbm [shape: f32[1,64], index: 11, kind: input, shape index: {}]
  %s12 = inlined_call_operand.hbm [shape: bf16[64,32], index: 12, kind: input, shape index: {}]
  %s13 = inlined_call_operand.hbm [shape: f32[1,32], index: 13, kind: input, shape index: {}]
  %s14 = inlined_call_operand.hbm [shape: f32[2,8,32], index: 14, kind: output, shape index: {}]
  %s15 = sld [smem:[#allocation0]]
  $region149: #{tpu_custom_call.1} parent=0
    _
  %s17 = ssub.s32 1, %s15
  %s18 = scalar_select 0, %s17, %s15
  $region1: #{tpu_custom_call.1} parent=0
    #allocation3 [shape = 'u8[8192]{0}', space=vmem, size = 0x2000, scoped, tag = 'input window, operand 0']
    #allocation4 [shape = 's32[2]{0}', space=sflag, size = 0x8, scoped, tag = 'scoped memory for tpu_custom_call.1']
    #allocation5 [shape = 's32[2]{0}', space=sflag, size = 0x8, scoped, tag = 'scoped memory for tpu_custom_call.1']
    #allocation6 [shape = 'u8[16384]{0}', space=vmem, size = 0x4000, scoped, tag = 'input window, operand 1']
    #allocation7 [shape = 's32[2]{0}', space=sflag, size = 0x8, scoped, tag = 'scoped memory for tpu_custom_call.1']
    #allocation8 [shape = 'u8[512]{0}', space=vmem, size = 0x400, scoped, tag = 'input window, operand 2, single buffered']
    #allocation9 [shape = 'u8[512]{0}', space=vmem, size = 0x400, scoped, tag = 'input window, operand 3, single buffered']
    #allocation10 [shape = 's32[1]{0}', space=sflag, size = 0x4, scoped, tag = 'scoped memory for tpu_custom_call.1']
    #allocation11 [shape = 'u8[8192]{0}', space=vmem, size = 0x2000, scoped, tag = 'input window, operand 4, single buffered']
    #allocation12 [shape = 'u8[512]{0}', space=vmem, size = 0x400, scoped, tag = 'input window, operand 5, single buffered']
    #allocation13 [shape = 's32[1]{0}', space=sflag, size = 0x4, scoped, tag = 'scoped memory for tpu_custom_call.1']
    #allocation14 [shape = 'u8[8192]{0}', space=vmem, size = 0x2000, scoped, tag = 'input window, operand 6, single buffered']
    #allocation15 [shape = 'u8[512]{0}', space=vmem, size = 0x400, scoped, tag = 'input window, operand 7, single buffered']
    #allocation16 [shape = 's32[1]{0}', space=sflag, size = 0x4, scoped, tag = 'scoped memory for tpu_custom_call.1']
    #allocation17 [shape = 'u8[512]{0}', space=vmem, size = 0x400, scoped, tag = 'input window, operand 8, single buffered']
    #allocation18 [shape = 'u8[512]{0}', space=vmem, size = 0x400, scoped, tag = 'input window, operand 9, single buffered']
    #allocation19 [shape = 's32[1]{0}', space=sflag, size = 0x4, scoped, tag = 'scoped memory for tpu_custom_call.1']
    #allocation20 [shape = 'u8[8192]{0}', space=vmem, size = 0x2000, scoped, tag = 'input window, operand 10, single buffered']
    #allocation21 [shape = 'u8[512]{0}', space=vmem, size = 0x400, scoped, tag = 'input window, operand 11, single buffered']
    #allocation22 [shape = 's32[1]{0}', space=sflag, size = 0x4, scoped, tag = 'scoped memory for tpu_custom_call.1']
    #allocation23 [shape = 'u8[16384]{0}', space=vmem, size = 0x4000, scoped, tag = 'input window, operand 12, single buffered']
    #allocation24 [shape = 'u8[512]{0}', space=vmem, size = 0x400, scoped, tag = 'input window, operand 13, single buffered']
    #allocation25 [shape = 's32[1]{0}', space=sflag, size = 0x4, scoped, tag = 'scoped memory for tpu_custom_call.1']
    #allocation26 [shape = 'u8[8192]{0}', space=vmem, size = 0x2000, scoped, tag = 'output window, operand 0']
    %19 = vsyncpa [#allocation4], 0
    %s20 = scalar_lea.sflag [#allocation4], 1
    %21 = vsyncpa %s20, 0
    %22 = vsyncpa [#allocation7], 0
    %s23 = scalar_lea.sflag [#allocation7], 1
    %24 = vsyncpa %s23, 0
    %25 = vsyncpa [#allocation10], 0
    %26 = vsyncpa [#allocation13], 0
    %27 = vsyncpa [#allocation16], 0
    %28 = vsyncpa [#allocation19], 0
    %29 = vsyncpa [#allocation22], 0
    %30 = vsyncpa [#allocation25], 0
    %31 = vsyncpa [#allocation5], 0
    %s32 = scalar_lea.sflag [#allocation5], 1
    %33 = vsyncpa %s32, 0
    loop: start=0, step=1, limit=4
    $region2: #{tpu_custom_call.1} parent=1 // loop_pre_header
      _
    $region3: #{tpu_custom_call.1} parent=1 // loop_header
      %s35 = sphi 0, %s39
      %p36 = scmp.ge.s32.totalorder %s35, 4
      %s42 = sphi 0, %s54
      %s43 = sphi 0, %s50
      %s44 = sphi 0, %s42
      %s45 = sphi 0, %s43
      %s46 = sphi 0, %s44
      %s47 = sphi 0, %s45
      %s57 = sphi 0, %s59
      %s60 = sphi 0, %s57
      %s61 = sphi 0, %s60
      %s77 = sphi 0, %s61
      %s85 = sphi 0, %s87
      %s88 = sphi 0, %s85
      %s89 = sphi 0, %s88
      %s105 = sphi 0, %s89
      %s109 = sphi 0, %s109
      %s111 = sphi 0, %s109
      %s112 = sphi 0, %s111
      %s126 = sphi 0, %s112
      %s130 = sphi 0, %s130
      %s132 = sphi 0, %s130
      %s133 = sphi 0, %s132
      %s147 = sphi 0, %s133
      %s151 = sphi 0, %s151
      %s153 = sphi 0, %s151
      %s154 = sphi 0, %s153
      %s168 = sphi 0, %s154
      %s172 = sphi 0, %s172
      %s174 = sphi 0, %s172
      %s175 = sphi 0, %s174
      %s189 = sphi 0, %s175
      %s193 = sphi 0, %s193
      %s195 = sphi 0, %s193
      %s196 = sphi 0, %s195
      %s210 = sphi 0, %s196
      %s214 = sphi 0, %s214
      %s216 = sphi 0, %s214
      %s217 = sphi 0, %s216
      %s231 = sphi 0, %s217
      %s235 = sphi 0, %s235
      %s237 = sphi 0, %s235
      %s238 = sphi 0, %s237
      %s252 = sphi 0, %s238
      %s256 = sphi 0, %s256
      %s258 = sphi 0, %s256
      %s259 = sphi 0, %s258
      %s273 = sphi 0, %s259
      %s277 = sphi 0, %s277
      %s279 = sphi 0, %s277
      %s280 = sphi 0, %s279
      %s294 = sphi 0, %s280
      %s298 = sphi 0, %s298
      %s300 = sphi 0, %s298
      %s301 = sphi 0, %s300
      %s315 = sphi 0, %s301
      %s319 = sphi 0, %s319
      %s321 = sphi 0, %s319
      %s322 = sphi 0, %s321
      %s336 = sphi 0, %s322
      %s340 = sphi 0, %s340
      %s342 = sphi 0, %s340
      %s343 = sphi 0, %s342
      %s357 = sphi 0, %s343
      %s365 = sphi 0, %s367
      %s368 = sphi 0, %s365
      %s369 = sphi 0, %s368
      %s385 = sphi 0, %s369
    $region4: #{tpu_custom_call.1} parent=1 // loop_header_branch
      %38 = sbr.rel (%p36) target = $region8
    $region5: #{tpu_custom_call.1} parent=1 // loop_body
      %s40 = ssub.s32 %s35, 1
      %s41 = ssub.s32 %s35, 2
      %s48 = sadd.s32 1, %s43
      %p49 = scmp.ge.s32.totalorder %s48, 1
      %s50 = scalar_select %p49, 0, %s48
      %s51 = sadd.s32 1, %s42
      %s52 = scalar_select %p49, %s51, %s42
      %p53 = scmp.ge.s32.totalorder %s52, 2
      %s54 = scalar_select %p53, 0, %s52
      %s55 = ssub.s32 %s42, %s54
      %p56 = scmp.eq.s32.totalorder %s55, 0
      %s58 = sadd.s32 %s57, 1
      %s59 = scalar_select %p56, %s57, %s58
      %p62 = pneg %p56
      %p63 = scmp.eq.s32.totalorder %s35, 1
      %p64 = por %p62, %p63
      %p65 = scmp.ne.s32.totalorder %s57, %s60
      %p66 = scmp.eq.s32.totalorder %s35, 0
      %p67 = por %p65, %p66
      %p68 = scmp.ne.s32.totalorder %s57, %s60
      %p69 = scmp.eq.s32.totalorder %s40, 1
      %p70 = por %p68, %p69
      %p71 = scmp.ne.s32.totalorder %s60, %s61
      %p72 = scmp.eq.s32.totalorder %s40, 0
      %p73 = por %p71, %p72
      %p74 = scmp.ne.s32.totalorder %s60, %s61
      %p75 = scmp.eq.s32.totalorder %s41, 1
      %p76 = por %p74, %p75
      %p78 = scmp.ne.s32.totalorder %s61, %s77
      %p79 = scmp.eq.s32.totalorder %s41, 0
      %p80 = por %p78, %p79
      %s81 = ssub.s32 %s42, %s54
      %s82 = ssub.s32 %s43, %s50
      %s83 = sor.u32 %s81, %s82
      %p84 = scmp.eq.s32.totalorder %s83, 0
      %s86 = sadd.s32 %s85, 1
      %s87 = scalar_select %p84, %s85, %s86
      %p90 = pneg %p84
      %p91 = scmp.eq.s32.totalorder %s35, 1
      %p92 = por %p90, %p91
      %p93 = scmp.ne.s32.totalorder %s85, %s88
      %p94 = scmp.eq.s32.totalorder %s35, 0
      %p95 = por %p93, %p94
      %p96 = scmp.ne.s32.totalorder %s85, %s88
      %p97 = scmp.eq.s32.totalorder %s40, 1
      %p98 = por %p96, %p97
      %p99 = scmp.ne.s32.totalorder %s88, %s89
      %p100 = scmp.eq.s32.totalorder %s40, 0
      %p101 = por %p99, %p100
      %p102 = scmp.ne.s32.totalorder %s88, %s89
      %p103 = scmp.eq.s32.totalorder %s41, 1
      %p104 = por %p102, %p103
      %p106 = scmp.ne.s32.totalorder %s89, %s105
      %p107 = scmp.eq.s32.totalorder %s41, 0
      %p108 = por %p106, %p107
      %s110 = sadd.s32 %s109, 1
      %p113 = scmp.eq.s32.totalorder %s35, 1
      %p114 = scmp.ne.s32.totalorder %s109, %s111
      %p115 = scmp.eq.s32.totalorder %s35, 0
      %p116 = por %p114, %p115
      %p117 = scmp.ne.s32.totalorder %s109, %s111
      %p118 = scmp.eq.s32.totalorder %s40, 1
      %p119 = por %p117, %p118
      %p120 = scmp.ne.s32.totalorder %s111, %s112
      %p121 = scmp.eq.s32.totalorder %s40, 0
      %p122 = por %p120, %p121
      %p123 = scmp.ne.s32.totalorder %s111, %s112
      %p124 = scmp.eq.s32.totalorder %s41, 1
      %p125 = por %p123, %p124
      %p127 = scmp.ne.s32.totalorder %s112, %s126
      %p128 = scmp.eq.s32.totalorder %s41, 0
      %p129 = por %p127, %p128
      %s131 = sadd.s32 %s130, 1
      %p134 = scmp.eq.s32.totalorder %s35, 1
      %p135 = scmp.ne.s32.totalorder %s130, %s132
      %p136 = scmp.eq.s32.totalorder %s35, 0
      %p137 = por %p135, %p136
      %p138 = scmp.ne.s32.totalorder %s130, %s132
      %p139 = scmp.eq.s32.totalorder %s40, 1
      %p140 = por %p138, %p139
      %p141 = scmp.ne.s32.totalorder %s132, %s133
      %p142 = scmp.eq.s32.totalorder %s40, 0
      %p143 = por %p141, %p142
      %p144 = scmp.ne.s32.totalorder %s132, %s133
      %p145 = scmp.eq.s32.totalorder %s41, 1
      %p146 = por %p144, %p145
      %p148 = scmp.ne.s32.totalorder %s133, %s147
      %p149 = scmp.eq.s32.totalorder %s41, 0
      %p150 = por %p148, %p149
      %s152 = sadd.s32 %s151, 1
      %p155 = scmp.eq.s32.totalorder %s35, 1
      %p156 = scmp.ne.s32.totalorder %s151, %s153
      %p157 = scmp.eq.s32.totalorder %s35, 0
      %p158 = por %p156, %p157
      %p159 = scmp.ne.s32.totalorder %s151, %s153
      %p160 = scmp.eq.s32.totalorder %s40, 1
      %p161 = por %p159, %p160
      %p162 = scmp.ne.s32.totalorder %s153, %s154
      %p163 = scmp.eq.s32.totalorder %s40, 0
      %p164 = por %p162, %p163
      %p165 = scmp.ne.s32.totalorder %s153, %s154
      %p166 = scmp.eq.s32.totalorder %s41, 1
      %p167 = por %p165, %p166
      %p169 = scmp.ne.s32.totalorder %s154, %s168
      %p170 = scmp.eq.s32.totalorder %s41, 0
      %p171 = por %p169, %p170
      %s173 = sadd.s32 %s172, 1
      %p176 = scmp.eq.s32.totalorder %s35, 1
      %p177 = scmp.ne.s32.totalorder %s172, %s174
      %p178 = scmp.eq.s32.totalorder %s35, 0
      %p179 = por %p177, %p178
      %p180 = scmp.ne.s32.totalorder %s172, %s174
      %p181 = scmp.eq.s32.totalorder %s40, 1
      %p182 = por %p180, %p181
      %p183 = scmp.ne.s32.totalorder %s174, %s175
      %p184 = scmp.eq.s32.totalorder %s40, 0
      %p185 = por %p183, %p184
      %p186 = scmp.ne.s32.totalorder %s174, %s175
      %p187 = scmp.eq.s32.totalorder %s41, 1
      %p188 = por %p186, %p187
      %p190 = scmp.ne.s32.totalorder %s175, %s189
      %p191 = scmp.eq.s32.totalorder %s41, 0
      %p192 = por %p190, %p191
      %s194 = sadd.s32 %s193, 1
      %p197 = scmp.eq.s32.totalorder %s35, 1
      %p198 = scmp.ne.s32.totalorder %s193, %s195
      %p199 = scmp.eq.s32.totalorder %s35, 0
      %p200 = por %p198, %p199
      %p201 = scmp.ne.s32.totalorder %s193, %s195
      %p202 = scmp.eq.s32.totalorder %s40, 1
      %p203 = por %p201, %p202
      %p204 = scmp.ne.s32.totalorder %s195, %s196
      %p205 = scmp.eq.s32.totalorder %s40, 0
      %p206 = por %p204, %p205
      %p207 = scmp.ne.s32.totalorder %s195, %s196
      %p208 = scmp.eq.s32.totalorder %s41, 1
      %p209 = por %p207, %p208
      %p211 = scmp.ne.s32.totalorder %s196, %s210
      %p212 = scmp.eq.s32.totalorder %s41, 0
      %p213 = por %p211, %p212
      %s215 = sadd.s32 %s214, 1
      %p218 = scmp.eq.s32.totalorder %s35, 1
      %p219 = scmp.ne.s32.totalorder %s214, %s216
      %p220 = scmp.eq.s32.totalorder %s35, 0
      %p221 = por %p219, %p220
      %p222 = scmp.ne.s32.totalorder %s214, %s216
      %p223 = scmp.eq.s32.totalorder %s40, 1
      %p224 = por %p222, %p223
      %p225 = scmp.ne.s32.totalorder %s216, %s217
      %p226 = scmp.eq.s32.totalorder %s40, 0
      %p227 = por %p225, %p226
      %p228 = scmp.ne.s32.totalorder %s216, %s217
      %p229 = scmp.eq.s32.totalorder %s41, 1
      %p230 = por %p228, %p229
      %p232 = scmp.ne.s32.totalorder %s217, %s231
      %p233 = scmp.eq.s32.totalorder %s41, 0
      %p234 = por %p232, %p233
      %s236 = sadd.s32 %s235, 1
      %p239 = scmp.eq.s32.totalorder %s35, 1
      %p240 = scmp.ne.s32.totalorder %s235, %s237
      %p241 = scmp.eq.s32.totalorder %s35, 0
      %p242 = por %p240, %p241
      %p243 = scmp.ne.s32.totalorder %s235, %s237
      %p244 = scmp.eq.s32.totalorder %s40, 1
      %p245 = por %p243, %p244
      %p246 = scmp.ne.s32.totalorder %s237, %s238
      %p247 = scmp.eq.s32.totalorder %s40, 0
      %p248 = por %p246, %p247
      %p249 = scmp.ne.s32.totalorder %s237, %s238
      %p250 = scmp.eq.s32.totalorder %s41, 1
      %p251 = por %p249, %p250
      %p253 = scmp.ne.s32.totalorder %s238, %s252
      %p254 = scmp.eq.s32.totalorder %s41, 0
      %p255 = por %p253, %p254
      %s257 = sadd.s32 %s256, 1
      %p260 = scmp.eq.s32.totalorder %s35, 1
      %p261 = scmp.ne.s32.totalorder %s256, %s258
      %p262 = scmp.eq.s32.totalorder %s35, 0
      %p263 = por %p261, %p262
      %p264 = scmp.ne.s32.totalorder %s256, %s258
      %p265 = scmp.eq.s32.totalorder %s40, 1
      %p266 = por %p264, %p265
      %p267 = scmp.ne.s32.totalorder %s258, %s259
      %p268 = scmp.eq.s32.totalorder %s40, 0
      %p269 = por %p267, %p268
      %p270 = scmp.ne.s32.totalorder %s258, %s259
      %p271 = scmp.eq.s32.totalorder %s41, 1
      %p272 = por %p270, %p271
      %p274 = scmp.ne.s32.totalorder %s259, %s273
      %p275 = scmp.eq.s32.totalorder %s41, 0
      %p276 = por %p274, %p275
      %s278 = sadd.s32 %s277, 1
      %p281 = scmp.eq.s32.totalorder %s35, 1
      %p282 = scmp.ne.s32.totalorder %s277, %s279
      %p283 = scmp.eq.s32.totalorder %s35, 0
      %p284 = por %p282, %p283
      %p285 = scmp.ne.s32.totalorder %s277, %s279
      %p286 = scmp.eq.s32.totalorder %s40, 1
      %p287 = por %p285, %p286
      %p288 = scmp.ne.s32.totalorder %s279, %s280
      %p289 = scmp.eq.s32.totalorder %s40, 0
      %p290 = por %p288, %p289
      %p291 = scmp.ne.s32.totalorder %s279, %s280
      %p292 = scmp.eq.s32.totalorder %s41, 1
      %p293 = por %p291, %p292
      %p295 = scmp.ne.s32.totalorder %s280, %s294
      %p296 = scmp.eq.s32.totalorder %s41, 0
      %p297 = por %p295, %p296
      %s299 = sadd.s32 %s298, 1
      %p302 = scmp.eq.s32.totalorder %s35, 1
      %p303 = scmp.ne.s32.totalorder %s298, %s300
      %p304 = scmp.eq.s32.totalorder %s35, 0
      %p305 = por %p303, %p304
      %p306 = scmp.ne.s32.totalorder %s298, %s300
      %p307 = scmp.eq.s32.totalorder %s40, 1
      %p308 = por %p306, %p307
      %p309 = scmp.ne.s32.totalorder %s300, %s301
      %p310 = scmp.eq.s32.totalorder %s40, 0
      %p311 = por %p309, %p310
      %p312 = scmp.ne.s32.totalorder %s300, %s301
      %p313 = scmp.eq.s32.totalorder %s41, 1
      %p314 = por %p312, %p313
      %p316 = scmp.ne.s32.totalorder %s301, %s315
      %p317 = scmp.eq.s32.totalorder %s41, 0
      %p318 = por %p316, %p317
      %s320 = sadd.s32 %s319, 1
      %p323 = scmp.eq.s32.totalorder %s35, 1
      %p324 = scmp.ne.s32.totalorder %s319, %s321
      %p325 = scmp.eq.s32.totalorder %s35, 0
      %p326 = por %p324, %p325
      %p327 = scmp.ne.s32.totalorder %s319, %s321
      %p328 = scmp.eq.s32.totalorder %s40, 1
      %p329 = por %p327, %p328
      %p330 = scmp.ne.s32.totalorder %s321, %s322
      %p331 = scmp.eq.s32.totalorder %s40, 0
      %p332 = por %p330, %p331
      %p333 = scmp.ne.s32.totalorder %s321, %s322
      %p334 = scmp.eq.s32.totalorder %s41, 1
      %p335 = por %p333, %p334
      %p337 = scmp.ne.s32.totalorder %s322, %s336
      %p338 = scmp.eq.s32.totalorder %s41, 0
      %p339 = por %p337, %p338
      %s341 = sadd.s32 %s340, 1
      %p344 = scmp.eq.s32.totalorder %s35, 1
      %p345 = scmp.ne.s32.totalorder %s340, %s342
      %p346 = scmp.eq.s32.totalorder %s35, 0
      %p347 = por %p345, %p346
      %p348 = scmp.ne.s32.totalorder %s340, %s342
      %p349 = scmp.eq.s32.totalorder %s40, 1
      %p350 = por %p348, %p349
      %p351 = scmp.ne.s32.totalorder %s342, %s343
      %p352 = scmp.eq.s32.totalorder %s40, 0
      %p353 = por %p351, %p352
      %p354 = scmp.ne.s32.totalorder %s342, %s343
      %p355 = scmp.eq.s32.totalorder %s41, 1
      %p356 = por %p354, %p355
      %p358 = scmp.ne.s32.totalorder %s343, %s357
      %p359 = scmp.eq.s32.totalorder %s41, 0
      %p360 = por %p358, %p359
      %s361 = ssub.s32 %s42, %s54
      %s362 = ssub.s32 %s43, %s50
      %s363 = sor.u32 %s361, %s362
      %p364 = scmp.eq.s32.totalorder %s363, 0
      %s366 = sadd.s32 %s365, 1
      %s367 = scalar_select %p364, %s365, %s366
      %p370 = pneg %p364
      %p371 = scmp.eq.s32.totalorder %s35, 1
      %p372 = por %p370, %p371
      %p373 = scmp.ne.s32.totalorder %s365, %s368
      %p374 = scmp.eq.s32.totalorder %s35, 0
      %p375 = por %p373, %p374
      %p376 = scmp.ne.s32.totalorder %s365, %s368
      %p377 = scmp.eq.s32.totalorder %s40, 1
      %p378 = por %p376, %p377
      %p379 = scmp.ne.s32.totalorder %s368, %s369
      %p380 = scmp.eq.s32.totalorder %s40, 0
      %p381 = por %p379, %p380
      %p382 = scmp.ne.s32.totalorder %s368, %s369
      %p383 = scmp.eq.s32.totalorder %s41, 1
      %p384 = por %p382, %p383
      %p386 = scmp.ne.s32.totalorder %s369, %s385
      %p387 = scmp.eq.s32.totalorder %s41, 0
      %p388 = por %p386, %p387
      %p389 = scmp.le.s32.totalorder 1, %s35
      %p390 = scmp.lt.s32.totalorder %s35, 3
      %p391 = pnand %p389, %p390
      %p392 = pneg %p391
      // Predicated region
      $region9: #{tpu_custom_call.1} parent=5 // pred_check
        _
      $region10: #{tpu_custom_call.1} parent=5 // pred_check_branch
        %394 = sbr.rel (%p391) target = $region12
      $region11: #{tpu_custom_call.1} parent=5 // pred_region
        %s395 = ssub.s32 %s35, 1
        // Predicated region
        $region13: #{tpu_custom_call.1} parent=11 // pred_check
          %p396 = pneg %p122
        $region14: #{tpu_custom_call.1} parent=11 // pred_check_branch
          %398 = sbr.rel (%p396) target = $region16
        $region15: #{tpu_custom_call.1} parent=11 // pred_region
          %s400 = ssub.s32 16, 16
          %401 = vsyncadd [#allocation7], %s400
          %s403 = sshll.u32 [#allocation8], 4
          %s404 = int_to_ptr.vmem [resolvable:$true] %s403
          %406 = dma.hbm_to_vmem [thread:$0]  %s2, 16, %s404, [#allocation7]
        $region16: #{tpu_custom_call.1} parent=11 // pred_fallthru
          _
        // Predicated region
        $region17: #{tpu_custom_call.1} parent=11 // pred_check
          %p407 = pneg %p143
        $region18: #{tpu_custom_call.1} parent=11 // pred_check_branch
          %409 = sbr.rel (%p407) target = $region20
        $region19: #{tpu_custom_call.1} parent=11 // pred_region
          %s411 = ssub.s32 16, 16
          %412 = vsyncadd [#allocation10], %s411
          %s414 = sshll.u32 [#allocation9], 4
          %s415 = int_to_ptr.vmem [resolvable:$true] %s414
          %417 = dma.hbm_to_vmem [thread:$0]  %s3, 16, %s415, [#allocation10]
        $region20: #{tpu_custom_call.1} parent=11 // pred_fallthru
          _
        // Predicated region
        $region21: #{tpu_custom_call.1} parent=11 // pred_check
          %p418 = pneg %p164
        $region22: #{tpu_custom_call.1} parent=11 // pred_check_branch
          %420 = sbr.rel (%p418) target = $region24
        $region23: #{tpu_custom_call.1} parent=11 // pred_region
          %s422 = ssub.s32 256, 256
          %423 = vsyncadd [#allocation10], %s422
          %s424 = sshll.u32 [#allocation11], 4
          %s425 = int_to_ptr.vmem [resolvable:$true] %s424
          %430 = dma.hbm_to_vmem [thread:$0]  %s4, 256, %s425, [#allocation10], 64, 64, 4
        $region24: #{tpu_custom_call.1} parent=11 // pred_fallthru
          _
        // Predicated region
        $region25: #{tpu_custom_call.1} parent=11 // pred_check
          %p431 = pneg %p185
        $region26: #{tpu_custom_call.1} parent=11 // pred_check_branch
          %433 = sbr.rel (%p431) target = $region28
        $region27: #{tpu_custom_call.1} parent=11 // pred_region
          %s435 = ssub.s32 16, 16
          %436 = vsyncadd [#allocation13], %s435
          %s438 = sshll.u32 [#allocation12], 4
          %s439 = int_to_ptr.vmem [resolvable:$true] %s438
          %441 = dma.hbm_to_vmem [thread:$0]  %s5, 16, %s439, [#allocation13]
        $region28: #{tpu_custom_call.1} parent=11 // pred_fallthru
          _
        // Predicated region
        $region29: #{tpu_custom_call.1} parent=11 // pred_check
          %p442 = pneg %p206
        $region30: #{tpu_custom_call.1} parent=11 // pred_check_branch
          %444 = sbr.rel (%p442) target = $region32
        $region31: #{tpu_custom_call.1} parent=11 // pred_region
          %s446 = ssub.s32 256, 256
          %447 = vsyncadd [#allocation13], %s446
          %s448 = sshll.u32 [#allocation14], 4
          %s449 = int_to_ptr.vmem [resolvable:$true] %s448
          %454 = dma.hbm_to_vmem [thread:$0]  %s6, 256, %s449, [#allocation13], 64, 64, 4
        $region32: #{tpu_custom_call.1} parent=11 // pred_fallthru
          _
        // Predicated region
        $region33: #{tpu_custom_call.1} parent=11 // pred_check
          %p455 = pneg %p227
        $region34: #{tpu_custom_call.1} parent=11 // pred_check_branch
          %457 = sbr.rel (%p455) target = $region36
        $region35: #{tpu_custom_call.1} parent=11 // pred_region
          %s459 = ssub.s32 16, 16
          %460 = vsyncadd [#allocation16], %s459
          %s462 = sshll.u32 [#allocation15], 4
          %s463 = int_to_ptr.vmem [resolvable:$true] %s462
          %465 = dma.hbm_to_vmem [thread:$0]  %s7, 16, %s463, [#allocation16]
        $region36: #{tpu_custom_call.1} parent=11 // pred_fallthru
          _
        // Predicated region
        $region37: #{tpu_custom_call.1} parent=11 // pred_check
          %p466 = pneg %p248
        $region38: #{tpu_custom_call.1} parent=11 // pred_check_branch
          %468 = sbr.rel (%p466) target = $region40
        $region39: #{tpu_custom_call.1} parent=11 // pred_region
          %s470 = ssub.s32 16, 16
          %471 = vsyncadd [#allocation16], %s470
          %s473 = sshll.u32 [#allocation17], 4
          %s474 = int_to_ptr.vmem [resolvable:$true] %s473
          %476 = dma.hbm_to_vmem [thread:$0]  %s8, 16, %s474, [#allocation16]
        $region40: #{tpu_custom_call.1} parent=11 // pred_fallthru
          _
        // Predicated region
        $region41: #{tpu_custom_call.1} parent=11 // pred_check
          %p477 = pneg %p269
        $region42: #{tpu_custom_call.1} parent=11 // pred_check_branch
          %479 = sbr.rel (%p477) target = $region44
        $region43: #{tpu_custom_call.1} parent=11 // pred_region
          %s481 = ssub.s32 16, 16
          %482 = vsyncadd [#allocation19], %s481
          %s484 = sshll.u32 [#allocation18], 4
          %s485 = int_to_ptr.vmem [resolvable:$true] %s484
          %487 = dma.hbm_to_vmem [thread:$0]  %s9, 16, %s485, [#allocation19]
        $region44: #{tpu_custom_call.1} parent=11 // pred_fallthru
          _
        // Predicated region
        $region45: #{tpu_custom_call.1} parent=11 // pred_check
          %p488 = pneg %p290
        $region46: #{tpu_custom_call.1} parent=11 // pred_check_branch
          %490 = sbr.rel (%p488) target = $region48
        $region47: #{tpu_custom_call.1} parent=11 // pred_region
          %s492 = ssub.s32 256, 256
          %493 = vsyncadd [#allocation19], %s492
          %s494 = sshll.u32 [#allocation20], 4
          %s495 = int_to_ptr.vmem [resolvable:$true] %s494
          %500 = dma.hbm_to_vmem [thread:$0]  %s10, 256, %s495, [#allocation19], 64, 64, 4
        $region48: #{tpu_custom_call.1} parent=11 // pred_fallthru
          _
        // Predicated region
        $region49: #{tpu_custom_call.1} parent=11 // pred_check
          %p501 = pneg %p311
        $region50: #{tpu_custom_call.1} parent=11 // pred_check_branch
          %503 = sbr.rel (%p501) target = $region52
        $region51: #{tpu_custom_call.1} parent=11 // pred_region
          %s505 = ssub.s32 16, 16
          %506 = vsyncadd [#allocation22], %s505
          %s508 = sshll.u32 [#allocation21], 4
          %s509 = int_to_ptr.vmem [resolvable:$true] %s508
          %511 = dma.hbm_to_vmem [thread:$0]  %s11, 16, %s509, [#allocation22]
        $region52: #{tpu_custom_call.1} parent=11 // pred_fallthru
          _
        // Predicated region
        $region53: #{tpu_custom_call.1} parent=11 // pred_check
          %p512 = pneg %p332
        $region54: #{tpu_custom_call.1} parent=11 // pred_check_branch
          %514 = sbr.rel (%p512) target = $region56
        $region55: #{tpu_custom_call.1} parent=11 // pred_region
          %s516 = ssub.s32 512, 512
          %517 = vsyncadd [#allocation22], %s516
          %s518 = sshll.u32 [#allocation23], 4
          %s519 = int_to_ptr.vmem [resolvable:$true] %s518
          %524 = dma.hbm_to_vmem [thread:$0]  %s12, 512, %s519, [#allocation22], 64, 64, 4
        $region56: #{tpu_custom_call.1} parent=11 // pred_fallthru
          _
        // Predicated region
        $region57: #{tpu_custom_call.1} parent=11 // pred_check
          %p525 = pneg %p353
        $region58: #{tpu_custom_call.1} parent=11 // pred_check_branch
          %527 = sbr.rel (%p525) target = $region60
        $region59: #{tpu_custom_call.1} parent=11 // pred_region
          %s529 = ssub.s32 16, 16
          %530 = vsyncadd [#allocation25], %s529
          %s532 = sshll.u32 [#allocation24], 4
          %s533 = int_to_ptr.vmem [resolvable:$true] %s532
          %535 = dma.hbm_to_vmem [thread:$0]  %s13, 16, %s533, [#allocation25]
        $region60: #{tpu_custom_call.1} parent=11 // pred_fallthru
          _
      $region12: #{tpu_custom_call.1} parent=5 // pred_fallthru
        _
      %p536 = scmp.lt.s32.totalorder %s35, 2
      // Predicated region
      $region61: #{tpu_custom_call.1} parent=5 // pred_check
        %p537 = pneg %p536
      $region62: #{tpu_custom_call.1} parent=5 // pred_check_branch
        %539 = sbr.rel (%p537) target = $region64
      $region63: #{tpu_custom_call.1} parent=5 // pred_region
        // Predicated region
        $region65: #{tpu_custom_call.1} parent=63 // pred_check
          %p540 = pneg %p67
        $region66: #{tpu_custom_call.1} parent=63 // pred_check_branch
          %542 = sbr.rel (%p540) target = $region68
        $region67: #{tpu_custom_call.1} parent=63 // pred_region
          %s543 = sand.u32 %s57, 1
          %s544 = scalar_lea.sflag [#allocation4], %s543
          %s545 = sand.u32 %s57, 1
          %s546 = smul.addr %s545, 8
          %s547 = scalar_lea.vmem [#allocation3], %s546
          %s549 = ssub.s32 128, 128
          %550 = vsyncadd %s544, %s549
          %s551 = smul.addr %s42, 128
          %s552 = scalar_lea.hbm %s0, %s551
          %s554 = sshll.u32 %s547, 4
          %s555 = int_to_ptr.vmem [resolvable:$true] %s554
          %557 = dma.hbm_to_vmem [thread:$0]  %s552, 128, %s555, %s544
        $region68: #{tpu_custom_call.1} parent=63 // pred_fallthru
          _
        // Predicated region
        $region69: #{tpu_custom_call.1} parent=63 // pred_check
          %p558 = pneg %p95
        $region70: #{tpu_custom_call.1} parent=63 // pred_check_branch
          %560 = sbr.rel (%p558) target = $region72
        $region71: #{tpu_custom_call.1} parent=63 // pred_region
          %s561 = sand.u32 %s35, 1
          %s562 = scalar_lea.sflag [#allocation7], %s561
          %s563 = sand.u32 %s85, 1
          %s564 = smul.addr %s563, 16
          %s565 = scalar_lea.vmem [#allocation6], %s564
          %s567 = ssub.s32 256, 256
          %568 = vsyncadd %s562, %s567
          %s569 = smul.addr %s42, 4
          %s570 = sadd.s32 %s43, %s569
          %s571 = smul.addr %s570, 64
          %s572 = scalar_lea.hbm %s1, %s571
          %s573 = sshll.u32 %s565, 4
          %s574 = int_to_ptr.vmem [resolvable:$true] %s573
          %579 = dma.hbm_to_vmem [thread:$0]  %s572, 256, %s574, %s562, 64, 64, 4
        $region72: #{tpu_custom_call.1} parent=63 // pred_fallthru
          _
      $region64: #{tpu_custom_call.1} parent=5 // pred_fallthru
        _
      %p580 = scmp.le.s32.totalorder 1, %s35
      %p581 = scmp.lt.s32.totalorder %s35, 3
      %p582 = pnand %p580, %p581
      %p583 = pneg %p582
      // Predicated region
      $region73: #{tpu_custom_call.1} parent=5 // pred_check
        _
      $region74: #{tpu_custom_call.1} parent=5 // pred_check_branch
        %585 = sbr.rel (%p582) target = $region76
      $region75: #{tpu_custom_call.1} parent=5 // pred_region
        %s586 = ssub.s32 %s35, 1
        %s587 = sand.u32 %s60, 1
        %s588 = scalar_lea.sflag [#allocation4], %s587
        %s589 = sand.u32 %s60, 1
        %s590 = smul.addr %s589, 8
        %s591 = scalar_lea.vmem [#allocation3], %s590
        // Predicated region
        $region77: #{tpu_custom_call.1} parent=75 // pred_check
          %p592 = pneg %p73
        $region78: #{tpu_custom_call.1} parent=75 // pred_check_branch
          %594 = sbr.rel (%p592) target = $region80
        $region79: #{tpu_custom_call.1} parent=75 // pred_region
          %595 = dma.done %s588, 128
        $region80: #{tpu_custom_call.1} parent=75 // pred_fallthru
          _
        %s596 = sand.u32 %s40, 1
        %s597 = scalar_lea.sflag [#allocation7], %s596
        %s598 = sand.u32 %s88, 1
        %s599 = smul.addr %s598, 16
        %s600 = scalar_lea.vmem [#allocation6], %s599
        // Predicated region
        $region81: #{tpu_custom_call.1} parent=75 // pred_check
          %p601 = pneg %p101
        $region82: #{tpu_custom_call.1} parent=75 // pred_check_branch
          %603 = sbr.rel (%p601) target = $region84
        $region83: #{tpu_custom_call.1} parent=75 // pred_region
          %604 = dma.done %s597, 256
        $region84: #{tpu_custom_call.1} parent=75 // pred_fallthru
          _
        // Predicated region
        $region85: #{tpu_custom_call.1} parent=75 // pred_check
          %p605 = pneg %p122
        $region86: #{tpu_custom_call.1} parent=75 // pred_check_branch
          %607 = sbr.rel (%p605) target = $region88
        $region87: #{tpu_custom_call.1} parent=75 // pred_region
          %608 = dma.done [#allocation7], 16
        $region88: #{tpu_custom_call.1} parent=75 // pred_fallthru
          _
        // Predicated region
        $region89: #{tpu_custom_call.1} parent=75 // pred_check
          %p609 = pneg %p143
        $region90: #{tpu_custom_call.1} parent=75 // pred_check_branch
          %611 = sbr.rel (%p609) target = $region92
        $region91: #{tpu_custom_call.1} parent=75 // pred_region
          %612 = dma.done [#allocation10], 16
        $region92: #{tpu_custom_call.1} parent=75 // pred_fallthru
          _
        // Predicated region
        $region93: #{tpu_custom_call.1} parent=75 // pred_check
          %p613 = pneg %p164
        $region94: #{tpu_custom_call.1} parent=75 // pred_check_branch
          %615 = sbr.rel (%p613) target = $region96
        $region95: #{tpu_custom_call.1} parent=75 // pred_region
          %616 = dma.done [#allocation10], 256
        $region96: #{tpu_custom_call.1} parent=75 // pred_fallthru
          _
        // Predicated region
        $region97: #{tpu_custom_call.1} parent=75 // pred_check
          %p617 = pneg %p185
        $region98: #{tpu_custom_call.1} parent=75 // pred_check_branch
          %619 = sbr.rel (%p617) target = $region100
        $region99: #{tpu_custom_call.1} parent=75 // pred_region
          %620 = dma.done [#allocation13], 16
        $region100: #{tpu_custom_call.1} parent=75 // pred_fallthru
          _
        // Predicated region
        $region101: #{tpu_custom_call.1} parent=75 // pred_check
          %p621 = pneg %p206
        $region102: #{tpu_custom_call.1} parent=75 // pred_check_branch
          %623 = sbr.rel (%p621) target = $region104
        $region103: #{tpu_custom_call.1} parent=75 // pred_region
          %624 = dma.done [#allocation13], 256
        $region104: #{tpu_custom_call.1} parent=75 // pred_fallthru
          _
        // Predicated region
        $region105: #{tpu_custom_call.1} parent=75 // pred_check
          %p625 = pneg %p227
        $region106: #{tpu_custom_call.1} parent=75 // pred_check_branch
          %627 = sbr.rel (%p625) target = $region108
        $region107: #{tpu_custom_call.1} parent=75 // pred_region
          %628 = dma.done [#allocation16], 16
        $region108: #{tpu_custom_call.1} parent=75 // pred_fallthru
          _
        // Predicated region
        $region109: #{tpu_custom_call.1} parent=75 // pred_check
          %p629 = pneg %p248
        $region110: #{tpu_custom_call.1} parent=75 // pred_check_branch
          %631 = sbr.rel (%p629) target = $region112
        $region111: #{tpu_custom_call.1} parent=75 // pred_region
          %632 = dma.done [#allocation16], 16
        $region112: #{tpu_custom_call.1} parent=75 // pred_fallthru
          _
        // Predicated region
        $region113: #{tpu_custom_call.1} parent=75 // pred_check
          %p633 = pneg %p269
        $region114: #{tpu_custom_call.1} parent=75 // pred_check_branch
          %635 = sbr.rel (%p633) target = $region116
        $region115: #{tpu_custom_call.1} parent=75 // pred_region
          %636 = dma.done [#allocation19], 16
        $region116: #{tpu_custom_call.1} parent=75 // pred_fallthru
          _
        // Predicated region
        $region117: #{tpu_custom_call.1} parent=75 // pred_check
          %p637 = pneg %p290
        $region118: #{tpu_custom_call.1} parent=75 // pred_check_branch
          %639 = sbr.rel (%p637) target = $region120
        $region119: #{tpu_custom_call.1} parent=75 // pred_region
          %640 = dma.done [#allocation19], 256
        $region120: #{tpu_custom_call.1} parent=75 // pred_fallthru
          _
        // Predicated region
        $region121: #{tpu_custom_call.1} parent=75 // pred_check
          %p641 = pneg %p311
        $region122: #{tpu_custom_call.1} parent=75 // pred_check_branch
          %643 = sbr.rel (%p641) target = $region124
        $region123: #{tpu_custom_call.1} parent=75 // pred_region
          %644 = dma.done [#allocation22], 16
        $region124: #{tpu_custom_call.1} parent=75 // pred_fallthru
          _
        // Predicated region
        $region125: #{tpu_custom_call.1} parent=75 // pred_check
          %p645 = pneg %p332
        $region126: #{tpu_custom_call.1} parent=75 // pred_check_branch
          %647 = sbr.rel (%p645) target = $region128
        $region127: #{tpu_custom_call.1} parent=75 // pred_region
          %648 = dma.done [#allocation22], 512
        $region128: #{tpu_custom_call.1} parent=75 // pred_fallthru
          _
        // Predicated region
        $region129: #{tpu_custom_call.1} parent=75 // pred_check
          %p649 = pneg %p353
        $region130: #{tpu_custom_call.1} parent=75 // pred_check_branch
          %651 = sbr.rel (%p649) target = $region132
        $region131: #{tpu_custom_call.1} parent=75 // pred_region
          %652 = dma.done [#allocation25], 16
        $region132: #{tpu_custom_call.1} parent=75 // pred_fallthru
          _
        %s653 = sand.u32 %s60, 1
        %s654 = scalar_lea.sflag [#allocation4], %s653
        %s655 = sand.u32 %s60, 1
        %s656 = smul.addr %s655, 8
        %s657 = scalar_lea.vmem [#allocation3], %s656
        %p658 = pneg %p73
        %p659 = pneg %p70
        %s660 = sand.u32 %s40, 1
        %s661 = scalar_lea.sflag [#allocation7], %s660
        %s662 = sand.u32 %s88, 1
        %s663 = smul.addr %s662, 16
        %s664 = scalar_lea.vmem [#allocation6], %s663
        %p665 = pneg %p101
        %p666 = pneg %p98
        %p667 = pneg %p122
        %p668 = pneg %p119
        %p669 = pneg %p143
        %p670 = pneg %p140
        %p671 = pneg %p164
        %p672 = pneg %p161
        %p673 = pneg %p185
        %p674 = pneg %p182
        %p675 = pneg %p206
        %p676 = pneg %p203
        %p677 = pneg %p227
        %p678 = pneg %p224
        %p679 = pneg %p248
        %p680 = pneg %p245
        %p681 = pneg %p269
        %p682 = pneg %p266
        %p683 = pneg %p290
        %p684 = pneg %p287
        %p685 = pneg %p311
        %p686 = pneg %p308
        %p687 = pneg %p332
        %p688 = pneg %p329
        %p689 = pneg %p353
        %p690 = pneg %p350
        %p691 = pneg %p381
        %p692 = pneg %p378
        %s693 = sand.u32 %s368, 1
        %s694 = scalar_lea.sflag [#allocation5], %s693
        %s695 = sand.u32 %s368, 1
        %s696 = smul.addr %s695, 8
        %s697 = scalar_lea.vmem [#allocation26], %s696
        %s699 = smul.u32 %s45, 8
        %p700 = scmp.eq.s32.totalorder %s45, 0
        // Predicated region
        $region133: #{tpu_custom_call.1} parent=75 // pred_check
          %p701 = pneg %p700
        $region134: #{tpu_custom_call.1} parent=75 // pred_check_branch
          %703 = sbr.rel (%p701) target = $region136
        $region135: #{tpu_custom_call.1} parent=75 // pred_region
          %v704 = vld [vmem:[%s591] sm:$0xff]
          %v705 = vld [vmem:[#allocation8] sm:$0x1]
          %v706 = vld [vmem:[#allocation9] sm:$0x1]
          %vm707 = vcmask 261120
          %v708 = vsel %vm707, %v704, 0.0
          %709 = vadd.xlane.f32.xlu0 %v708
          %v710 = vpop.xlane.xlu0 %709
          %v711 = vrcp.pop 32.0
          %v712 = vmul.f32 %v710, %v711
          %v713 = vsub.f32 %v704, %v712
          %v714 = vmul.f32 %v713, %v713
          %v715 = vsel %vm707, %v714, 0.0
          %716 = vadd.xlane.f32.xlu0 %v715
          %v717 = vpop.xlane.xlu0 %716
          %v718 = vmul.f32 %v717, %v711
          %v719 = vadd.f32 %v718, 1e-05
          %v720 = vrsqrt.pop %v719
          %v721 = vmul.f32 %v713, %v720
          %v723 = vlaneseq
          %v724 = vshrl.u32 %v723, 7
          %v725 = vsub.s32 0, %v724
          %v726 = vrot.slane %v705, %v725
          %v728 = vmul.f32 %v721, %v726
          %v730 = vlaneseq
          %v731 = vshrl.u32 %v730, 7
          %v732 = vsub.s32 0, %v731
          %v733 = vrot.slane %v706, %v732
          %v735 = vadd.f32 %v728, %v733
          %v736 = vpack.c.bf16 %v735, %v735
          %v737 = vld [vmem:[#allocation11] sm:$0xf]
          %v738 = vld [vmem:[#allocation11 + $0x4] sm:$0xf]
          %v739 = vld [vmem:[#allocation11 + $0x8] sm:$0xf]
          %v740 = vld [vmem:[#allocation11 + $0xc] sm:$0xf]
          %v741 = vld [vmem:[#allocation12] sm:$0x1]
          %v743 = vlaneseq
          %v744 = vshrl.u32 %v743, 7
          %v745 = vsub.s32 0, %v744
          %v746 = vrot.slane %v741, %v745
          %v752 = vunpack.c.l.b16 %v737
          %v753 = vunpack.c.l.b16 %v738
          %v754 = vunpack.c.l.b16 %v739
          %v755 = vunpack.c.l.b16 %v740
          %v756 = vpack.c.b16 %v753, %v752
          %v757 = vpack.c.b16 %v755, %v754
          %v761 = vsel %vm707, %v736, 0
          %763 = vmatprep.subr.bf16.mxu0 0
          %764 = vmatpush1.bf16.msra.mxu0 %v756
          %765 = vmatprep.subr.bf16.mxu0 0
          %766 = vmatpush1.bf16.msra.mxu0 %v757
          %767 = vmatprep.subr.bf16.mxu0 0
          %768 = vmatpush1.bf16.msra.mxu0 0
          %769 = vmatprep.subr.bf16.mxu0 0
          %770 = vmatpush1.bf16.msra.mxu0 0
          %771 = vmatprep.subr.bf16.mxu0 0
          %772 = vmatpush1.bf16.msra.mxu0 0
          %773 = vmatprep.subr.bf16.mxu0 0
          %774 = vmatpush1.bf16.msra.mxu0 0
          %775 = vmatprep.subr.bf16.mxu0 0
          %776 = vmatpush1.bf16.msra.mxu0 0
          %777 = vmatprep.subr.bf16.mxu0 0
          %778 = vmatpush1.bf16.msra.mxu0 0
          %779 = vmatprep.subr.bf16.mxu0 0
          %780 = vmatpush1.bf16.msra.mxu0 0
          %781 = vmatprep.subr.bf16.mxu0 0
          %782 = vmatpush1.bf16.msra.mxu0 0
          %783 = vmatprep.subr.bf16.mxu0 0
          %784 = vmatpush1.bf16.msra.mxu0 0
          %785 = vmatprep.subr.bf16.mxu0 0
          %786 = vmatpush1.bf16.msra.mxu0 0
          %787 = vmatprep.subr.bf16.mxu0 0
          %788 = vmatpush1.bf16.msra.mxu0 0
          %789 = vmatprep.subr.bf16.mxu0 0
          %790 = vmatpush1.bf16.msra.mxu0 0
          %791 = vmatprep.subr.bf16.mxu0 0
          %792 = vmatpush1.bf16.msra.mxu0 0
          %793 = vmatprep.subr.bf16.mxu0 0
          %794 = vmatpush1.bf16.msra.mxu0 0
          %795 = vmatprep.mubr.bf16.mxu0 0
          %796 = vmatmul.mubr.bf16.gmra.mrb[0].mxu0 %v761
          %v797 = vpop.f32.mrb[0].mxu0
          %v798 = vadd.f32 %v746, %v797
          %v799 = vpop.f32.mrb[0].mxu0
          %v800 = vpop.f32.mrb[0].mxu0
          %v801 = vpop.f32.mrb[0].mxu0
          %802 = vdwg.mxu0
          %v803 = vpack.c.bf16 %v798, %v798
          %vm804 = vcmask 257024
          %805 = vst.msk [vmem:[#allocation2] sm:$0xf] %vm804, %v803
          %v807 = vunpack.c.l.b16 %v803
          %v808 = vpack.c.b16 %v807, %v807
          %809 = vrot.lane.b32.xlu0 %v808, 96
          %v810 = vpop.permute.xlu0 %809
          %s812 = scalar_lea.vmem [#allocation2], 4
          %813 = vst.msk [vmem:[%s812] sm:$0xf] %vm804, %v810
          %814 = vrot.lane.b32.xlu0 %v808, 64
          %v815 = vpop.permute.xlu0 %814
          %s817 = scalar_lea.vmem [#allocation2], 8
          %818 = vst.msk [vmem:[%s817] sm:$0xf] %vm804, %v815
        $region136: #{tpu_custom_call.1} parent=75 // pred_fallthru
          _
        %s819 = sshra.s32 %s699, 3
        %s820 = sand.u32 %s699, 7
        %s821 = smul.addr %s819, 4
        %s822 = scalar_lea.vmem [#allocation2], %s821
        %v823 = vld [vmem:[%s822] sm:$0xf]
        %s824 = scalar_lea.vmem [#allocation2], 4
        %v825 = vld [vmem:[%s824] sm:$0xf]
        %s826 = scalar_lea.vmem [#allocation2], 8
        %v827 = vld [vmem:[%s826] sm:$0xf]
        %v828 = vld [vmem:[%s600] sm:$0xf]
        %v829 = vunpack.c.l.bf16 %v828
        %vm830 = vcmask 64512
        %v832 = vsel %vm830, %v823, 0
        %v835 = vsel %vm830, %v825, 0
        %837 = vmatprep.subr.bf16.mxu0 0
        %838 = vmatpush1.bf16.xpose.msra.mxu0 %v835
        %839 = vmatprep.subr.bf16.mxu0 0
        %840 = vmatpush1.bf16.xpose.msra.mxu0 0
        %841 = vmatprep.subr.bf16.mxu0 0
        %842 = vmatpush1.bf16.xpose.msra.mxu0 0
        %843 = vmatprep.subr.bf16.mxu0 0
        %844 = vmatpush1.bf16.xpose.msra.mxu0 0
        %845 = vmatprep.subr.bf16.mxu0 0
        %846 = vmatpush1.bf16.xpose.msra.mxu0 0
        %847 = vmatprep.subr.bf16.mxu0 0
        %848 = vmatpush1.bf16.xpose.msra.mxu0 0
        %849 = vmatprep.subr.bf16.mxu0 0
        %850 = vmatpush1.bf16.xpose.msra.mxu0 0
        %851 = vmatprep.subr.bf16.mxu0 0
        %852 = vmatpush1.bf16.xpose.msra.mxu0 0
        %853 = vmatprep.subr.bf16.mxu0 0
        %854 = vmatpush1.bf16.xpose.msra.mxu0 0
        %855 = vmatprep.subr.bf16.mxu0 0
        %856 = vmatpush1.bf16.xpose.msra.mxu0 0
        %857 = vmatprep.subr.bf16.mxu0 0
        %858 = vmatpush1.bf16.xpose.msra.mxu0 0
        %859 = vmatprep.subr.bf16.mxu0 0
        %860 = vmatpush1.bf16.xpose.msra.mxu0 0
        %861 = vmatprep.subr.bf16.mxu0 0
        %862 = vmatpush1.bf16.xpose.msra.mxu0 0
        %863 = vmatprep.subr.bf16.mxu0 0
        %864 = vmatpush1.bf16.xpose.msra.mxu0 0
        %865 = vmatprep.subr.bf16.mxu0 0
        %866 = vmatpush1.bf16.xpose.msra.mxu0 0
        %867 = vmatprep.subr.bf16.mxu0 0
        %868 = vmatpush1.bf16.xpose.msra.mxu0 0
        %869 = vmatprep.mubr.bf16.mxu0 0
        %870 = vmatmul.mubr.bf16.gmra.mrb[0].mxu0 %v832
        %v871 = vpop.f32.mrb[0].mxu0
        %v872 = vadd.f32 %v829, %v871
        %v873 = vpop.f32.mrb[0].mxu0
        %v874 = vpop.f32.mrb[0].mxu0
        %v875 = vpop.f32.mrb[0].mxu0
        %876 = vdwg.mxu0
        %v877 = vsel %vm830, %v872, -inf
        %878 = vmax.xlane.f32.xlu0 %v877
        %v879 = vpop.xlane.xlu0 %878
        %v880 = vsub.f32 %v872, %v879
        %v881 = vmul.f32 %v880, 1.442695
        %v882 = vpow.pop %v881
        %v883 = vsel %vm830, %v882, 0.0
        %884 = vadd.xlane.f32.xlu0 %v883
        %v885 = vpop.xlane.xlu0 %884
        %v886 = vpack.c.bf16 %v882, %v882
        %v888 = vsel %vm830, %v886, 0
        %vm890 = vcmask 1043456
        %v892 = vsel %vm890, %v827, 0
        %894 = vmatprep.subr.bf16.mxu0 0
        %895 = vmatpush1.bf16.msra.mxu0 %v892
        %896 = vmatprep.subr.bf16.mxu0 0
        %897 = vmatpush1.bf16.msra.mxu0 0
        %898 = vmatprep.subr.bf16.mxu0 0
        %899 = vmatpush1.bf16.msra.mxu0 0
        %900 = vmatprep.subr.bf16.mxu0 0
        %901 = vmatpush1.bf16.msra.mxu0 0
        %902 = vmatprep.subr.bf16.mxu0 0
        %903 = vmatpush1.bf16.msra.mxu0 0
        %904 = vmatprep.subr.bf16.mxu0 0
        %905 = vmatpush1.bf16.msra.mxu0 0
        %906 = vmatprep.subr.bf16.mxu0 0
        %907 = vmatpush1.bf16.msra.mxu0 0
        %908 = vmatprep.subr.bf16.mxu0 0
        %909 = vmatpush1.bf16.msra.mxu0 0
        %910 = vmatprep.subr.bf16.mxu0 0
        %911 = vmatpush1.bf16.msra.mxu0 0
        %912 = vmatprep.subr.bf16.mxu0 0
        %913 = vmatpush1.bf16.msra.mxu0 0
        %914 = vmatprep.subr.bf16.mxu0 0
        %915 = vmatpush1.bf16.msra.mxu0 0
        %916 = vmatprep.subr.bf16.mxu0 0
        %917 = vmatpush1.bf16.msra.mxu0 0
        %918 = vmatprep.subr.bf16.mxu0 0
        %919 = vmatpush1.bf16.msra.mxu0 0
        %920 = vmatprep.subr.bf16.mxu0 0
        %921 = vmatpush1.bf16.msra.mxu0 0
        %922 = vmatprep.subr.bf16.mxu0 0
        %923 = vmatpush1.bf16.msra.mxu0 0
        %924 = vmatprep.subr.bf16.mxu0 0
        %925 = vmatpush1.bf16.msra.mxu0 0
        %926 = vmatprep.mubr.bf16.mxu0 0
        %927 = vmatmul.mubr.bf16.gmra.mrb[0].mxu0 %v888
        %v928 = vpop.f32.mrb[0].mxu0
        %v929 = vadd.f32 0.0, %v928
        %v930 = vpop.f32.mrb[0].mxu0
        %v931 = vpop.f32.mrb[0].mxu0
        %v932 = vpop.f32.mrb[0].mxu0
        %933 = vdwg.mxu0
        %v934 = vrcp.pop %v885
        %v935 = vmul.f32 %v929, %v934
        %s936 = scalar_lea.vmem %s600, 4 [#allocation6]
        %v937 = vld [vmem:[%s936] sm:$0xf]
        %v938 = vunpack.c.l.bf16 %v937
        %v940 = vunpack.c.l.b16 %v823
        %v941 = vpack.c.b16 %v940, %v940
        %942 = vrot.lane.b32.xlu0 %v941, 120
        %v943 = vpop.permute.xlu0 %942
        %v945 = vunpack.c.l.b16 %v825
        %v946 = vpack.c.b16 %v945, %v945
        %947 = vrot.lane.b32.xlu0 %v946, 120
        %v948 = vpop.permute.xlu0 %947
        %v950 = vsel %vm830, %v943, 0
        %v953 = vsel %vm830, %v948, 0
        %955 = vmatprep.subr.bf16.mxu0 0
        %956 = vmatpush1.bf16.xpose.msra.mxu0 %v953
        %957 = vmatprep.subr.bf16.mxu0 0
        %958 = vmatpush1.bf16.xpose.msra.mxu0 0
        %959 = vmatprep.subr.bf16.mxu0 0
        %960 = vmatpush1.bf16.xpose.msra.mxu0 0
        %961 = vmatprep.subr.bf16.mxu0 0
        %962 = vmatpush1.bf16.xpose.msra.mxu0 0
        %963 = vmatprep.subr.bf16.mxu0 0
        %964 = vmatpush1.bf16.xpose.msra.mxu0 0
        %965 = vmatprep.subr.bf16.mxu0 0
        %966 = vmatpush1.bf16.xpose.msra.mxu0 0
        %967 = vmatprep.subr.bf16.mxu0 0
        %968 = vmatpush1.bf16.xpose.msra.mxu0 0
        %969 = vmatprep.subr.bf16.mxu0 0
        %970 = vmatpush1.bf16.xpose.msra.mxu0 0
        %971 = vmatprep.subr.bf16.mxu0 0
        %972 = vmatpush1.bf16.xpose.msra.mxu0 0
        %973 = vmatprep.subr.bf16.mxu0 0
        %974 = vmatpush1.bf16.xpose.msra.mxu0 0
        %975 = vmatprep.subr.bf16.mxu0 0
        %976 = vmatpush1.bf16.xpose.msra.mxu0 0
        %977 = vmatprep.subr.bf16.mxu0 0
        %978 = vmatpush1.bf16.xpose.msra.mxu0 0
        %979 = vmatprep.subr.bf16.mxu0 0
        %980 = vmatpush1.bf16.xpose.msra.mxu0 0
        %981 = vmatprep.subr.bf16.mxu0 0
        %982 = vmatpush1.bf16.xpose.msra.mxu0 0
        %983 = vmatprep.subr.bf16.mxu0 0
        %984 = vmatpush1.bf16.xpose.msra.mxu0 0
        %985 = vmatprep.subr.bf16.mxu0 0
        %986 = vmatpush1.bf16.xpose.msra.mxu0 0
        %987 = vmatprep.mubr.bf16.mxu0 0
        %988 = vmatmul.mubr.bf16.gmra.mrb[0].mxu0 %v950
        %v989 = vpop.f32.mrb[0].mxu0
        %v990 = vadd.f32 %v938, %v989
        %v991 = vpop.f32.mrb[0].mxu0
        %v992 = vpop.f32.mrb[0].mxu0
        %v993 = vpop.f32.mrb[0].mxu0
        %994 = vdwg.mxu0
        %v995 = vsel %vm830, %v990, -inf
        %996 = vmax.xlane.f32.xlu0 %v995
        %v997 = vpop.xlane.xlu0 %996
        %v998 = vsub.f32 %v990, %v997
        %v999 = vmul.f32 %v998, 1.442695
        %v1000 = vpow.pop %v999
        %v1001 = vsel %vm830, %v1000, 0.0
        %1002 = vadd.xlane.f32.xlu0 %v1001
        %v1003 = vpop.xlane.xlu0 %1002
        %v1004 = vpack.c.bf16 %v1000, %v1000
        %v1006 = vunpack.c.l.b16 %v827
        %v1007 = vpack.c.b16 %v1006, %v1006
        %1008 = vrot.lane.b32.xlu0 %v1007, 120
        %v1009 = vpop.permute.xlu0 %1008
        %v1011 = vsel %vm830, %v1004, 0
        %v1014 = vsel %vm890, %v1009, 0
        %1016 = vmatprep.subr.bf16.mxu0 0
        %1017 = vmatpush1.bf16.msra.mxu0 %v1014
        %1018 = vmatprep.subr.bf16.mxu0 0
        %1019 = vmatpush1.bf16.msra.mxu0 0
        %1020 = vmatprep.subr.bf16.mxu0 0
        %1021 = vmatpush1.bf16.msra.mxu0 0
        %1022 = vmatprep.subr.bf16.mxu0 0
        %1023 = vmatpush1.bf16.msra.mxu0 0
        %1024 = vmatprep.subr.bf16.mxu0 0
        %1025 = vmatpush1.bf16.msra.mxu0 0
        %1026 = vmatprep.subr.bf16.mxu0 0
        %1027 = vmatpush1.bf16.msra.mxu0 0
        %1028 = vmatprep.subr.bf16.mxu0 0
        %1029 = vmatpush1.bf16.msra.mxu0 0
        %1030 = vmatprep.subr.bf16.mxu0 0
        %1031 = vmatpush1.bf16.msra.mxu0 0
        %1032 = vmatprep.subr.bf16.mxu0 0
        %1033 = vmatpush1.bf16.msra.mxu0 0
        %1034 = vmatprep.subr.bf16.mxu0 0
        %1035 = vmatpush1.bf16.msra.mxu0 0
        %1036 = vmatprep.subr.bf16.mxu0 0
        %1037 = vmatpush1.bf16.msra.mxu0 0
        %1038 = vmatprep.subr.bf16.mxu0 0
        %1039 = vmatpush1.bf16.msra.mxu0 0
        %1040 = vmatprep.subr.bf16.mxu0 0
        %1041 = vmatpush1.bf16.msra.mxu0 0
        %1042 = vmatprep.subr.bf16.mxu0 0
        %1043 = vmatpush1.bf16.msra.mxu0 0
        %1044 = vmatprep.subr.bf16.mxu0 0
        %1045 = vmatpush1.bf16.msra.mxu0 0
        %1046 = vmatprep.subr.bf16.mxu0 0
        %1047 = vmatpush1.bf16.msra.mxu0 0
        %1048 = vmatprep.mubr.bf16.mxu0 0
        %1049 = vmatmul.mubr.bf16.gmra.mrb[0].mxu0 %v1011
        %v1050 = vpop.f32.mrb[0].mxu0
        %v1051 = vadd.f32 0.0, %v1050
        %v1052 = vpop.f32.mrb[0].mxu0
        %v1053 = vpop.f32.mrb[0].mxu0
        %v1054 = vpop.f32.mrb[0].mxu0
        %1055 = vdwg.mxu0
        %v1056 = vrcp.pop %v1003
        %v1057 = vmul.f32 %v1051, %v1056
        %s1058 = scalar_lea.vmem %s600, 8 [#allocation6]
        %v1059 = vld [vmem:[%s1058] sm:$0xf]
        %v1060 = vunpack.c.l.bf16 %v1059
        %1061 = vrot.lane.b32.xlu0 %v941, 112
        %v1062 = vpop.permute.xlu0 %1061
        %1063 = vrot.lane.b32.xlu0 %v946, 112
        %v1064 = vpop.permute.xlu0 %1063
        %v1066 = vsel %vm830, %v1062, 0
        %v1069 = vsel %vm830, %v1064, 0
        %1071 = vmatprep.subr.bf16.mxu0 0
        %1072 = vmatpush1.bf16.xpose.msra.mxu0 %v1069
        %1073 = vmatprep.subr.bf16.mxu0 0
        %1074 = vmatpush1.bf16.xpose.msra.mxu0 0
        %1075 = vmatprep.subr.bf16.mxu0 0
        %1076 = vmatpush1.bf16.xpose.msra.mxu0 0
        %1077 = vmatprep.subr.bf16.mxu0 0
        %1078 = vmatpush1.bf16.xpose.msra.mxu0 0
        %1079 = vmatprep.subr.bf16.mxu0 0
        %1080 = vmatpush1.bf16.xpose.msra.mxu0 0
        %1081 = vmatprep.subr.bf16.mxu0 0
        %1082 = vmatpush1.bf16.xpose.msra.mxu0 0
        %1083 = vmatprep.subr.bf16.mxu0 0
        %1084 = vmatpush1.bf16.xpose.msra.mxu0 0
        %1085 = vmatprep.subr.bf16.mxu0 0
        %1086 = vmatpush1.bf16.xpose.msra.mxu0 0
        %1087 = vmatprep.subr.bf16.mxu0 0
        %1088 = vmatpush1.bf16.xpose.msra.mxu0 0
        %1089 = vmatprep.subr.bf16.mxu0 0
        %1090 = vmatpush1.bf16.xpose.msra.mxu0 0
        %1091 = vmatprep.subr.bf16.mxu0 0
        %1092 = vmatpush1.bf16.xpose.msra.mxu0 0
        %1093 = vmatprep.subr.bf16.mxu0 0
        %1094 = vmatpush1.bf16.xpose.msra.mxu0 0
        %1095 = vmatprep.subr.bf16.mxu0 0
        %1096 = vmatpush1.bf16.xpose.msra.mxu0 0
        %1097 = vmatprep.subr.bf16.mxu0 0
        %1098 = vmatpush1.bf16.xpose.msra.mxu0 0
        %1099 = vmatprep.subr.bf16.mxu0 0
        %1100 = vmatpush1.bf16.xpose.msra.mxu0 0
        %1101 = vmatprep.subr.bf16.mxu0 0
        %1102 = vmatpush1.bf16.xpose.msra.mxu0 0
        %1103 = vmatprep.mubr.bf16.mxu0 0
        %1104 = vmatmul.mubr.bf16.gmra.mrb[0].mxu0 %v1066
        %v1105 = vpop.f32.mrb[0].mxu0
        %v1106 = vadd.f32 %v1060, %v1105
        %v1107 = vpop.f32.mrb[0].mxu0
        %v1108 = vpop.f32.mrb[0].mxu0
        %v1109 = vpop.f32.mrb[0].mxu0
        %1110 = vdwg.mxu0
        %v1111 = vsel %vm830, %v1106, -inf
        %1112 = vmax.xlane.f32.xlu0 %v1111
        %v1113 = vpop.xlane.xlu0 %1112
        %v1114 = vsub.f32 %v1106, %v1113
        %v1115 = vmul.f32 %v1114, 1.442695
        %v1116 = vpow.pop %v1115
        %v1117 = vsel %vm830, %v1116, 0.0
        %1118 = vadd.xlane.f32.xlu0 %v1117
        %v1119 = vpop.xlane.xlu0 %1118
        %v1120 = vpack.c.bf16 %v1116, %v1116
        %1121 = vrot.lane.b32.xlu0 %v1007, 112
        %v1122 = vpop.permute.xlu0 %1121
        %v1124 = vsel %vm830, %v1120, 0
        %v1127 = vsel %vm890, %v1122, 0
        %1129 = vmatprep.subr.bf16.mxu0 0
        %1130 = vmatpush1.bf16.msra.mxu0 %v1127
        %1131 = vmatprep.subr.bf16.mxu0 0
        %1132 = vmatpush1.bf16.msra.mxu0 0
        %1133 = vmatprep.subr.bf16.mxu0 0
        %1134 = vmatpush1.bf16.msra.mxu0 0
        %1135 = vmatprep.subr.bf16.mxu0 0
        %1136 = vmatpush1.bf16.msra.mxu0 0
        %1137 = vmatprep.subr.bf16.mxu0 0
        %1138 = vmatpush1.bf16.msra.mxu0 0
        %1139 = vmatprep.subr.bf16.mxu0 0
        %1140 = vmatpush1.bf16.msra.mxu0 0
        %1141 = vmatprep.subr.bf16.mxu0 0
        %1142 = vmatpush1.bf16.msra.mxu0 0
        %1143 = vmatprep.subr.bf16.mxu0 0
        %1144 = vmatpush1.bf16.msra.mxu0 0
        %1145 = vmatprep.subr.bf16.mxu0 0
        %1146 = vmatpush1.bf16.msra.mxu0 0
        %1147 = vmatprep.subr.bf16.mxu0 0
        %1148 = vmatpush1.bf16.msra.mxu0 0
        %1149 = vmatprep.subr.bf16.mxu0 0
        %1150 = vmatpush1.bf16.msra.mxu0 0
        %1151 = vmatprep.subr.bf16.mxu0 0
        %1152 = vmatpush1.bf16.msra.mxu0 0
        %1153 = vmatprep.subr.bf16.mxu0 0
        %1154 = vmatpush1.bf16.msra.mxu0 0
        %1155 = vmatprep.subr.bf16.mxu0 0
        %1156 = vmatpush1.bf16.msra.mxu0 0
        %1157 = vmatprep.subr.bf16.mxu0 0
        %1158 = vmatpush1.bf16.msra.mxu0 0
        %1159 = vmatprep.subr.bf16.mxu0 0
        %1160 = vmatpush1.bf16.msra.mxu0 0
        %1161 = vmatprep.mubr.bf16.mxu0 0
        %1162 = vmatmul.mubr.bf16.gmra.mrb[0].mxu0 %v1124
        %v1163 = vpop.f32.mrb[0].mxu0
        %v1164 = vadd.f32 0.0, %v1163
        %v1165 = vpop.f32.mrb[0].mxu0
        %v1166 = vpop.f32.mrb[0].mxu0
        %v1167 = vpop.f32.mrb[0].mxu0
        %1168 = vdwg.mxu0
        %v1169 = vrcp.pop %v1119
        %v1170 = vmul.f32 %v1164, %v1169
        %s1171 = scalar_lea.vmem %s600, 12 [#allocation6]
        %v1172 = vld [vmem:[%s1171] sm:$0xf]
        %v1173 = vunpack.c.l.bf16 %v1172
        %1174 = vrot.lane.b32.xlu0 %v941, 104
        %v1175 = vpop.permute.xlu0 %1174
        %1176 = vrot.lane.b32.xlu0 %v946, 104
        %v1177 = vpop.permute.xlu0 %1176
        %v1179 = vsel %vm830, %v1175, 0
        %v1182 = vsel %vm830, %v1177, 0
        %1184 = vmatprep.subr.bf16.mxu0 0
        %1185 = vmatpush1.bf16.xpose.msra.mxu0 %v1182
        %1186 = vmatprep.subr.bf16.mxu0 0
        %1187 = vmatpush1.bf16.xpose.msra.mxu0 0
        %1188 = vmatprep.subr.bf16.mxu0 0
        %1189 = vmatpush1.bf16.xpose.msra.mxu0 0
        %1190 = vmatprep.subr.bf16.mxu0 0
        %1191 = vmatpush1.bf16.xpose.msra.mxu0 0
        %1192 = vmatprep.subr.bf16.mxu0 0
        %1193 = vmatpush1.bf16.xpose.msra.mxu0 0
        %1194 = vmatprep.subr.bf16.mxu0 0
        %1195 = vmatpush1.bf16.xpose.msra.mxu0 0
        %1196 = vmatprep.subr.bf16.mxu0 0
        %1197 = vmatpush1.bf16.xpose.msra.mxu0 0
        %1198 = vmatprep.subr.bf16.mxu0 0
        %1199 = vmatpush1.bf16.xpose.msra.mxu0 0
        %1200 = vmatprep.subr.bf16.mxu0 0
        %1201 = vmatpush1.bf16.xpose.msra.mxu0 0
        %1202 = vmatprep.subr.bf16.mxu0 0
        %1203 = vmatpush1.bf16.xpose.msra.mxu0 0
        %1204 = vmatprep.subr.bf16.mxu0 0
        %1205 = vmatpush1.bf16.xpose.msra.mxu0 0
        %1206 = vmatprep.subr.bf16.mxu0 0
        %1207 = vmatpush1.bf16.xpose.msra.mxu0 0
        %1208 = vmatprep.subr.bf16.mxu0 0
        %1209 = vmatpush1.bf16.xpose.msra.mxu0 0
        %1210 = vmatprep.subr.bf16.mxu0 0
        %1211 = vmatpush1.bf16.xpose.msra.mxu0 0
        %1212 = vmatprep.subr.bf16.mxu0 0
        %1213 = vmatpush1.bf16.xpose.msra.mxu0 0
        %1214 = vmatprep.subr.bf16.mxu0 0
        %1215 = vmatpush1.bf16.xpose.msra.mxu0 0
        %1216 = vmatprep.mubr.bf16.mxu0 0
        %1217 = vmatmul.mubr.bf16.gmra.mrb[0].mxu0 %v1179
        %v1218 = vpop.f32.mrb[0].mxu0
        %v1219 = vadd.f32 %v1173, %v1218
        %v1220 = vpop.f32.mrb[0].mxu0
        %v1221 = vpop.f32.mrb[0].mxu0
        %v1222 = vpop.f32.mrb[0].mxu0
        %1223 = vdwg.mxu0
        %v1224 = vsel %vm830, %v1219, -inf
        %1225 = vmax.xlane.f32.xlu0 %v1224
        %v1226 = vpop.xlane.xlu0 %1225
        %v1227 = vsub.f32 %v1219, %v1226
        %v1228 = vmul.f32 %v1227, 1.442695
        %v1229 = vpow.pop %v1228
        %v1230 = vsel %vm830, %v1229, 0.0
        %1231 = vadd.xlane.f32.xlu0 %v1230
        %v1232 = vpop.xlane.xlu0 %1231
        %v1233 = vpack.c.bf16 %v1229, %v1229
        %1234 = vrot.lane.b32.xlu0 %v1007, 104
        %v1235 = vpop.permute.xlu0 %1234
        %v1237 = vsel %vm830, %v1233, 0
        %v1240 = vsel %vm890, %v1235, 0
        %1242 = vmatprep.subr.bf16.mxu0 0
        %1243 = vmatpush1.bf16.msra.mxu0 %v1240
        %1244 = vmatprep.subr.bf16.mxu0 0
        %1245 = vmatpush1.bf16.msra.mxu0 0
        %1246 = vmatprep.subr.bf16.mxu0 0
        %1247 = vmatpush1.bf16.msra.mxu0 0
        %1248 = vmatprep.subr.bf16.mxu0 0
        %1249 = vmatpush1.bf16.msra.mxu0 0
        %1250 = vmatprep.subr.bf16.mxu0 0
        %1251 = vmatpush1.bf16.msra.mxu0 0
        %1252 = vmatprep.subr.bf16.mxu0 0
        %1253 = vmatpush1.bf16.msra.mxu0 0
        %1254 = vmatprep.subr.bf16.mxu0 0
        %1255 = vmatpush1.bf16.msra.mxu0 0
        %1256 = vmatprep.subr.bf16.mxu0 0
        %1257 = vmatpush1.bf16.msra.mxu0 0
        %1258 = vmatprep.subr.bf16.mxu0 0
        %1259 = vmatpush1.bf16.msra.mxu0 0
        %1260 = vmatprep.subr.bf16.mxu0 0
        %1261 = vmatpush1.bf16.msra.mxu0 0
        %1262 = vmatprep.subr.bf16.mxu0 0
        %1263 = vmatpush1.bf16.msra.mxu0 0
        %1264 = vmatprep.subr.bf16.mxu0 0
        %1265 = vmatpush1.bf16.msra.mxu0 0
        %1266 = vmatprep.subr.bf16.mxu0 0
        %1267 = vmatpush1.bf16.msra.mxu0 0
        %1268 = vmatprep.subr.bf16.mxu0 0
        %1269 = vmatpush1.bf16.msra.mxu0 0
        %1270 = vmatprep.subr.bf16.mxu0 0
        %1271 = vmatpush1.bf16.msra.mxu0 0
        %1272 = vmatprep.subr.bf16.mxu0 0
        %1273 = vmatpush1.bf16.msra.mxu0 0
        %1274 = vmatprep.mubr.bf16.mxu0 0
        %1275 = vmatmul.mubr.bf16.gmra.mrb[0].mxu0 %v1237
        %v1276 = vpop.f32.mrb[0].mxu0
        %v1277 = vadd.f32 0.0, %v1276
        %v1278 = vpop.f32.mrb[0].mxu0
        %v1279 = vpop.f32.mrb[0].mxu0
        %v1280 = vpop.f32.mrb[0].mxu0
        %1281 = vdwg.mxu0
        %v1282 = vrcp.pop %v1232
        %v1283 = vmul.f32 %v1277, %v1282
        %1285 = vrot.lane.b32.xlu0 %v1057, 8
        %v1286 = vpop.permute.xlu0 %1285
        %1289 = vrot.lane.b32.xlu0 %v1170, 16
        %v1290 = vpop.permute.xlu0 %1289
        %1293 = vrot.lane.b32.xlu0 %v1283, 24
        %v1294 = vpop.permute.xlu0 %1293
        %v1296 = vsel %vm830, %v935, %v1286
        %vm1297 = vcmask 130048
        %v1298 = vsel %vm1297, %v1296, %v1290
        %vm1299 = vcmask 195584
        %v1300 = vsel %vm1299, %v1298, %v1294
        %v1301 = vpack.c.bf16 %v1300, %v1300
        %v1302 = vld [vmem:[#allocation14] sm:$0xf]
        %v1303 = vld [vmem:[#allocation14 + $0x4] sm:$0xf]
        %v1304 = vld [vmem:[#allocation14 + $0x8] sm:$0xf]
        %v1305 = vld [vmem:[#allocation14 + $0xc] sm:$0xf]
        %v1306 = vld [vmem:[#allocation15] sm:$0x1]
        %v1308 = vlaneseq
        %v1309 = vshrl.u32 %v1308, 7
        %v1310 = vsub.s32 0, %v1309
        %v1311 = vrot.slane %v1306, %v1310
        %v1317 = vunpack.c.l.b16 %v1302
        %v1318 = vunpack.c.l.b16 %v1303
        %v1319 = vunpack.c.l.b16 %v1304
        %v1320 = vunpack.c.l.b16 %v1305
        %v1321 = vpack.c.b16 %v1318, %v1317
        %v1322 = vpack.c.b16 %v1320, %v1319
        %vm1325 = vcmask 261120
        %v1327 = vsel %vm1325, %v1301, 0
        %1329 = vmatprep.subr.bf16.mxu0 0
        %1330 = vmatpush1.bf16.msra.mxu0 %v1321
        %1331 = vmatprep.subr.bf16.mxu0 0
        %1332 = vmatpush1.bf16.msra.mxu0 %v1322
        %1333 = vmatprep.subr.bf16.mxu0 0
        %1334 = vmatpush1.bf16.msra.mxu0 0
        %1335 = vmatprep.subr.bf16.mxu0 0
        %1336 = vmatpush1.bf16.msra.mxu0 0
        %1337 = vmatprep.subr.bf16.mxu0 0
        %1338 = vmatpush1.bf16.msra.mxu0 0
        %1339 = vmatprep.subr.bf16.mxu0 0
        %1340 = vmatpush1.bf16.msra.mxu0 0
        %1341 = vmatprep.subr.bf16.mxu0 0
        %1342 = vmatpush1.bf16.msra.mxu0 0
        %1343 = vmatprep.subr.bf16.mxu0 0
        %1344 = vmatpush1.bf16.msra.mxu0 0
        %1345 = vmatprep.subr.bf16.mxu0 0
        %1346 = vmatpush1.bf16.msra.mxu0 0
        %1347 = vmatprep.subr.bf16.mxu0 0
        %1348 = vmatpush1.bf16.msra.mxu0 0
        %1349 = vmatprep.subr.bf16.mxu0 0
        %1350 = vmatpush1.bf16.msra.mxu0 0
        %1351 = vmatprep.subr.bf16.mxu0 0
        %1352 = vmatpush1.bf16.msra.mxu0 0
        %1353 = vmatprep.subr.bf16.mxu0 0
        %1354 = vmatpush1.bf16.msra.mxu0 0
        %1355 = vmatprep.subr.bf16.mxu0 0
        %1356 = vmatpush1.bf16.msra.mxu0 0
        %1357 = vmatprep.subr.bf16.mxu0 0
        %1358 = vmatpush1.bf16.msra.mxu0 0
        %1359 = vmatprep.subr.bf16.mxu0 0
        %1360 = vmatpush1.bf16.msra.mxu0 0
        %1361 = vmatprep.mubr.bf16.mxu0 0
        %1362 = vmatmul.mubr.bf16.gmra.mrb[0].mxu0 %v1327
        %v1363 = vpop.f32.mrb[0].mxu0
        %v1364 = vadd.f32 %v1311, %v1363
        %v1365 = vpop.f32.mrb[0].mxu0
        %v1366 = vpop.f32.mrb[0].mxu0
        %v1367 = vpop.f32.mrb[0].mxu0
        %1368 = vdwg.mxu0
        %s1369 = scalar_lea.vmem %s591, %s699 [#allocation3]
        %v1370 = vld [vmem:[%s1369] sm:$0xff]
        %v1371 = vadd.f32 %v1370, %v1364
        %v1372 = vld [vmem:[#allocation17] sm:$0x1]
        %v1373 = vld [vmem:[#allocation18] sm:$0x1]
        %v1374 = vsel %vm1325, %v1371, 0.0
        %1375 = vadd.xlane.f32.xlu0 %v1374
        %v1376 = vpop.xlane.xlu0 %1375
        %v1377 = vrcp.pop 32.0
        %v1378 = vmul.f32 %v1376, %v1377
        %v1379 = vsub.f32 %v1371, %v1378
        %v1380 = vmul.f32 %v1379, %v1379
        %v1381 = vsel %vm1325, %v1380, 0.0
        %1382 = vadd.xlane.f32.xlu0 %v1381
        %v1383 = vpop.xlane.xlu0 %1382
        %v1384 = vmul.f32 %v1383, %v1377
        %v1385 = vadd.f32 %v1384, 1e-05
        %v1386 = vrsqrt.pop %v1385
        %v1387 = vmul.f32 %v1379, %v1386
        %v1389 = vlaneseq
        %v1390 = vshrl.u32 %v1389, 7
        %v1391 = vsub.s32 0, %v1390
        %v1392 = vrot.slane %v1372, %v1391
        %v1394 = vmul.f32 %v1387, %v1392
        %v1396 = vlaneseq
        %v1397 = vshrl.u32 %v1396, 7
        %v1398 = vsub.s32 0, %v1397
        %v1399 = vrot.slane %v1373, %v1398
        %v1401 = vadd.f32 %v1394, %v1399
        %v1402 = vpack.c.bf16 %v1401, %v1401
        %v1403 = vld [vmem:[#allocation20] sm:$0xf]
        %v1404 = vld [vmem:[#allocation20 + $0x4] sm:$0xf]
        %v1405 = vld [vmem:[#allocation20 + $0x8] sm:$0xf]
        %v1406 = vld [vmem:[#allocation20 + $0xc] sm:$0xf]
        %v1407 = vld [vmem:[#allocation21] sm:$0x1]
        %v1409 = vlaneseq
        %v1410 = vshrl.u32 %v1409, 7
        %v1411 = vsub.s32 0, %v1410
        %v1412 = vrot.slane %v1407, %v1411
        %v1418 = vunpack.c.l.b16 %v1403
        %v1419 = vunpack.c.l.b16 %v1404
        %v1420 = vunpack.c.l.b16 %v1405
        %v1421 = vunpack.c.l.b16 %v1406
        %v1422 = vpack.c.b16 %v1419, %v1418
        %v1423 = vpack.c.b16 %v1421, %v1420
        %v1427 = vsel %vm1325, %v1402, 0
        %1429 = vmatprep.subr.bf16.mxu0 0
        %1430 = vmatpush1.bf16.msra.mxu0 %v1422
        %1431 = vmatprep.subr.bf16.mxu0 0
        %1432 = vmatpush1.bf16.msra.mxu0 %v1423
        %1433 = vmatprep.subr.bf16.mxu0 0
        %1434 = vmatpush1.bf16.msra.mxu0 0
        %1435 = vmatprep.subr.bf16.mxu0 0
        %1436 = vmatpush1.bf16.msra.mxu0 0
        %1437 = vmatprep.subr.bf16.mxu0 0
        %1438 = vmatpush1.bf16.msra.mxu0 0
        %1439 = vmatprep.subr.bf16.mxu0 0
        %1440 = vmatpush1.bf16.msra.mxu0 0
        %1441 = vmatprep.subr.bf16.mxu0 0
        %1442 = vmatpush1.bf16.msra.mxu0 0
        %1443 = vmatprep.subr.bf16.mxu0 0
        %1444 = vmatpush1.bf16.msra.mxu0 0
        %1445 = vmatprep.subr.bf16.mxu0 0
        %1446 = vmatpush1.bf16.msra.mxu0 0
        %1447 = vmatprep.subr.bf16.mxu0 0
        %1448 = vmatpush1.bf16.msra.mxu0 0
        %1449 = vmatprep.subr.bf16.mxu0 0
        %1450 = vmatpush1.bf16.msra.mxu0 0
        %1451 = vmatprep.subr.bf16.mxu0 0
        %1452 = vmatpush1.bf16.msra.mxu0 0
        %1453 = vmatprep.subr.bf16.mxu0 0
        %1454 = vmatpush1.bf16.msra.mxu0 0
        %1455 = vmatprep.subr.bf16.mxu0 0
        %1456 = vmatpush1.bf16.msra.mxu0 0
        %1457 = vmatprep.subr.bf16.mxu0 0
        %1458 = vmatpush1.bf16.msra.mxu0 0
        %1459 = vmatprep.subr.bf16.mxu0 0
        %1460 = vmatpush1.bf16.msra.mxu0 0
        %1461 = vmatprep.mubr.bf16.mxu0 0
        %1462 = vmatmul.mubr.bf16.gmra.mrb[0].mxu0 %v1427
        %v1463 = vpop.f32.mrb[0].mxu0
        %v1464 = vadd.f32 %v1412, %v1463
        %v1465 = vpop.f32.mrb[0].mxu0
        %v1466 = vpop.f32.mrb[0].mxu0
        %v1467 = vpop.f32.mrb[0].mxu0
        %1468 = vdwg.mxu0
        %v1469 = vmul.f32 %v1464, 0.5
        %v1470 = vmul.f32 %v1464, 0.044715
        %v1471 = vmul.f32 %v1470, %v1464
        %v1472 = vmul.f32 %v1471, %v1464
        %v1473 = vadd.f32 %v1464, %v1472
        %v1474 = vmul.f32 %v1473, 0.7978846
        %v1475 = vtanh.pop %v1474
        %v1476 = vadd.f32 %v1475, 1.0
        %v1477 = vmul.f32 %v1469, %v1476
        %v1478 = vpack.c.bf16 %v1477, %v1477
        %v1479 = vld [vmem:[#allocation23] sm:$0xf]
        %v1480 = vld [vmem:[#allocation23 + $0x4] sm:$0xf]
        %v1481 = vld [vmem:[#allocation23 + $0x8] sm:$0xf]
        %v1482 = vld [vmem:[#allocation23 + $0xc] sm:$0xf]
        %v1483 = vld [vmem:[#allocation23 + $0x10] sm:$0xf]
        %v1484 = vld [vmem:[#allocation23 + $0x14] sm:$0xf]
        %v1485 = vld [vmem:[#allocation23 + $0x18] sm:$0xf]
        %v1486 = vld [vmem:[#allocation23 + $0x1c] sm:$0xf]
        %v1487 = vld [vmem:[#allocation24] sm:$0x1]
        %v1489 = vlaneseq
        %v1490 = vshrl.u32 %v1489, 7
        %v1491 = vsub.s32 0, %v1490
        %v1492 = vrot.slane %v1487, %v1491
        %v1502 = vunpack.c.l.b16 %v1479
        %v1503 = vunpack.c.l.b16 %v1480
        %v1504 = vunpack.c.l.b16 %v1481
        %v1505 = vunpack.c.l.b16 %v1482
        %v1506 = vunpack.c.l.b16 %v1483
        %v1507 = vunpack.c.l.b16 %v1484
        %v1508 = vunpack.c.l.b16 %v1485
        %v1509 = vunpack.c.l.b16 %v1486
        %v1510 = vpack.c.b16 %v1503, %v1502
        %v1511 = vpack.c.b16 %v1505, %v1504
        %v1512 = vpack.c.b16 %v1507, %v1506
        %v1513 = vpack.c.b16 %v1509, %v1508
        %vm1518 = vcmask 523264
        %v1520 = vsel %vm1518, %v1478, 0
        %1522 = vmatprep.subr.bf16.mxu0 0
        %1523 = vmatpush1.bf16.msra.mxu0 %v1510
        %1524 = vmatprep.subr.bf16.mxu0 0
        %1525 = vmatpush1.bf16.msra.mxu0 %v1511
        %1526 = vmatprep.subr.bf16.mxu0 0
        %1527 = vmatpush1.bf16.msra.mxu0 %v1512
        %1528 = vmatprep.subr.bf16.mxu0 0
        %1529 = vmatpush1.bf16.msra.mxu0 %v1513
        %1530 = vmatprep.subr.bf16.mxu0 0
        %1531 = vmatpush1.bf16.msra.mxu0 0
        %1532 = vmatprep.subr.bf16.mxu0 0
        %1533 = vmatpush1.bf16.msra.mxu0 0
        %1534 = vmatprep.subr.bf16.mxu0 0
        %1535 = vmatpush1.bf16.msra.mxu0 0
        %1536 = vmatprep.subr.bf16.mxu0 0
        %1537 = vmatpush1.bf16.msra.mxu0 0
        %1538 = vmatprep.subr.bf16.mxu0 0
        %1539 = vmatpush1.bf16.msra.mxu0 0
        %1540 = vmatprep.subr.bf16.mxu0 0
        %1541 = vmatpush1.bf16.msra.mxu0 0
        %1542 = vmatprep.subr.bf16.mxu0 0
        %1543 = vmatpush1.bf16.msra.mxu0 0
        %1544 = vmatprep.subr.bf16.mxu0 0
        %1545 = vmatpush1.bf16.msra.mxu0 0
        %1546 = vmatprep.subr.bf16.mxu0 0
        %1547 = vmatpush1.bf16.msra.mxu0 0
        %1548 = vmatprep.subr.bf16.mxu0 0
        %1549 = vmatpush1.bf16.msra.mxu0 0
        %1550 = vmatprep.subr.bf16.mxu0 0
        %1551 = vmatpush1.bf16.msra.mxu0 0
        %1552 = vmatprep.subr.bf16.mxu0 0
        %1553 = vmatpush1.bf16.msra.mxu0 0
        %1554 = vmatprep.mubr.bf16.mxu0 0
        %1555 = vmatmul.mubr.bf16.gmra.mrb[0].mxu0 %v1520
        %v1556 = vpop.f32.mrb[0].mxu0
        %v1557 = vadd.f32 %v1492, %v1556
        %v1558 = vpop.f32.mrb[0].mxu0
        %v1559 = vpop.f32.mrb[0].mxu0
        %v1560 = vpop.f32.mrb[0].mxu0
        %1561 = vdwg.mxu0
        %v1562 = vadd.f32 %v1371, %v1557
        %1563 = vst.msk [vmem:[%s697] sm:$0xff] %vm1325, %v1562
        %s1564 = sand.u32 %s368, 1
        %s1565 = scalar_lea.sflag [#allocation5], %s1564
        %s1566 = sand.u32 %s368, 1
        %s1567 = smul.addr %s1566, 8
        %s1568 = scalar_lea.vmem [#allocation26], %s1567
        // Predicated region
        $region137: #{tpu_custom_call.1} parent=75 // pred_check
          %p1569 = pneg %p378
        $region138: #{tpu_custom_call.1} parent=75 // pred_check_branch
          %1571 = sbr.rel (%p1569) target = $region140
        $region139: #{tpu_custom_call.1} parent=75 // pred_region
          %s1573 = ssub.s32 128, 128
          %1574 = vsyncadd %s1565, %s1573
          %s1575 = sadd.s32 %s45, %s44
          %s1576 = smul.addr %s1575, 128
          %s1577 = scalar_lea.hbm %s14, %s1576
          %s1579 = sshll.u32 %s1568, 4
          %s1580 = int_to_ptr.vmem [resolvable:$true] %s1579
          %1582 = dma.vmem_to_hbm [thread:$0]  %s1580, 128, %s1577, %s1565
        $region140: #{tpu_custom_call.1} parent=75 // pred_fallthru
          _
      $region76: #{tpu_custom_call.1} parent=5 // pred_fallthru
        _
      %p1583 = scmp.le.s32.totalorder 2, %s35
      // Predicated region
      $region141: #{tpu_custom_call.1} parent=5 // pred_check
        %p1584 = pneg %p1583
      $region142: #{tpu_custom_call.1} parent=5 // pred_check_branch
        %1586 = sbr.rel (%p1584) target = $region144
      $region143: #{tpu_custom_call.1} parent=5 // pred_region
        %s1587 = ssub.s32 %s35, 2
        // Predicated region
        $region145: #{tpu_custom_call.1} parent=143 // pred_check
          %p1588 = pneg %p384
        $region146: #{tpu_custom_call.1} parent=143 // pred_check_branch
          %1590 = sbr.rel (%p1588) target = $region148
        $region147: #{tpu_custom_call.1} parent=143 // pred_region
          %s1591 = sand.u32 %s369, 1
          %s1592 = scalar_lea.sflag [#allocation5], %s1591
          %s1593 = sand.u32 %s369, 1
          %s1594 = smul.addr %s1593, 8
          %s1595 = scalar_lea.vmem [#allocation26], %s1594
          %1596 = dma.done %s1592, 128
        $region148: #{tpu_custom_call.1} parent=143 // pred_fallthru
          _
      $region144: #{tpu_custom_call.1} parent=5 // pred_fallthru
        _
    $region6: #{tpu_custom_call.1} parent=1 // loop_footer
      %s39 = sadd.s32 1, %s35
    $region7: #{tpu_custom_call.1} parent=1 // loop_footer_branch
      %34 = sbr.rel target = $region3
    $region8: #{tpu_custom_call.1} parent=1 // loop_exit
      _
    %1597 = vsyncpa [#allocation4], 1
    %s1598 = scalar_lea.sflag [#allocation4], 1
    %1599 = vsyncpa %s1598, 1
    %1600 = vsyncpa [#allocation7], 1
    %s1601 = scalar_lea.sflag [#allocation7], 1
    %1602 = vsyncpa %s1601, 1
    %1603 = vsyncpa [#allocation10], 1
    %1604 = vsyncpa [#allocation13], 1
    %1605 = vsyncpa [#allocation16], 1
    %1606 = vsyncpa [#allocation19], 1
    %1607 = vsyncpa [#allocation22], 1
    %1608 = vsyncpa [#allocation25], 1
    %1609 = vsyncpa [#allocation5], 1
    %s1610 = scalar_lea.sflag [#allocation5], 1
    %1611 = vsyncpa %s1610, 1

</llo_original>
